<compile_context>
chip_gen: v7x
topology: tpu7x:2x2x1
jax: 0.10.0
libtpu: 0.0.40
codegen_flags: <defaults>
</compile_context>

<pallas_src>
import functools

import jax
import jax.numpy as jnp
from jax.experimental import pallas as pl
from jax.experimental.pallas import tpu as pltpu


def _round_up(x, m):
    return ((x + m - 1) // m) * m


# ----------------------------------------------------------------------------
# Fused kernel builder
# ----------------------------------------------------------------------------
def _make_fused_gru_kernel(num_layers, seq_len, h_pad):
    """Kernel: `num_layers` stacked GRU layers over time + fused readout.

    Positional refs (all whole-array VMEM blocks, no grid), time-major:
      x_ref    : (T, B_pad, I)           time-major input (zero padded batch)
      h0_ref   : (L, B_pad, H_pad)       initial hidden state
      per layer l: w_ih (rows, 3*H_pad), w_hh (H_pad, 3*H_pad),
                   b_gi (1, 3*H_pad)  [= b_ih with b_hh folded for r,z],
                   b_hn (1, H_pad)    [= b_hh n-gate, applied inside r*(...)]
      wout_ref : (H_pad, O_pad)
      bout_ref : (1, O_pad)
      out_ref  : (T, B_pad, O_pad)       sigmoid(Linear(relu(h_seq)))
      hseq_ref : (T, B_pad, H_pad)       last-layer hidden sequence
      gi0_sc   : (T, B_pad, 3*H_pad)     scratch: hoisted layer-0 projection
    """
    L = num_layers
    T = seq_len
    H_pad = h_pad

    def kernel(*args):
        x_ref, h0_ref = args[0], args[1]
        layer_refs = args[2:2 + 4 * L]
        wout_ref, bout_ref = args[2 + 4 * L], args[3 + 4 * L]
        out_ref, hseq_ref = args[4 + 4 * L], args[5 + 4 * L]
        gi0_sc = args[6 + 4 * L]

        B_pad = x_ref.shape[1]
        I = x_ref.shape[2]
        O_pad = wout_ref.shape[1]

        wih_refs = [layer_refs[4 * l + 0] for l in range(L)]
        whh_refs = [layer_refs[4 * l + 1] for l in range(L)]
        bgi_refs = [layer_refs[4 * l + 2] for l in range(L)]
        bhn_refs = [layer_refs[4 * l + 3] for l in range(L)]

        # ---- Hoist weight reads & bias broadcasts out of the time loop. ----
        W_hh = [whh_refs[l][...] for l in range(L)]
        W_ih_hi = {l: wih_refs[l][...] for l in range(1, L)}
        b_gi_b = {l: jnp.broadcast_to(bgi_refs[l][...], (B_pad, 3 * H_pad))
                  for l in range(1, L)}
        b_hn_b = [jnp.broadcast_to(bhn_refs[l][...], (B_pad, H_pad))
                  for l in range(L)]

        # ---- Hoisted layer-0 input projection: one big MXU matmul. ----
        # Time-major (T*B_pad, I): leading-dim merge is layout-free (B_pad%8==0).
        x_flat = x_ref[...].reshape(T * B_pad, I)
        gi0 = jnp.dot(x_flat, wih_refs[0][...],
                      preferred_element_type=jnp.float32) + bgi_refs[0][...]
        gi0_sc[...] = gi0.reshape(T, B_pad, 3 * H_pad)

        def cell(gi, gh, b_hn, h_prev):
            # Gate blocks are 128-lane aligned -> pure lane-dense slices.
            r = jax.nn.sigmoid(gi[:, 0:H_pad] + gh[:, 0:H_pad])
            z = jax.nn.sigmoid(gi[:, H_pad:2 * H_pad] + gh[:, H_pad:2 * H_pad])
            n = jnp.tanh(gi[:, 2 * H_pad:3 * H_pad]
                         + r * (gh[:, 2 * H_pad:3 * H_pad] + b_hn))
            # h_new = (1 - z) * n + z * h_prev, one VALU op cheaper:
            return n + z * (h_prev - n)

        def step(t, hs):
            hs = list(hs)
            # TODO(synk): hold W_hh / W_ih stationary in the MXU across steps
            # via pltpu.matmul_push_rhs / matmul_acc_lhs — M=B_pad=8 matmuls
            # are weight-push bound.
            gh0 = jnp.dot(hs[0], W_hh[0], preferred_element_type=jnp.float32)
            hs[0] = cell(gi0_sc[t], gh0, b_hn_b[0], hs[0])
            # Upper layers consume the freshly updated lower-layer state.
            for l in range(1, L):
                gi = jnp.dot(hs[l - 1], W_ih_hi[l],
                             preferred_element_type=jnp.float32) + b_gi_b[l]
                gh = jnp.dot(hs[l], W_hh[l],
                             preferred_element_type=jnp.float32)
                hs[l] = cell(gi, gh, b_hn_b[l], hs[l])
            hseq_ref[t] = hs[L - 1]   # time-major: single dense unmasked store
            return tuple(hs)

        hs = tuple(h0_ref[l] for l in range(L))
        if T <= 16:
            # Small T: static unroll gives the LLO scheduler full visibility.
            for t in range(T):
                hs = step(t, hs)
        else:
            # Longer sequences: bound vreg live ranges / code size.
            hs = jax.lax.fori_loop(0, T, step, hs, unroll=4)

        # ---- Fused readout on the whole sequence: one big MXU matmul. ----
        # TODO(synk): cast matmul operands to bf16 (keep f32 accumulation /
        # gate math) for v6e/v7x MXU throughput at larger shapes.
        h_all = jnp.maximum(hseq_ref[...].reshape(T * B_pad, H_pad), 0.0)
        y = jnp.dot(h_all, wout_ref[...],
                    preferred_element_type=jnp.float32) + bout_ref[...]
        out_ref[...] = jax.nn.sigmoid(y).reshape(T, B_pad, O_pad)

    return kernel


# ----------------------------------------------------------------------------
# Wrapper
# ----------------------------------------------------------------------------
def gru_forward(params, x_bti, h0=None):
    """Equivalent of GRU.forward(x, h, method=None).

    x_bti : (B, T, input_size), batch_first.
    h0    : optional (num_layers, B, hidden_size) initial hidden state.
    Returns (out, hidden_state):
      out          : (B, T, output_size) = sigmoid(Linear(relu(gru_out)))
      hidden_state : (B, T, hidden_size) = full last-layer GRU output sequence
    """
    B, T, I = x_bti.shape
    L = params["num_layers"]
    H = params["hidden_size"]
    O = params["output_size"]
    H_pad = params["H_pad"]
    O_pad = params["O_pad"]
    B_pad = _round_up(max(B, 8), 8)  # >=8 sublanes / MXU rows

    # Time-major padded input (tiny one-off XLA transpose outside the kernel).
    x_p = jnp.zeros((T, B_pad, I), jnp.float32).at[:, :B, :].set(
        jnp.transpose(x_bti.astype(jnp.float32), (1, 0, 2)))
    if h0 is None:
        h0_p = jnp.zeros((L, B_pad, H_pad), jnp.float32)
    else:
        h0_p = jnp.zeros((L, B_pad, H_pad), jnp.float32).at[:, :B, :H].set(
            h0.astype(jnp.float32))

    flat_w = []
    for lp in params["layers"]:
        flat_w += [lp["w_ih"], lp["w_hh"], lp["b_gi"], lp["b_hn"]]

    kernel = _make_fused_gru_kernel(L, T, H_pad)
    n_inputs = 2 + 4 * L + 2  # x, h0, per-layer weights, w_out, b_out
    vmem_spec = pl.BlockSpec(memory_space=pltpu.MemorySpace.VMEM)

    # Explicit VMEM budget (default scoped limit is well below physical);
    # capped so the same config also fits v7x's 64 MiB VMEM.
    n_bytes = 4 * (
        x_p.size + h0_p.size
        + sum(int(w.size) for w in flat_w)
        + int(params["w_out"].size) + int(params["b_out"].size)
        + T * B_pad * O_pad + T * B_pad * H_pad        # outputs
        + T * B_pad * 3 * H_pad)                       # gi0 scratch
    vmem_limit = int(min(48 * 1024 * 1024,
                         max(16 * 1024 * 1024, 2 * n_bytes + (2 << 20))))
    # TODO(synk): for large B, add a batch-tile grid with
    # dimension_semantics=("parallel",) so v7x's two TensorCores split the
    # batch, and time-chunk gi0 when T*B_pad*3*H_pad no longer fits VMEM.

    out_tm, hseq_tm = pl.pallas_call(
        kernel,
        out_shape=(
            jax.ShapeDtypeStruct((T, B_pad, O_pad), jnp.float32),
            jax.ShapeDtypeStruct((T, B_pad, H_pad), jnp.float32),
        ),
        in_specs=[vmem_spec] * n_inputs,
        out_specs=(
            pl.BlockSpec(memory_space=pltpu.MemorySpace.VMEM),
            pl.BlockSpec(memory_space=pltpu.MemorySpace.VMEM),
        ),
        scratch_shapes=[pltpu.VMEM((T, B_pad, 3 * H_pad), jnp.float32)],
        compiler_params=pltpu.CompilerParams(vmem_limit_bytes=vmem_limit),
    )(x_p, h0_p, *flat_w, params["w_out"], params["b_out"])

    # Strip padding & restore batch-first layout (tiny XLA transposes).
    out = jnp.transpose(out_tm, (1, 0, 2))[:B, :, :O]
    hseq = jnp.transpose(hseq_tm, (1, 0, 2))[:B, :, :H]
    return out, hseq


# ----------------------------------------------------------------------------
# Deterministic PyTorch-style init, stored in the padded/lane-aligned layout
# the kernel expects: gate g (r=0, z=1, n=2) occupies lanes
# [g*H_pad, g*H_pad + H) of the 3*H_pad axis; padded rows/cols are zero so the
# padded hidden lanes provably stay zero through the recurrence.  b_hh for the
# r and z gates is pre-folded into b_gi; b_hh for the n gate stays separate
# because it is multiplied by r.
# ----------------------------------------------------------------------------
def init_params(key, input_size, hidden_size, num_layers, output_size):
    H, O = hidden_size, output_size
    H_pad = _round_up(H, 128)
    O_pad = _round_up(O, 128)
    bound = 1.0 / (hidden_size ** 0.5)

    def pad_gate_matrix(w, rows_pad):
        rows = w.shape[0]
        w3 = w.reshape(rows, 3, H)
        out = jnp.zeros((rows_pad, 3, H_pad), jnp.float32)
        out = out.at[:rows, :, :H].set(w3)
        return out.reshape(rows_pad, 3 * H_pad)

    layers = []
    for layer in range(num_layers):
        in_sz = input_size if layer == 0 else H
        rows_pad = input_size if layer == 0 else H_pad
        key, k1, k2, k3, k4 = jax.random.split(key, 5)
        w_ih = jax.random.uniform(k1, (in_sz, 3 * H), jnp.float32, -bound, bound)
        w_hh = jax.random.uniform(k2, (H, 3 * H), jnp.float32, -bound, bound)
        b_ih = jax.random.uniform(k3, (3 * H,), jnp.float32, -bound, bound)
        b_hh = jax.random.uniform(k4, (3 * H,), jnp.float32, -bound, bound)

        b_ih3 = b_ih.reshape(3, H)
        b_hh3 = b_hh.reshape(3, H)
        # Fold b_hh into the input-side bias for r and z only.
        b_gi = jnp.stack([b_ih3[0] + b_hh3[0],
                          b_ih3[1] + b_hh3[1],
                          b_ih3[2]], axis=0)                     # (3, H)
        b_gi_p = jnp.zeros((3, H_pad), jnp.float32).at[:, :H].set(b_gi)
        b_hn_p = jnp.zeros((1, H_pad), jnp.float32).at[:, :H].set(b_hh3[2])

        layers.append({
            "w_ih": pad_gate_matrix(w_ih, rows_pad),
            "w_hh": pad_gate_matrix(w_hh, H_pad),
            "b_gi": b_gi_p.reshape(1, 3 * H_pad),
            "b_hn": b_hn_p,
        })

    key, k5, k6 = jax.random.split(key, 3)
    w_out = jax.random.uniform(k5, (H, O), jnp.float32, -bound, bound)
    b_out = jax.random.uniform(k6, (O,), jnp.float32, -bound, bound)
    w_out_p = jnp.zeros((H_pad, O_pad), jnp.float32).at[:H, :O].set(w_out)
    b_out_p = jnp.zeros((1, O_pad), jnp.float32).at[:, :O].set(b_out)

    return {
        "layers": layers,
        "w_out": w_out_p,
        "b_out": b_out_p,
        "input_size": input_size,
        "hidden_size": H,
        "output_size": O,
        "num_layers": num_layers,
        "H_pad": H_pad,
        "O_pad": O_pad,
    }


# ----------------------------------------------------------------------------
if __name__ == "__main__":
    input_size = 16
    hidden_size = 32
    num_layers = 2
    output_size = 4
    batch_size = 2
    seq_len = 8

    key = jax.random.PRNGKey(0)
    key, pkey, xkey = jax.random.split(key, 3)
    params = init_params(pkey, input_size, hidden_size, num_layers, output_size)

    x = jax.random.normal(xkey, (batch_size, seq_len, input_size), jnp.float32)

    fwd = jax.jit(functools.partial(gru_forward, params))
    out, hidden_state = fwd(x)
    jax.block_until_ready((out, hidden_state))

    assert out.shape == (batch_size, seq_len, output_size)
    assert hidden_state.shape == (batch_size, seq_len, hidden_size)
    assert bool(jnp.all(jnp.isfinite(out)))
    assert bool(jnp.all(jnp.isfinite(hidden_state)))
    assert bool(jnp.all((out >= 0.0) & (out <= 1.0)))  # sigmoid range
    assert bool(jnp.all(jnp.abs(hidden_state) <= 1.0))  # GRU state is tanh-bounded

    print("KERNEL_OK")
</pallas_src>

<mosaic_0001>
module attributes {stable_mosaic.version = 11 : i64} {
  func.func @kernel(%arg0: memref<8x8x16xf32, #tpu.memory_space<vmem>>, %arg1: memref<2x8x128xf32, #tpu.memory_space<vmem>>, %arg2: memref<16x384xf32, #tpu.memory_space<vmem>>, %arg3: memref<128x384xf32, #tpu.memory_space<vmem>>, %arg4: memref<1x384xf32, #tpu.memory_space<vmem>>, %arg5: memref<1x128xf32, #tpu.memory_space<vmem>>, %arg6: memref<128x384xf32, #tpu.memory_space<vmem>>, %arg7: memref<128x384xf32, #tpu.memory_space<vmem>>, %arg8: memref<1x384xf32, #tpu.memory_space<vmem>>, %arg9: memref<1x128xf32, #tpu.memory_space<vmem>>, %arg10: memref<128x128xf32, #tpu.memory_space<vmem>>, %arg11: memref<1x128xf32, #tpu.memory_space<vmem>>, %arg12: memref<8x8x128xf32, #tpu.memory_space<vmem>>, %arg13: memref<8x8x128xf32, #tpu.memory_space<vmem>>, %arg14: memref<8x8x384xf32, #tpu.memory_space<vmem>>) attributes {dimension_semantics = [], scalar_prefetch = 0 : i64, scratch_operands = 1 : i64, tpu.core_type = #tpu.core_type<tc>} {
    %c0 = arith.constant 0 : index
    %c0_0 = arith.constant 0 : index
    %0 = vector.load %arg3[%c0, %c0_0] : memref<128x384xf32, #tpu.memory_space<vmem>>, vector<128x384xf32>
    %c0_1 = arith.constant 0 : index
    %c0_2 = arith.constant 0 : index
    %1 = vector.load %arg7[%c0_1, %c0_2] : memref<128x384xf32, #tpu.memory_space<vmem>>, vector<128x384xf32>
    %c0_3 = arith.constant 0 : index
    %c0_4 = arith.constant 0 : index
    %2 = vector.load %arg6[%c0_3, %c0_4] : memref<128x384xf32, #tpu.memory_space<vmem>>, vector<128x384xf32>
    %c0_5 = arith.constant 0 : index
    %c0_6 = arith.constant 0 : index
    %3 = vector.load %arg8[%c0_5, %c0_6] : memref<1x384xf32, #tpu.memory_space<vmem>>, vector<1x384xf32>
    %4 = vector.shape_cast %3 : vector<1x384xf32> to vector<1x384xf32>
    %5 = vector.broadcast %4 : vector<1x384xf32> to vector<8x384xf32>
    %c0_7 = arith.constant 0 : index
    %c0_8 = arith.constant 0 : index
    %6 = vector.load %arg5[%c0_7, %c0_8] : memref<1x128xf32, #tpu.memory_space<vmem>>, vector<1x128xf32>
    %7 = vector.shape_cast %6 : vector<1x128xf32> to vector<1x128xf32>
    %8 = vector.broadcast %7 : vector<1x128xf32> to vector<8x128xf32>
    %c0_9 = arith.constant 0 : index
    %c0_10 = arith.constant 0 : index
    %9 = vector.load %arg9[%c0_9, %c0_10] : memref<1x128xf32, #tpu.memory_space<vmem>>, vector<1x128xf32>
    %10 = vector.shape_cast %9 : vector<1x128xf32> to vector<1x128xf32>
    %11 = vector.broadcast %10 : vector<1x128xf32> to vector<8x128xf32>
    %c0_11 = arith.constant 0 : index
    %c0_12 = arith.constant 0 : index
    %c0_13 = arith.constant 0 : index
    %12 = vector.load %arg0[%c0_11, %c0_12, %c0_13] : memref<8x8x16xf32, #tpu.memory_space<vmem>>, vector<8x8x16xf32>
    %13 = vector.shape_cast %12 : vector<8x8x16xf32> to vector<64x16xf32>
    %c0_14 = arith.constant 0 : index
    %c0_15 = arith.constant 0 : index
    %14 = vector.load %arg2[%c0_14, %c0_15] : memref<16x384xf32, #tpu.memory_space<vmem>>, vector<16x384xf32>
    %cst = arith.constant dense<0.000000e+00> : vector<64x384xf32>
    %15 = tpu.matmul %13, %14, %cst {dimension_numbers = #tpu.dot_dimension_numbers<[1], [0], [0], [1], [0, 0, 1, 1], [], []>} : vector<64x16xf32>, vector<16x384xf32>, vector<64x384xf32> -> vector<64x384xf32>
    %c0_16 = arith.constant 0 : index
    %c0_17 = arith.constant 0 : index
    %16 = vector.load %arg4[%c0_16, %c0_17] : memref<1x384xf32, #tpu.memory_space<vmem>>, vector<1x384xf32>
    %17 = vector.broadcast %16 : vector<1x384xf32> to vector<64x384xf32>
    %18 = arith.addf %15, %17 : vector<64x384xf32>
    %19 = vector.shape_cast %18 : vector<64x384xf32> to vector<8x8x384xf32>
    %c0_18 = arith.constant 0 : index
    %c0_19 = arith.constant 0 : index
    %c0_20 = arith.constant 0 : index
    %20 = vector.load %arg14[%c0_18, %c0_19, %c0_20] : memref<8x8x384xf32, #tpu.memory_space<vmem>>, vector<8x8x384xf32>
    tpu.vector_store %arg14[%c0_18, %c0_19, %c0_20], %19 {strides = array<i32>} : memref<8x8x384xf32, #tpu.memory_space<vmem>>, vector<8x8x384xf32>,
    %c0_21 = arith.constant 0 : index
    %c0_22 = arith.constant 0 : index
    %c0_23 = arith.constant 0 : index
    %21 = vector.load %arg1[%c0_21, %c0_22, %c0_23] : memref<2x8x128xf32, #tpu.memory_space<vmem>>, vector<1x8x128xf32>
    %22 = vector.shape_cast %21 : vector<1x8x128xf32> to vector<8x128xf32>
    %c1 = arith.constant 1 : index
    %c0_24 = arith.constant 0 : index
    %c0_25 = arith.constant 0 : index
    %23 = vector.load %arg1[%c1, %c0_24, %c0_25] : memref<2x8x128xf32, #tpu.memory_space<vmem>>, vector<1x8x128xf32>
    %24 = vector.shape_cast %23 : vector<1x8x128xf32> to vector<8x128xf32>
    %cst_26 = arith.constant dense<0.000000e+00> : vector<8x384xf32>
    %25 = tpu.matmul %22, %0, %cst_26 {dimension_numbers = #tpu.dot_dimension_numbers<[1], [0], [0], [1], [0, 0, 1, 1], [], []>} : vector<8x128xf32>, vector<128x384xf32>, vector<8x384xf32> -> vector<8x384xf32>
    %c0_27 = arith.constant 0 : index
    %c0_28 = arith.constant 0 : index
    %c0_29 = arith.constant 0 : index
    %26 = vector.load %arg14[%c0_27, %c0_28, %c0_29] : memref<8x8x384xf32, #tpu.memory_space<vmem>>, vector<1x8x384xf32>
    %27 = vector.shape_cast %26 : vector<1x8x384xf32> to vector<8x384xf32>
    %28 = vector.extract_strided_slice %27 {offsets = [0, 0], sizes = [8, 128], strides = [1, 1]} : vector<8x384xf32> to vector<8x128xf32>
    %29 = vector.extract_strided_slice %25 {offsets = [0, 0], sizes = [8, 128], strides = [1, 1]} : vector<8x384xf32> to vector<8x128xf32>
    %30 = arith.addf %28, %29 : vector<8x128xf32>
    %31 = arith.negf %30 : vector<8x128xf32>
    %32 = math.exp %31 : vector<8x128xf32>
    %cst_30 = arith.constant 1.000000e+00 : f32
    %33 = vector.broadcast %cst_30 : f32 to vector<8x128xf32>
    %34 = arith.addf %33, %32 : vector<8x128xf32>
    %35 = arith.divf %33, %34 : vector<8x128xf32>
    %36 = vector.extract_strided_slice %27 {offsets = [0, 128], sizes = [8, 128], strides = [1, 1]} : vector<8x384xf32> to vector<8x128xf32>
    %37 = vector.extract_strided_slice %25 {offsets = [0, 128], sizes = [8, 128], strides = [1, 1]} : vector<8x384xf32> to vector<8x128xf32>
    %38 = arith.addf %36, %37 : vector<8x128xf32>
    %39 = arith.negf %38 : vector<8x128xf32>
    %40 = math.exp %39 : vector<8x128xf32>
    %cst_31 = arith.constant 1.000000e+00 : f32
    %41 = vector.broadcast %cst_31 : f32 to vector<8x128xf32>
    %42 = arith.addf %41, %40 : vector<8x128xf32>
    %43 = arith.divf %41, %42 : vector<8x128xf32>
    %44 = vector.extract_strided_slice %27 {offsets = [0, 256], sizes = [8, 128], strides = [1, 1]} : vector<8x384xf32> to vector<8x128xf32>
    %45 = vector.extract_strided_slice %25 {offsets = [0, 256], sizes = [8, 128], strides = [1, 1]} : vector<8x384xf32> to vector<8x128xf32>
    %46 = arith.addf %45, %8 : vector<8x128xf32>
    %47 = arith.mulf %35, %46 : vector<8x128xf32>
    %48 = arith.addf %44, %47 : vector<8x128xf32>
    %49 = math.tanh %48 : vector<8x128xf32>
    %50 = arith.subf %22, %49 : vector<8x128xf32>
    %51 = arith.mulf %43, %50 : vector<8x128xf32>
    %52 = arith.addf %49, %51 : vector<8x128xf32>
    %cst_32 = arith.constant dense<0.000000e+00> : vector<8x384xf32>
    %53 = tpu.matmul %52, %2, %cst_32 {dimension_numbers = #tpu.dot_dimension_numbers<[1], [0], [0], [1], [0, 0, 1, 1], [], []>} : vector<8x128xf32>, vector<128x384xf32>, vector<8x384xf32> -> vector<8x384xf32>
    %54 = arith.addf %53, %5 : vector<8x384xf32>
    %cst_33 = arith.constant dense<0.000000e+00> : vector<8x384xf32>
    %55 = tpu.matmul %24, %1, %cst_33 {dimension_numbers = #tpu.dot_dimension_numbers<[1], [0], [0], [1], [0, 0, 1, 1], [], []>} : vector<8x128xf32>, vector<128x384xf32>, vector<8x384xf32> -> vector<8x384xf32>
    %56 = vector.extract_strided_slice %54 {offsets = [0, 0], sizes = [8, 128], strides = [1, 1]} : vector<8x384xf32> to vector<8x128xf32>
    %57 = vector.extract_strided_slice %55 {offsets = [0, 0], sizes = [8, 128], strides = [1, 1]} : vector<8x384xf32> to vector<8x128xf32>
    %58 = arith.addf %56, %57 : vector<8x128xf32>
    %59 = arith.negf %58 : vector<8x128xf32>
    %60 = math.exp %59 : vector<8x128xf32>
    %cst_34 = arith.constant 1.000000e+00 : f32
    %61 = vector.broadcast %cst_34 : f32 to vector<8x128xf32>
    %62 = arith.addf %61, %60 : vector<8x128xf32>
    %63 = arith.divf %61, %62 : vector<8x128xf32>
    %64 = vector.extract_strided_slice %54 {offsets = [0, 128], sizes = [8, 128], strides = [1, 1]} : vector<8x384xf32> to vector<8x128xf32>
    %65 = vector.extract_strided_slice %55 {offsets = [0, 128], sizes = [8, 128], strides = [1, 1]} : vector<8x384xf32> to vector<8x128xf32>
    %66 = arith.addf %64, %65 : vector<8x128xf32>
    %67 = arith.negf %66 : vector<8x128xf32>
    %68 = math.exp %67 : vector<8x128xf32>
    %cst_35 = arith.constant 1.000000e+00 : f32
    %69 = vector.broadcast %cst_35 : f32 to vector<8x128xf32>
    %70 = arith.addf %69, %68 : vector<8x128xf32>
    %71 = arith.divf %69, %70 : vector<8x128xf32>
    %72 = vector.extract_strided_slice %54 {offsets = [0, 256], sizes = [8, 128], strides = [1, 1]} : vector<8x384xf32> to vector<8x128xf32>
    %73 = vector.extract_strided_slice %55 {offsets = [0, 256], sizes = [8, 128], strides = [1, 1]} : vector<8x384xf32> to vector<8x128xf32>
    %74 = arith.addf %73, %11 : vector<8x128xf32>
    %75 = arith.mulf %63, %74 : vector<8x128xf32>
    %76 = arith.addf %72, %75 : vector<8x128xf32>
    %77 = math.tanh %76 : vector<8x128xf32>
    %78 = arith.subf %24, %77 : vector<8x128xf32>
    %79 = arith.mulf %71, %78 : vector<8x128xf32>
    %80 = arith.addf %77, %79 : vector<8x128xf32>
    %c0_36 = arith.constant 0 : index
    %c0_37 = arith.constant 0 : index
    %c0_38 = arith.constant 0 : index
    %81 = vector.load %arg13[%c0_36, %c0_37, %c0_38] : memref<8x8x128xf32, #tpu.memory_space<vmem>>, vector<1x8x128xf32>
    %82 = vector.shape_cast %81 : vector<1x8x128xf32> to vector<8x128xf32>
    %83 = vector.shape_cast %80 : vector<8x128xf32> to vector<1x8x128xf32>
    tpu.vector_store %arg13[%c0_36, %c0_37, %c0_38], %83 {strides = array<i32>} : memref<8x8x128xf32, #tpu.memory_space<vmem>>, vector<1x8x128xf32>,
    %cst_39 = arith.constant dense<0.000000e+00> : vector<8x384xf32>
    %84 = tpu.matmul %52, %0, %cst_39 {dimension_numbers = #tpu.dot_dimension_numbers<[1], [0], [0], [1], [0, 0, 1, 1], [], []>} : vector<8x128xf32>, vector<128x384xf32>, vector<8x384xf32> -> vector<8x384xf32>
    %c1_40 = arith.constant 1 : index
    %c0_41 = arith.constant 0 : index
    %c0_42 = arith.constant 0 : index
    %85 = vector.load %arg14[%c1_40, %c0_41, %c0_42] : memref<8x8x384xf32, #tpu.memory_space<vmem>>, vector<1x8x384xf32>
    %86 = vector.shape_cast %85 : vector<1x8x384xf32> to vector<8x384xf32>
    %87 = vector.extract_strided_slice %86 {offsets = [0, 0], sizes = [8, 128], strides = [1, 1]} : vector<8x384xf32> to vector<8x128xf32>
    %88 = vector.extract_strided_slice %84 {offsets = [0, 0], sizes = [8, 128], strides = [1, 1]} : vector<8x384xf32> to vector<8x128xf32>
    %89 = arith.addf %87, %88 : vector<8x128xf32>
    %90 = arith.negf %89 : vector<8x128xf32>
    %91 = math.exp %90 : vector<8x128xf32>
    %cst_43 = arith.constant 1.000000e+00 : f32
    %92 = vector.broadcast %cst_43 : f32 to vector<8x128xf32>
    %93 = arith.addf %92, %91 : vector<8x128xf32>
    %94 = arith.divf %92, %93 : vector<8x128xf32>
    %95 = vector.extract_strided_slice %86 {offsets = [0, 128], sizes = [8, 128], strides = [1, 1]} : vector<8x384xf32> to vector<8x128xf32>
    %96 = vector.extract_strided_slice %84 {offsets = [0, 128], sizes = [8, 128], strides = [1, 1]} : vector<8x384xf32> to vector<8x128xf32>
    %97 = arith.addf %95, %96 : vector<8x128xf32>
    %98 = arith.negf %97 : vector<8x128xf32>
    %99 = math.exp %98 : vector<8x128xf32>
    %cst_44 = arith.constant 1.000000e+00 : f32
    %100 = vector.broadcast %cst_44 : f32 to vector<8x128xf32>
    %101 = arith.addf %100, %99 : vector<8x128xf32>
    %102 = arith.divf %100, %101 : vector<8x128xf32>
    %103 = vector.extract_strided_slice %86 {offsets = [0, 256], sizes = [8, 128], strides = [1, 1]} : vector<8x384xf32> to vector<8x128xf32>
    %104 = vector.extract_strided_slice %84 {offsets = [0, 256], sizes = [8, 128], strides = [1, 1]} : vector<8x384xf32> to vector<8x128xf32>
    %105 = arith.addf %104, %8 : vector<8x128xf32>
    %106 = arith.mulf %94, %105 : vector<8x128xf32>
    %107 = arith.addf %103, %106 : vector<8x128xf32>
    %108 = math.tanh %107 : vector<8x128xf32>
    %109 = arith.subf %52, %108 : vector<8x128xf32>
    %110 = arith.mulf %102, %109 : vector<8x128xf32>
    %111 = arith.addf %108, %110 : vector<8x128xf32>
    %cst_45 = arith.constant dense<0.000000e+00> : vector<8x384xf32>
    %112 = tpu.matmul %111, %2, %cst_45 {dimension_numbers = #tpu.dot_dimension_numbers<[1], [0], [0], [1], [0, 0, 1, 1], [], []>} : vector<8x128xf32>, vector<128x384xf32>, vector<8x384xf32> -> vector<8x384xf32>
    %113 = arith.addf %112, %5 : vector<8x384xf32>
    %cst_46 = arith.constant dense<0.000000e+00> : vector<8x384xf32>
    %114 = tpu.matmul %80, %1, %cst_46 {dimension_numbers = #tpu.dot_dimension_numbers<[1], [0], [0], [1], [0, 0, 1, 1], [], []>} : vector<8x128xf32>, vector<128x384xf32>, vector<8x384xf32> -> vector<8x384xf32>
    %115 = vector.extract_strided_slice %113 {offsets = [0, 0], sizes = [8, 128], strides = [1, 1]} : vector<8x384xf32> to vector<8x128xf32>
    %116 = vector.extract_strided_slice %114 {offsets = [0, 0], sizes = [8, 128], strides = [1, 1]} : vector<8x384xf32> to vector<8x128xf32>
    %117 = arith.addf %115, %116 : vector<8x128xf32>
    %118 = arith.negf %117 : vector<8x128xf32>
    %119 = math.exp %118 : vector<8x128xf32>
    %cst_47 = arith.constant 1.000000e+00 : f32
    %120 = vector.broadcast %cst_47 : f32 to vector<8x128xf32>
    %121 = arith.addf %120, %119 : vector<8x128xf32>
    %122 = arith.divf %120, %121 : vector<8x128xf32>
    %123 = vector.extract_strided_slice %113 {offsets = [0, 128], sizes = [8, 128], strides = [1, 1]} : vector<8x384xf32> to vector<8x128xf32>
    %124 = vector.extract_strided_slice %114 {offsets = [0, 128], sizes = [8, 128], strides = [1, 1]} : vector<8x384xf32> to vector<8x128xf32>
    %125 = arith.addf %123, %124 : vector<8x128xf32>
    %126 = arith.negf %125 : vector<8x128xf32>
    %127 = math.exp %126 : vector<8x128xf32>
    %cst_48 = arith.constant 1.000000e+00 : f32
    %128 = vector.broadcast %cst_48 : f32 to vector<8x128xf32>
    %129 = arith.addf %128, %127 : vector<8x128xf32>
    %130 = arith.divf %128, %129 : vector<8x128xf32>
    %131 = vector.extract_strided_slice %113 {offsets = [0, 256], sizes = [8, 128], strides = [1, 1]} : vector<8x384xf32> to vector<8x128xf32>
    %132 = vector.extract_strided_slice %114 {offsets = [0, 256], sizes = [8, 128], strides = [1, 1]} : vector<8x384xf32> to vector<8x128xf32>
    %133 = arith.addf %132, %11 : vector<8x128xf32>
    %134 = arith.mulf %122, %133 : vector<8x128xf32>
    %135 = arith.addf %131, %134 : vector<8x128xf32>
    %136 = math.tanh %135 : vector<8x128xf32>
    %137 = arith.subf %80, %136 : vector<8x128xf32>
    %138 = arith.mulf %130, %137 : vector<8x128xf32>
    %139 = arith.addf %136, %138 : vector<8x128xf32>
    %c1_49 = arith.constant 1 : index
    %c0_50 = arith.constant 0 : index
    %c0_51 = arith.constant 0 : index
    %140 = vector.load %arg13[%c1_49, %c0_50, %c0_51] : memref<8x8x128xf32, #tpu.memory_space<vmem>>, vector<1x8x128xf32>
    %141 = vector.shape_cast %140 : vector<1x8x128xf32> to vector<8x128xf32>
    %142 = vector.shape_cast %139 : vector<8x128xf32> to vector<1x8x128xf32>
    tpu.vector_store %arg13[%c1_49, %c0_50, %c0_51], %142 {strides = array<i32>} : memref<8x8x128xf32, #tpu.memory_space<vmem>>, vector<1x8x128xf32>,
    %cst_52 = arith.constant dense<0.000000e+00> : vector<8x384xf32>
    %143 = tpu.matmul %111, %0, %cst_52 {dimension_numbers = #tpu.dot_dimension_numbers<[1], [0], [0], [1], [0, 0, 1, 1], [], []>} : vector<8x128xf32>, vector<128x384xf32>, vector<8x384xf32> -> vector<8x384xf32>
    %c2 = arith.constant 2 : index
    %c0_53 = arith.constant 0 : index
    %c0_54 = arith.constant 0 : index
    %144 = vector.load %arg14[%c2, %c0_53, %c0_54] : memref<8x8x384xf32, #tpu.memory_space<vmem>>, vector<1x8x384xf32>
    %145 = vector.shape_cast %144 : vector<1x8x384xf32> to vector<8x384xf32>
    %146 = vector.extract_strided_slice %145 {offsets = [0, 0], sizes = [8, 128], strides = [1, 1]} : vector<8x384xf32> to vector<8x128xf32>
    %147 = vector.extract_strided_slice %143 {offsets = [0, 0], sizes = [8, 128], strides = [1, 1]} : vector<8x384xf32> to vector<8x128xf32>
    %148 = arith.addf %146, %147 : vector<8x128xf32>
    %149 = arith.negf %148 : vector<8x128xf32>
    %150 = math.exp %149 : vector<8x128xf32>
    %cst_55 = arith.constant 1.000000e+00 : f32
    %151 = vector.broadcast %cst_55 : f32 to vector<8x128xf32>
    %152 = arith.addf %151, %150 : vector<8x128xf32>
    %153 = arith.divf %151, %152 : vector<8x128xf32>
    %154 = vector.extract_strided_slice %145 {offsets = [0, 128], sizes = [8, 128], strides = [1, 1]} : vector<8x384xf32> to vector<8x128xf32>
    %155 = vector.extract_strided_slice %143 {offsets = [0, 128], sizes = [8, 128], strides = [1, 1]} : vector<8x384xf32> to vector<8x128xf32>
    %156 = arith.addf %154, %155 : vector<8x128xf32>
    %157 = arith.negf %156 : vector<8x128xf32>
    %158 = math.exp %157 : vector<8x128xf32>
    %cst_56 = arith.constant 1.000000e+00 : f32
    %159 = vector.broadcast %cst_56 : f32 to vector<8x128xf32>
    %160 = arith.addf %159, %158 : vector<8x128xf32>
    %161 = arith.divf %159, %160 : vector<8x128xf32>
    %162 = vector.extract_strided_slice %145 {offsets = [0, 256], sizes = [8, 128], strides = [1, 1]} : vector<8x384xf32> to vector<8x128xf32>
    %163 = vector.extract_strided_slice %143 {offsets = [0, 256], sizes = [8, 128], strides = [1, 1]} : vector<8x384xf32> to vector<8x128xf32>
    %164 = arith.addf %163, %8 : vector<8x128xf32>
    %165 = arith.mulf %153, %164 : vector<8x128xf32>
    %166 = arith.addf %162, %165 : vector<8x128xf32>
    %167 = math.tanh %166 : vector<8x128xf32>
    %168 = arith.subf %111, %167 : vector<8x128xf32>
    %169 = arith.mulf %161, %168 : vector<8x128xf32>
    %170 = arith.addf %167, %169 : vector<8x128xf32>
    %cst_57 = arith.constant dense<0.000000e+00> : vector<8x384xf32>
    %171 = tpu.matmul %170, %2, %cst_57 {dimension_numbers = #tpu.dot_dimension_numbers<[1], [0], [0], [1], [0, 0, 1, 1], [], []>} : vector<8x128xf32>, vector<128x384xf32>, vector<8x384xf32> -> vector<8x384xf32>
    %172 = arith.addf %171, %5 : vector<8x384xf32>
    %cst_58 = arith.constant dense<0.000000e+00> : vector<8x384xf32>
    %173 = tpu.matmul %139, %1, %cst_58 {dimension_numbers = #tpu.dot_dimension_numbers<[1], [0], [0], [1], [0, 0, 1, 1], [], []>} : vector<8x128xf32>, vector<128x384xf32>, vector<8x384xf32> -> vector<8x384xf32>
    %174 = vector.extract_strided_slice %172 {offsets = [0, 0], sizes = [8, 128], strides = [1, 1]} : vector<8x384xf32> to vector<8x128xf32>
    %175 = vector.extract_strided_slice %173 {offsets = [0, 0], sizes = [8, 128], strides = [1, 1]} : vector<8x384xf32> to vector<8x128xf32>
    %176 = arith.addf %174, %175 : vector<8x128xf32>
    %177 = arith.negf %176 : vector<8x128xf32>
    %178 = math.exp %177 : vector<8x128xf32>
    %cst_59 = arith.constant 1.000000e+00 : f32
    %179 = vector.broadcast %cst_59 : f32 to vector<8x128xf32>
    %180 = arith.addf %179, %178 : vector<8x128xf32>
    %181 = arith.divf %179, %180 : vector<8x128xf32>
    %182 = vector.extract_strided_slice %172 {offsets = [0, 128], sizes = [8, 128], strides = [1, 1]} : vector<8x384xf32> to vector<8x128xf32>
    %183 = vector.extract_strided_slice %173 {offsets = [0, 128], sizes = [8, 128], strides = [1, 1]} : vector<8x384xf32> to vector<8x128xf32>
    %184 = arith.addf %182, %183 : vector<8x128xf32>
    %185 = arith.negf %184 : vector<8x128xf32>
    %186 = math.exp %185 : vector<8x128xf32>
    %cst_60 = arith.constant 1.000000e+00 : f32
    %187 = vector.broadcast %cst_60 : f32 to vector<8x128xf32>
    %188 = arith.addf %187, %186 : vector<8x128xf32>
    %189 = arith.divf %187, %188 : vector<8x128xf32>
    %190 = vector.extract_strided_slice %172 {offsets = [0, 256], sizes = [8, 128], strides = [1, 1]} : vector<8x384xf32> to vector<8x128xf32>
    %191 = vector.extract_strided_slice %173 {offsets = [0, 256], sizes = [8, 128], strides = [1, 1]} : vector<8x384xf32> to vector<8x128xf32>
    %192 = arith.addf %191, %11 : vector<8x128xf32>
    %193 = arith.mulf %181, %192 : vector<8x128xf32>
    %194 = arith.addf %190, %193 : vector<8x128xf32>
    %195 = math.tanh %194 : vector<8x128xf32>
    %196 = arith.subf %139, %195 : vector<8x128xf32>
    %197 = arith.mulf %189, %196 : vector<8x128xf32>
    %198 = arith.addf %195, %197 : vector<8x128xf32>
    %c2_61 = arith.constant 2 : index
    %c0_62 = arith.constant 0 : index
    %c0_63 = arith.constant 0 : index
    %199 = vector.load %arg13[%c2_61, %c0_62, %c0_63] : memref<8x8x128xf32, #tpu.memory_space<vmem>>, vector<1x8x128xf32>
    %200 = vector.shape_cast %199 : vector<1x8x128xf32> to vector<8x128xf32>
    %201 = vector.shape_cast %198 : vector<8x128xf32> to vector<1x8x128xf32>
    tpu.vector_store %arg13[%c2_61, %c0_62, %c0_63], %201 {strides = array<i32>} : memref<8x8x128xf32, #tpu.memory_space<vmem>>, vector<1x8x128xf32>,
    %cst_64 = arith.constant dense<0.000000e+00> : vector<8x384xf32>
    %202 = tpu.matmul %170, %0, %cst_64 {dimension_numbers = #tpu.dot_dimension_numbers<[1], [0], [0], [1], [0, 0, 1, 1], [], []>} : vector<8x128xf32>, vector<128x384xf32>, vector<8x384xf32> -> vector<8x384xf32>
    %c3 = arith.constant 3 : index
    %c0_65 = arith.constant 0 : index
    %c0_66 = arith.constant 0 : index
    %203 = vector.load %arg14[%c3, %c0_65, %c0_66] : memref<8x8x384xf32, #tpu.memory_space<vmem>>, vector<1x8x384xf32>
    %204 = vector.shape_cast %203 : vector<1x8x384xf32> to vector<8x384xf32>
    %205 = vector.extract_strided_slice %204 {offsets = [0, 0], sizes = [8, 128], strides = [1, 1]} : vector<8x384xf32> to vector<8x128xf32>
    %206 = vector.extract_strided_slice %202 {offsets = [0, 0], sizes = [8, 128], strides = [1, 1]} : vector<8x384xf32> to vector<8x128xf32>
    %207 = arith.addf %205, %206 : vector<8x128xf32>
    %208 = arith.negf %207 : vector<8x128xf32>
    %209 = math.exp %208 : vector<8x128xf32>
    %cst_67 = arith.constant 1.000000e+00 : f32
    %210 = vector.broadcast %cst_67 : f32 to vector<8x128xf32>
    %211 = arith.addf %210, %209 : vector<8x128xf32>
    %212 = arith.divf %210, %211 : vector<8x128xf32>
    %213 = vector.extract_strided_slice %204 {offsets = [0, 128], sizes = [8, 128], strides = [1, 1]} : vector<8x384xf32> to vector<8x128xf32>
    %214 = vector.extract_strided_slice %202 {offsets = [0, 128], sizes = [8, 128], strides = [1, 1]} : vector<8x384xf32> to vector<8x128xf32>
    %215 = arith.addf %213, %214 : vector<8x128xf32>
    %216 = arith.negf %215 : vector<8x128xf32>
    %217 = math.exp %216 : vector<8x128xf32>
    %cst_68 = arith.constant 1.000000e+00 : f32
    %218 = vector.broadcast %cst_68 : f32 to vector<8x128xf32>
    %219 = arith.addf %218, %217 : vector<8x128xf32>
    %220 = arith.divf %218, %219 : vector<8x128xf32>
    %221 = vector.extract_strided_slice %204 {offsets = [0, 256], sizes = [8, 128], strides = [1, 1]} : vector<8x384xf32> to vector<8x128xf32>
    %222 = vector.extract_strided_slice %202 {offsets = [0, 256], sizes = [8, 128], strides = [1, 1]} : vector<8x384xf32> to vector<8x128xf32>
    %223 = arith.addf %222, %8 : vector<8x128xf32>
    %224 = arith.mulf %212, %223 : vector<8x128xf32>
    %225 = arith.addf %221, %224 : vector<8x128xf32>
    %226 = math.tanh %225 : vector<8x128xf32>
    %227 = arith.subf %170, %226 : vector<8x128xf32>
    %228 = arith.mulf %220, %227 : vector<8x128xf32>
    %229 = arith.addf %226, %228 : vector<8x128xf32>
    %cst_69 = arith.constant dense<0.000000e+00> : vector<8x384xf32>
    %230 = tpu.matmul %229, %2, %cst_69 {dimension_numbers = #tpu.dot_dimension_numbers<[1], [0], [0], [1], [0, 0, 1, 1], [], []>} : vector<8x128xf32>, vector<128x384xf32>, vector<8x384xf32> -> vector<8x384xf32>
    %231 = arith.addf %230, %5 : vector<8x384xf32>
    %cst_70 = arith.constant dense<0.000000e+00> : vector<8x384xf32>
    %232 = tpu.matmul %198, %1, %cst_70 {dimension_numbers = #tpu.dot_dimension_numbers<[1], [0], [0], [1], [0, 0, 1, 1], [], []>} : vector<8x128xf32>, vector<128x384xf32>, vector<8x384xf32> -> vector<8x384xf32>
    %233 = vector.extract_strided_slice %231 {offsets = [0, 0], sizes = [8, 128], strides = [1, 1]} : vector<8x384xf32> to vector<8x128xf32>
    %234 = vector.extract_strided_slice %232 {offsets = [0, 0], sizes = [8, 128], strides = [1, 1]} : vector<8x384xf32> to vector<8x128xf32>
    %235 = arith.addf %233, %234 : vector<8x128xf32>
    %236 = arith.negf %235 : vector<8x128xf32>
    %237 = math.exp %236 : vector<8x128xf32>
    %cst_71 = arith.constant 1.000000e+00 : f32
    %238 = vector.broadcast %cst_71 : f32 to vector<8x128xf32>
    %239 = arith.addf %238, %237 : vector<8x128xf32>
    %240 = arith.divf %238, %239 : vector<8x128xf32>
    %241 = vector.extract_strided_slice %231 {offsets = [0, 128], sizes = [8, 128], strides = [1, 1]} : vector<8x384xf32> to vector<8x128xf32>
    %242 = vector.extract_strided_slice %232 {offsets = [0, 128], sizes = [8, 128], strides = [1, 1]} : vector<8x384xf32> to vector<8x128xf32>
    %243 = arith.addf %241, %242 : vector<8x128xf32>
    %244 = arith.negf %243 : vector<8x128xf32>
    %245 = math.exp %244 : vector<8x128xf32>
    %cst_72 = arith.constant 1.000000e+00 : f32
    %246 = vector.broadcast %cst_72 : f32 to vector<8x128xf32>
    %247 = arith.addf %246, %245 : vector<8x128xf32>
    %248 = arith.divf %246, %247 : vector<8x128xf32>
    %249 = vector.extract_strided_slice %231 {offsets = [0, 256], sizes = [8, 128], strides = [1, 1]} : vector<8x384xf32> to vector<8x128xf32>
    %250 = vector.extract_strided_slice %232 {offsets = [0, 256], sizes = [8, 128], strides = [1, 1]} : vector<8x384xf32> to vector<8x128xf32>
    %251 = arith.addf %250, %11 : vector<8x128xf32>
    %252 = arith.mulf %240, %251 : vector<8x128xf32>
    %253 = arith.addf %249, %252 : vector<8x128xf32>
    %254 = math.tanh %253 : vector<8x128xf32>
    %255 = arith.subf %198, %254 : vector<8x128xf32>
    %256 = arith.mulf %248, %255 : vector<8x128xf32>
    %257 = arith.addf %254, %256 : vector<8x128xf32>
    %c3_73 = arith.constant 3 : index
    %c0_74 = arith.constant 0 : index
    %c0_75 = arith.constant 0 : index
    %258 = vector.load %arg13[%c3_73, %c0_74, %c0_75] : memref<8x8x128xf32, #tpu.memory_space<vmem>>, vector<1x8x128xf32>
    %259 = vector.shape_cast %258 : vector<1x8x128xf32> to vector<8x128xf32>
    %260 = vector.shape_cast %257 : vector<8x128xf32> to vector<1x8x128xf32>
    tpu.vector_store %arg13[%c3_73, %c0_74, %c0_75], %260 {strides = array<i32>} : memref<8x8x128xf32, #tpu.memory_space<vmem>>, vector<1x8x128xf32>,
    %cst_76 = arith.constant dense<0.000000e+00> : vector<8x384xf32>
    %261 = tpu.matmul %229, %0, %cst_76 {dimension_numbers = #tpu.dot_dimension_numbers<[1], [0], [0], [1], [0, 0, 1, 1], [], []>} : vector<8x128xf32>, vector<128x384xf32>, vector<8x384xf32> -> vector<8x384xf32>
    %c4 = arith.constant 4 : index
    %c0_77 = arith.constant 0 : index
    %c0_78 = arith.constant 0 : index
    %262 = vector.load %arg14[%c4, %c0_77, %c0_78] : memref<8x8x384xf32, #tpu.memory_space<vmem>>, vector<1x8x384xf32>
    %263 = vector.shape_cast %262 : vector<1x8x384xf32> to vector<8x384xf32>
    %264 = vector.extract_strided_slice %263 {offsets = [0, 0], sizes = [8, 128], strides = [1, 1]} : vector<8x384xf32> to vector<8x128xf32>
    %265 = vector.extract_strided_slice %261 {offsets = [0, 0], sizes = [8, 128], strides = [1, 1]} : vector<8x384xf32> to vector<8x128xf32>
    %266 = arith.addf %264, %265 : vector<8x128xf32>
    %267 = arith.negf %266 : vector<8x128xf32>
    %268 = math.exp %267 : vector<8x128xf32>
    %cst_79 = arith.constant 1.000000e+00 : f32
    %269 = vector.broadcast %cst_79 : f32 to vector<8x128xf32>
    %270 = arith.addf %269, %268 : vector<8x128xf32>
    %271 = arith.divf %269, %270 : vector<8x128xf32>
    %272 = vector.extract_strided_slice %263 {offsets = [0, 128], sizes = [8, 128], strides = [1, 1]} : vector<8x384xf32> to vector<8x128xf32>
    %273 = vector.extract_strided_slice %261 {offsets = [0, 128], sizes = [8, 128], strides = [1, 1]} : vector<8x384xf32> to vector<8x128xf32>
    %274 = arith.addf %272, %273 : vector<8x128xf32>
    %275 = arith.negf %274 : vector<8x128xf32>
    %276 = math.exp %275 : vector<8x128xf32>
    %cst_80 = arith.constant 1.000000e+00 : f32
    %277 = vector.broadcast %cst_80 : f32 to vector<8x128xf32>
    %278 = arith.addf %277, %276 : vector<8x128xf32>
    %279 = arith.divf %277, %278 : vector<8x128xf32>
    %280 = vector.extract_strided_slice %263 {offsets = [0, 256], sizes = [8, 128], strides = [1, 1]} : vector<8x384xf32> to vector<8x128xf32>
    %281 = vector.extract_strided_slice %261 {offsets = [0, 256], sizes = [8, 128], strides = [1, 1]} : vector<8x384xf32> to vector<8x128xf32>
    %282 = arith.addf %281, %8 : vector<8x128xf32>
    %283 = arith.mulf %271, %282 : vector<8x128xf32>
    %284 = arith.addf %280, %283 : vector<8x128xf32>
    %285 = math.tanh %284 : vector<8x128xf32>
    %286 = arith.subf %229, %285 : vector<8x128xf32>
    %287 = arith.mulf %279, %286 : vector<8x128xf32>
    %288 = arith.addf %285, %287 : vector<8x128xf32>
    %cst_81 = arith.constant dense<0.000000e+00> : vector<8x384xf32>
    %289 = tpu.matmul %288, %2, %cst_81 {dimension_numbers = #tpu.dot_dimension_numbers<[1], [0], [0], [1], [0, 0, 1, 1], [], []>} : vector<8x128xf32>, vector<128x384xf32>, vector<8x384xf32> -> vector<8x384xf32>
    %290 = arith.addf %289, %5 : vector<8x384xf32>
    %cst_82 = arith.constant dense<0.000000e+00> : vector<8x384xf32>
    %291 = tpu.matmul %257, %1, %cst_82 {dimension_numbers = #tpu.dot_dimension_numbers<[1], [0], [0], [1], [0, 0, 1, 1], [], []>} : vector<8x128xf32>, vector<128x384xf32>, vector<8x384xf32> -> vector<8x384xf32>
    %292 = vector.extract_strided_slice %290 {offsets = [0, 0], sizes = [8, 128], strides = [1, 1]} : vector<8x384xf32> to vector<8x128xf32>
    %293 = vector.extract_strided_slice %291 {offsets = [0, 0], sizes = [8, 128], strides = [1, 1]} : vector<8x384xf32> to vector<8x128xf32>
    %294 = arith.addf %292, %293 : vector<8x128xf32>
    %295 = arith.negf %294 : vector<8x128xf32>
    %296 = math.exp %295 : vector<8x128xf32>
    %cst_83 = arith.constant 1.000000e+00 : f32
    %297 = vector.broadcast %cst_83 : f32 to vector<8x128xf32>
    %298 = arith.addf %297, %296 : vector<8x128xf32>
    %299 = arith.divf %297, %298 : vector<8x128xf32>
    %300 = vector.extract_strided_slice %290 {offsets = [0, 128], sizes = [8, 128], strides = [1, 1]} : vector<8x384xf32> to vector<8x128xf32>
    %301 = vector.extract_strided_slice %291 {offsets = [0, 128], sizes = [8, 128], strides = [1, 1]} : vector<8x384xf32> to vector<8x128xf32>
    %302 = arith.addf %300, %301 : vector<8x128xf32>
    %303 = arith.negf %302 : vector<8x128xf32>
    %304 = math.exp %303 : vector<8x128xf32>
    %cst_84 = arith.constant 1.000000e+00 : f32
    %305 = vector.broadcast %cst_84 : f32 to vector<8x128xf32>
    %306 = arith.addf %305, %304 : vector<8x128xf32>
    %307 = arith.divf %305, %306 : vector<8x128xf32>
    %308 = vector.extract_strided_slice %290 {offsets = [0, 256], sizes = [8, 128], strides = [1, 1]} : vector<8x384xf32> to vector<8x128xf32>
    %309 = vector.extract_strided_slice %291 {offsets = [0, 256], sizes = [8, 128], strides = [1, 1]} : vector<8x384xf32> to vector<8x128xf32>
    %310 = arith.addf %309, %11 : vector<8x128xf32>
    %311 = arith.mulf %299, %310 : vector<8x128xf32>
    %312 = arith.addf %308, %311 : vector<8x128xf32>
    %313 = math.tanh %312 : vector<8x128xf32>
    %314 = arith.subf %257, %313 : vector<8x128xf32>
    %315 = arith.mulf %307, %314 : vector<8x128xf32>
    %316 = arith.addf %313, %315 : vector<8x128xf32>
    %c4_85 = arith.constant 4 : index
    %c0_86 = arith.constant 0 : index
    %c0_87 = arith.constant 0 : index
    %317 = vector.load %arg13[%c4_85, %c0_86, %c0_87] : memref<8x8x128xf32, #tpu.memory_space<vmem>>, vector<1x8x128xf32>
    %318 = vector.shape_cast %317 : vector<1x8x128xf32> to vector<8x128xf32>
    %319 = vector.shape_cast %316 : vector<8x128xf32> to vector<1x8x128xf32>
    tpu.vector_store %arg13[%c4_85, %c0_86, %c0_87], %319 {strides = array<i32>} : memref<8x8x128xf32, #tpu.memory_space<vmem>>, vector<1x8x128xf32>,
    %cst_88 = arith.constant dense<0.000000e+00> : vector<8x384xf32>
    %320 = tpu.matmul %288, %0, %cst_88 {dimension_numbers = #tpu.dot_dimension_numbers<[1], [0], [0], [1], [0, 0, 1, 1], [], []>} : vector<8x128xf32>, vector<128x384xf32>, vector<8x384xf32> -> vector<8x384xf32>
    %c5 = arith.constant 5 : index
    %c0_89 = arith.constant 0 : index
    %c0_90 = arith.constant 0 : index
    %321 = vector.load %arg14[%c5, %c0_89, %c0_90] : memref<8x8x384xf32, #tpu.memory_space<vmem>>, vector<1x8x384xf32>
    %322 = vector.shape_cast %321 : vector<1x8x384xf32> to vector<8x384xf32>
    %323 = vector.extract_strided_slice %322 {offsets = [0, 0], sizes = [8, 128], strides = [1, 1]} : vector<8x384xf32> to vector<8x128xf32>
    %324 = vector.extract_strided_slice %320 {offsets = [0, 0], sizes = [8, 128], strides = [1, 1]} : vector<8x384xf32> to vector<8x128xf32>
    %325 = arith.addf %323, %324 : vector<8x128xf32>
    %326 = arith.negf %325 : vector<8x128xf32>
    %327 = math.exp %326 : vector<8x128xf32>
    %cst_91 = arith.constant 1.000000e+00 : f32
    %328 = vector.broadcast %cst_91 : f32 to vector<8x128xf32>
    %329 = arith.addf %328, %327 : vector<8x128xf32>
    %330 = arith.divf %328, %329 : vector<8x128xf32>
    %331 = vector.extract_strided_slice %322 {offsets = [0, 128], sizes = [8, 128], strides = [1, 1]} : vector<8x384xf32> to vector<8x128xf32>
    %332 = vector.extract_strided_slice %320 {offsets = [0, 128], sizes = [8, 128], strides = [1, 1]} : vector<8x384xf32> to vector<8x128xf32>
    %333 = arith.addf %331, %332 : vector<8x128xf32>
    %334 = arith.negf %333 : vector<8x128xf32>
    %335 = math.exp %334 : vector<8x128xf32>
    %cst_92 = arith.constant 1.000000e+00 : f32
    %336 = vector.broadcast %cst_92 : f32 to vector<8x128xf32>
    %337 = arith.addf %336, %335 : vector<8x128xf32>
    %338 = arith.divf %336, %337 : vector<8x128xf32>
    %339 = vector.extract_strided_slice %322 {offsets = [0, 256], sizes = [8, 128], strides = [1, 1]} : vector<8x384xf32> to vector<8x128xf32>
    %340 = vector.extract_strided_slice %320 {offsets = [0, 256], sizes = [8, 128], strides = [1, 1]} : vector<8x384xf32> to vector<8x128xf32>
    %341 = arith.addf %340, %8 : vector<8x128xf32>
    %342 = arith.mulf %330, %341 : vector<8x128xf32>
    %343 = arith.addf %339, %342 : vector<8x128xf32>
    %344 = math.tanh %343 : vector<8x128xf32>
    %345 = arith.subf %288, %344 : vector<8x128xf32>
    %346 = arith.mulf %338, %345 : vector<8x128xf32>
    %347 = arith.addf %344, %346 : vector<8x128xf32>
    %cst_93 = arith.constant dense<0.000000e+00> : vector<8x384xf32>
    %348 = tpu.matmul %347, %2, %cst_93 {dimension_numbers = #tpu.dot_dimension_numbers<[1], [0], [0], [1], [0, 0, 1, 1], [], []>} : vector<8x128xf32>, vector<128x384xf32>, vector<8x384xf32> -> vector<8x384xf32>
    %349 = arith.addf %348, %5 : vector<8x384xf32>
    %cst_94 = arith.constant dense<0.000000e+00> : vector<8x384xf32>
    %350 = tpu.matmul %316, %1, %cst_94 {dimension_numbers = #tpu.dot_dimension_numbers<[1], [0], [0], [1], [0, 0, 1, 1], [], []>} : vector<8x128xf32>, vector<128x384xf32>, vector<8x384xf32> -> vector<8x384xf32>
    %351 = vector.extract_strided_slice %349 {offsets = [0, 0], sizes = [8, 128], strides = [1, 1]} : vector<8x384xf32> to vector<8x128xf32>
    %352 = vector.extract_strided_slice %350 {offsets = [0, 0], sizes = [8, 128], strides = [1, 1]} : vector<8x384xf32> to vector<8x128xf32>
    %353 = arith.addf %351, %352 : vector<8x128xf32>
    %354 = arith.negf %353 : vector<8x128xf32>
    %355 = math.exp %354 : vector<8x128xf32>
    %cst_95 = arith.constant 1.000000e+00 : f32
    %356 = vector.broadcast %cst_95 : f32 to vector<8x128xf32>
    %357 = arith.addf %356, %355 : vector<8x128xf32>
    %358 = arith.divf %356, %357 : vector<8x128xf32>
    %359 = vector.extract_strided_slice %349 {offsets = [0, 128], sizes = [8, 128], strides = [1, 1]} : vector<8x384xf32> to vector<8x128xf32>
    %360 = vector.extract_strided_slice %350 {offsets = [0, 128], sizes = [8, 128], strides = [1, 1]} : vector<8x384xf32> to vector<8x128xf32>
    %361 = arith.addf %359, %360 : vector<8x128xf32>
    %362 = arith.negf %361 : vector<8x128xf32>
    %363 = math.exp %362 : vector<8x128xf32>
    %cst_96 = arith.constant 1.000000e+00 : f32
    %364 = vector.broadcast %cst_96 : f32 to vector<8x128xf32>
    %365 = arith.addf %364, %363 : vector<8x128xf32>
    %366 = arith.divf %364, %365 : vector<8x128xf32>
    %367 = vector.extract_strided_slice %349 {offsets = [0, 256], sizes = [8, 128], strides = [1, 1]} : vector<8x384xf32> to vector<8x128xf32>
    %368 = vector.extract_strided_slice %350 {offsets = [0, 256], sizes = [8, 128], strides = [1, 1]} : vector<8x384xf32> to vector<8x128xf32>
    %369 = arith.addf %368, %11 : vector<8x128xf32>
    %370 = arith.mulf %358, %369 : vector<8x128xf32>
    %371 = arith.addf %367, %370 : vector<8x128xf32>
    %372 = math.tanh %371 : vector<8x128xf32>
    %373 = arith.subf %316, %372 : vector<8x128xf32>
    %374 = arith.mulf %366, %373 : vector<8x128xf32>
    %375 = arith.addf %372, %374 : vector<8x128xf32>
    %c5_97 = arith.constant 5 : index
    %c0_98 = arith.constant 0 : index
    %c0_99 = arith.constant 0 : index
    %376 = vector.load %arg13[%c5_97, %c0_98, %c0_99] : memref<8x8x128xf32, #tpu.memory_space<vmem>>, vector<1x8x128xf32>
    %377 = vector.shape_cast %376 : vector<1x8x128xf32> to vector<8x128xf32>
    %378 = vector.shape_cast %375 : vector<8x128xf32> to vector<1x8x128xf32>
    tpu.vector_store %arg13[%c5_97, %c0_98, %c0_99], %378 {strides = array<i32>} : memref<8x8x128xf32, #tpu.memory_space<vmem>>, vector<1x8x128xf32>,
    %cst_100 = arith.constant dense<0.000000e+00> : vector<8x384xf32>
    %379 = tpu.matmul %347, %0, %cst_100 {dimension_numbers = #tpu.dot_dimension_numbers<[1], [0], [0], [1], [0, 0, 1, 1], [], []>} : vector<8x128xf32>, vector<128x384xf32>, vector<8x384xf32> -> vector<8x384xf32>
    %c6 = arith.constant 6 : index
    %c0_101 = arith.constant 0 : index
    %c0_102 = arith.constant 0 : index
    %380 = vector.load %arg14[%c6, %c0_101, %c0_102] : memref<8x8x384xf32, #tpu.memory_space<vmem>>, vector<1x8x384xf32>
    %381 = vector.shape_cast %380 : vector<1x8x384xf32> to vector<8x384xf32>
    %382 = vector.extract_strided_slice %381 {offsets = [0, 0], sizes = [8, 128], strides = [1, 1]} : vector<8x384xf32> to vector<8x128xf32>
    %383 = vector.extract_strided_slice %379 {offsets = [0, 0], sizes = [8, 128], strides = [1, 1]} : vector<8x384xf32> to vector<8x128xf32>
    %384 = arith.addf %382, %383 : vector<8x128xf32>
    %385 = arith.negf %384 : vector<8x128xf32>
    %386 = math.exp %385 : vector<8x128xf32>
    %cst_103 = arith.constant 1.000000e+00 : f32
    %387 = vector.broadcast %cst_103 : f32 to vector<8x128xf32>
    %388 = arith.addf %387, %386 : vector<8x128xf32>
    %389 = arith.divf %387, %388 : vector<8x128xf32>
    %390 = vector.extract_strided_slice %381 {offsets = [0, 128], sizes = [8, 128], strides = [1, 1]} : vector<8x384xf32> to vector<8x128xf32>
    %391 = vector.extract_strided_slice %379 {offsets = [0, 128], sizes = [8, 128], strides = [1, 1]} : vector<8x384xf32> to vector<8x128xf32>
    %392 = arith.addf %390, %391 : vector<8x128xf32>
    %393 = arith.negf %392 : vector<8x128xf32>
    %394 = math.exp %393 : vector<8x128xf32>
    %cst_104 = arith.constant 1.000000e+00 : f32
    %395 = vector.broadcast %cst_104 : f32 to vector<8x128xf32>
    %396 = arith.addf %395, %394 : vector<8x128xf32>
    %397 = arith.divf %395, %396 : vector<8x128xf32>
    %398 = vector.extract_strided_slice %381 {offsets = [0, 256], sizes = [8, 128], strides = [1, 1]} : vector<8x384xf32> to vector<8x128xf32>
    %399 = vector.extract_strided_slice %379 {offsets = [0, 256], sizes = [8, 128], strides = [1, 1]} : vector<8x384xf32> to vector<8x128xf32>
    %400 = arith.addf %399, %8 : vector<8x128xf32>
    %401 = arith.mulf %389, %400 : vector<8x128xf32>
    %402 = arith.addf %398, %401 : vector<8x128xf32>
    %403 = math.tanh %402 : vector<8x128xf32>
    %404 = arith.subf %347, %403 : vector<8x128xf32>
    %405 = arith.mulf %397, %404 : vector<8x128xf32>
    %406 = arith.addf %403, %405 : vector<8x128xf32>
    %cst_105 = arith.constant dense<0.000000e+00> : vector<8x384xf32>
    %407 = tpu.matmul %406, %2, %cst_105 {dimension_numbers = #tpu.dot_dimension_numbers<[1], [0], [0], [1], [0, 0, 1, 1], [], []>} : vector<8x128xf32>, vector<128x384xf32>, vector<8x384xf32> -> vector<8x384xf32>
    %408 = arith.addf %407, %5 : vector<8x384xf32>
    %cst_106 = arith.constant dense<0.000000e+00> : vector<8x384xf32>
    %409 = tpu.matmul %375, %1, %cst_106 {dimension_numbers = #tpu.dot_dimension_numbers<[1], [0], [0], [1], [0, 0, 1, 1], [], []>} : vector<8x128xf32>, vector<128x384xf32>, vector<8x384xf32> -> vector<8x384xf32>
    %410 = vector.extract_strided_slice %408 {offsets = [0, 0], sizes = [8, 128], strides = [1, 1]} : vector<8x384xf32> to vector<8x128xf32>
    %411 = vector.extract_strided_slice %409 {offsets = [0, 0], sizes = [8, 128], strides = [1, 1]} : vector<8x384xf32> to vector<8x128xf32>
    %412 = arith.addf %410, %411 : vector<8x128xf32>
    %413 = arith.negf %412 : vector<8x128xf32>
    %414 = math.exp %413 : vector<8x128xf32>
    %cst_107 = arith.constant 1.000000e+00 : f32
    %415 = vector.broadcast %cst_107 : f32 to vector<8x128xf32>
    %416 = arith.addf %415, %414 : vector<8x128xf32>
    %417 = arith.divf %415, %416 : vector<8x128xf32>
    %418 = vector.extract_strided_slice %408 {offsets = [0, 128], sizes = [8, 128], strides = [1, 1]} : vector<8x384xf32> to vector<8x128xf32>
    %419 = vector.extract_strided_slice %409 {offsets = [0, 128], sizes = [8, 128], strides = [1, 1]} : vector<8x384xf32> to vector<8x128xf32>
    %420 = arith.addf %418, %419 : vector<8x128xf32>
    %421 = arith.negf %420 : vector<8x128xf32>
    %422 = math.exp %421 : vector<8x128xf32>
    %cst_108 = arith.constant 1.000000e+00 : f32
    %423 = vector.broadcast %cst_108 : f32 to vector<8x128xf32>
    %424 = arith.addf %423, %422 : vector<8x128xf32>
    %425 = arith.divf %423, %424 : vector<8x128xf32>
    %426 = vector.extract_strided_slice %408 {offsets = [0, 256], sizes = [8, 128], strides = [1, 1]} : vector<8x384xf32> to vector<8x128xf32>
    %427 = vector.extract_strided_slice %409 {offsets = [0, 256], sizes = [8, 128], strides = [1, 1]} : vector<8x384xf32> to vector<8x128xf32>
    %428 = arith.addf %427, %11 : vector<8x128xf32>
    %429 = arith.mulf %417, %428 : vector<8x128xf32>
    %430 = arith.addf %426, %429 : vector<8x128xf32>
    %431 = math.tanh %430 : vector<8x128xf32>
    %432 = arith.subf %375, %431 : vector<8x128xf32>
    %433 = arith.mulf %425, %432 : vector<8x128xf32>
    %434 = arith.addf %431, %433 : vector<8x128xf32>
    %c6_109 = arith.constant 6 : index
    %c0_110 = arith.constant 0 : index
    %c0_111 = arith.constant 0 : index
    %435 = vector.load %arg13[%c6_109, %c0_110, %c0_111] : memref<8x8x128xf32, #tpu.memory_space<vmem>>, vector<1x8x128xf32>
    %436 = vector.shape_cast %435 : vector<1x8x128xf32> to vector<8x128xf32>
    %437 = vector.shape_cast %434 : vector<8x128xf32> to vector<1x8x128xf32>
    tpu.vector_store %arg13[%c6_109, %c0_110, %c0_111], %437 {strides = array<i32>} : memref<8x8x128xf32, #tpu.memory_space<vmem>>, vector<1x8x128xf32>,
    %cst_112 = arith.constant dense<0.000000e+00> : vector<8x384xf32>
    %438 = tpu.matmul %406, %0, %cst_112 {dimension_numbers = #tpu.dot_dimension_numbers<[1], [0], [0], [1], [0, 0, 1, 1], [], []>} : vector<8x128xf32>, vector<128x384xf32>, vector<8x384xf32> -> vector<8x384xf32>
    %c7 = arith.constant 7 : index
    %c0_113 = arith.constant 0 : index
    %c0_114 = arith.constant 0 : index
    %439 = vector.load %arg14[%c7, %c0_113, %c0_114] : memref<8x8x384xf32, #tpu.memory_space<vmem>>, vector<1x8x384xf32>
    %440 = vector.shape_cast %439 : vector<1x8x384xf32> to vector<8x384xf32>
    %441 = vector.extract_strided_slice %440 {offsets = [0, 0], sizes = [8, 128], strides = [1, 1]} : vector<8x384xf32> to vector<8x128xf32>
    %442 = vector.extract_strided_slice %438 {offsets = [0, 0], sizes = [8, 128], strides = [1, 1]} : vector<8x384xf32> to vector<8x128xf32>
    %443 = arith.addf %441, %442 : vector<8x128xf32>
    %444 = arith.negf %443 : vector<8x128xf32>
    %445 = math.exp %444 : vector<8x128xf32>
    %cst_115 = arith.constant 1.000000e+00 : f32
    %446 = vector.broadcast %cst_115 : f32 to vector<8x128xf32>
    %447 = arith.addf %446, %445 : vector<8x128xf32>
    %448 = arith.divf %446, %447 : vector<8x128xf32>
    %449 = vector.extract_strided_slice %440 {offsets = [0, 128], sizes = [8, 128], strides = [1, 1]} : vector<8x384xf32> to vector<8x128xf32>
    %450 = vector.extract_strided_slice %438 {offsets = [0, 128], sizes = [8, 128], strides = [1, 1]} : vector<8x384xf32> to vector<8x128xf32>
    %451 = arith.addf %449, %450 : vector<8x128xf32>
    %452 = arith.negf %451 : vector<8x128xf32>
    %453 = math.exp %452 : vector<8x128xf32>
    %cst_116 = arith.constant 1.000000e+00 : f32
    %454 = vector.broadcast %cst_116 : f32 to vector<8x128xf32>
    %455 = arith.addf %454, %453 : vector<8x128xf32>
    %456 = arith.divf %454, %455 : vector<8x128xf32>
    %457 = vector.extract_strided_slice %440 {offsets = [0, 256], sizes = [8, 128], strides = [1, 1]} : vector<8x384xf32> to vector<8x128xf32>
    %458 = vector.extract_strided_slice %438 {offsets = [0, 256], sizes = [8, 128], strides = [1, 1]} : vector<8x384xf32> to vector<8x128xf32>
    %459 = arith.addf %458, %8 : vector<8x128xf32>
    %460 = arith.mulf %448, %459 : vector<8x128xf32>
    %461 = arith.addf %457, %460 : vector<8x128xf32>
    %462 = math.tanh %461 : vector<8x128xf32>
    %463 = arith.subf %406, %462 : vector<8x128xf32>
    %464 = arith.mulf %456, %463 : vector<8x128xf32>
    %465 = arith.addf %462, %464 : vector<8x128xf32>
    %cst_117 = arith.constant dense<0.000000e+00> : vector<8x384xf32>
    %466 = tpu.matmul %465, %2, %cst_117 {dimension_numbers = #tpu.dot_dimension_numbers<[1], [0], [0], [1], [0, 0, 1, 1], [], []>} : vector<8x128xf32>, vector<128x384xf32>, vector<8x384xf32> -> vector<8x384xf32>
    %467 = arith.addf %466, %5 : vector<8x384xf32>
    %cst_118 = arith.constant dense<0.000000e+00> : vector<8x384xf32>
    %468 = tpu.matmul %434, %1, %cst_118 {dimension_numbers = #tpu.dot_dimension_numbers<[1], [0], [0], [1], [0, 0, 1, 1], [], []>} : vector<8x128xf32>, vector<128x384xf32>, vector<8x384xf32> -> vector<8x384xf32>
    %469 = vector.extract_strided_slice %467 {offsets = [0, 0], sizes = [8, 128], strides = [1, 1]} : vector<8x384xf32> to vector<8x128xf32>
    %470 = vector.extract_strided_slice %468 {offsets = [0, 0], sizes = [8, 128], strides = [1, 1]} : vector<8x384xf32> to vector<8x128xf32>
    %471 = arith.addf %469, %470 : vector<8x128xf32>
    %472 = arith.negf %471 : vector<8x128xf32>
    %473 = math.exp %472 : vector<8x128xf32>
    %cst_119 = arith.constant 1.000000e+00 : f32
    %474 = vector.broadcast %cst_119 : f32 to vector<8x128xf32>
    %475 = arith.addf %474, %473 : vector<8x128xf32>
    %476 = arith.divf %474, %475 : vector<8x128xf32>
    %477 = vector.extract_strided_slice %467 {offsets = [0, 128], sizes = [8, 128], strides = [1, 1]} : vector<8x384xf32> to vector<8x128xf32>
    %478 = vector.extract_strided_slice %468 {offsets = [0, 128], sizes = [8, 128], strides = [1, 1]} : vector<8x384xf32> to vector<8x128xf32>
    %479 = arith.addf %477, %478 : vector<8x128xf32>
    %480 = arith.negf %479 : vector<8x128xf32>
    %481 = math.exp %480 : vector<8x128xf32>
    %cst_120 = arith.constant 1.000000e+00 : f32
    %482 = vector.broadcast %cst_120 : f32 to vector<8x128xf32>
    %483 = arith.addf %482, %481 : vector<8x128xf32>
    %484 = arith.divf %482, %483 : vector<8x128xf32>
    %485 = vector.extract_strided_slice %467 {offsets = [0, 256], sizes = [8, 128], strides = [1, 1]} : vector<8x384xf32> to vector<8x128xf32>
    %486 = vector.extract_strided_slice %468 {offsets = [0, 256], sizes = [8, 128], strides = [1, 1]} : vector<8x384xf32> to vector<8x128xf32>
    %487 = arith.addf %486, %11 : vector<8x128xf32>
    %488 = arith.mulf %476, %487 : vector<8x128xf32>
    %489 = arith.addf %485, %488 : vector<8x128xf32>
    %490 = math.tanh %489 : vector<8x128xf32>
    %491 = arith.subf %434, %490 : vector<8x128xf32>
    %492 = arith.mulf %484, %491 : vector<8x128xf32>
    %493 = arith.addf %490, %492 : vector<8x128xf32>
    %c7_121 = arith.constant 7 : index
    %c0_122 = arith.constant 0 : index
    %c0_123 = arith.constant 0 : index
    %494 = vector.load %arg13[%c7_121, %c0_122, %c0_123] : memref<8x8x128xf32, #tpu.memory_space<vmem>>, vector<1x8x128xf32>
    %495 = vector.shape_cast %494 : vector<1x8x128xf32> to vector<8x128xf32>
    %496 = vector.shape_cast %493 : vector<8x128xf32> to vector<1x8x128xf32>
    tpu.vector_store %arg13[%c7_121, %c0_122, %c0_123], %496 {strides = array<i32>} : memref<8x8x128xf32, #tpu.memory_space<vmem>>, vector<1x8x128xf32>,
    %c0_124 = arith.constant 0 : index
    %c0_125 = arith.constant 0 : index
    %c0_126 = arith.constant 0 : index
    %497 = vector.load %arg13[%c0_124, %c0_125, %c0_126] : memref<8x8x128xf32, #tpu.memory_space<vmem>>, vector<8x8x128xf32>
    %498 = vector.shape_cast %497 : vector<8x8x128xf32> to vector<64x128xf32>
    %cst_127 = arith.constant 0.000000e+00 : f32
    %499 = vector.broadcast %cst_127 : f32 to vector<64x128xf32>
    %500 = arith.maximumf %498, %499 : vector<64x128xf32>
    %c0_128 = arith.constant 0 : index
    %c0_129 = arith.constant 0 : index
    %501 = vector.load %arg10[%c0_128, %c0_129] : memref<128x128xf32, #tpu.memory_space<vmem>>, vector<128x128xf32>
    %cst_130 = arith.constant dense<0.000000e+00> : vector<64x128xf32>
    %502 = tpu.matmul %500, %501, %cst_130 {dimension_numbers = #tpu.dot_dimension_numbers<[1], [0], [0], [1], [0, 0, 1, 1], [], []>} : vector<64x128xf32>, vector<128x128xf32>, vector<64x128xf32> -> vector<64x128xf32>
    %c0_131 = arith.constant 0 : index
    %c0_132 = arith.constant 0 : index
    %503 = vector.load %arg11[%c0_131, %c0_132] : memref<1x128xf32, #tpu.memory_space<vmem>>, vector<1x128xf32>
    %504 = vector.broadcast %503 : vector<1x128xf32> to vector<64x128xf32>
    %505 = arith.addf %502, %504 : vector<64x128xf32>
    %506 = arith.negf %505 : vector<64x128xf32>
    %507 = math.exp %506 : vector<64x128xf32>
    %cst_133 = arith.constant 1.000000e+00 : f32
    %508 = vector.broadcast %cst_133 : f32 to vector<64x128xf32>
    %509 = arith.addf %508, %507 : vector<64x128xf32>
    %510 = arith.divf %508, %509 : vector<64x128xf32>
    %511 = vector.shape_cast %510 : vector<64x128xf32> to vector<8x8x128xf32>
    %c0_134 = arith.constant 0 : index
    %c0_135 = arith.constant 0 : index
    %c0_136 = arith.constant 0 : index
    %512 = vector.load %arg12[%c0_134, %c0_135, %c0_136] : memref<8x8x128xf32, #tpu.memory_space<vmem>>, vector<8x8x128xf32>
    tpu.vector_store %arg12[%c0_134, %c0_135, %c0_136], %511 {strides = array<i32>} : memref<8x8x128xf32, #tpu.memory_space<vmem>>, vector<8x8x128xf32>,
    return
  }
}

</mosaic_0001>

<llo_original>
// kernel: gru_forward.1
$region0: #{gru_forward.1}
  #allocation0 [shape = 'u32[]', space=smem, size = 0x4, offset = 0x4, fixed_abs, tag = 'smem constant byte address 0x4 - core index']
  #allocation1 [shape = 'u32[144,128]{1,0:T(1,128)}', space=vmem, size = 0x12000, scoped, tag = 'internal scratch']
  #allocation2 [shape = 'f32[8,8,384]{2,1,0:T(8,128)}', space=vmem, size = 0x18000, scoped, tag = 'scratch operand']
  %s0 = inlined_call_operand.vmem [shape: f32[8,8,16], index: 0, kind: input, shape index: {}]
  %s1 = inlined_call_operand.vmem [shape: f32[2,8,128], index: 1, kind: input, shape index: {}]
  %s2 = inlined_call_operand.hbm [shape: f32[16,384], index: 2, kind: input, shape index: {}]
  %s3 = inlined_call_operand.hbm [shape: f32[128,384], index: 3, kind: input, shape index: {}]
  %s4 = inlined_call_operand.vmem [shape: f32[1,384], index: 4, kind: input, shape index: {}]
  %s5 = inlined_call_operand.vmem [shape: f32[1,128], index: 5, kind: input, shape index: {}]
  %s6 = inlined_call_operand.hbm [shape: f32[128,384], index: 6, kind: input, shape index: {}]
  %s7 = inlined_call_operand.hbm [shape: f32[128,384], index: 7, kind: input, shape index: {}]
  %s8 = inlined_call_operand.vmem [shape: f32[1,384], index: 8, kind: input, shape index: {}]
  %s9 = inlined_call_operand.vmem [shape: f32[1,128], index: 9, kind: input, shape index: {}]
  %s10 = inlined_call_operand.vmem [shape: f32[128,128], index: 10, kind: input, shape index: {}]
  %s11 = inlined_call_operand.vmem [shape: f32[1,128], index: 11, kind: input, shape index: {}]
  %s12 = inlined_call_operand.vmem [shape: f32[8,8,128], index: 12, kind: output, shape index: {0}]
  %s13 = inlined_call_operand.vmem [shape: f32[8,8,128], index: 13, kind: output, shape index: {1}]
  %14 = xla_tuple %s12, %s13
  %s15 = sld [smem:[#allocation0]]
  $region82: #{gru_forward.1} parent=0
    _
  %s17 = ssub.s32 1, %s15
  %s18 = scalar_select 0, %s17, %s15
  $region1: #{gru_forward.1} parent=0
    #allocation3 [shape = 'u8[24576]{0}', space=vmem, size = 0x6000, scoped, tag = 'input window, operand 2, single buffered']
    #allocation4 [shape = 's32[1]{0}', space=sflag, size = 0x4, scoped, tag = 'scoped memory for gru_forward.1']
    #allocation5 [shape = 'u8[196608]{0}', space=vmem, size = 0x30000, scoped, tag = 'input window, operand 3, single buffered']
    #allocation6 [shape = 's32[1]{0}', space=sflag, size = 0x4, scoped, tag = 'scoped memory for gru_forward.1']
    #allocation7 [shape = 'u8[196608]{0}', space=vmem, size = 0x30000, scoped, tag = 'input window, operand 6, single buffered']
    #allocation8 [shape = 'u8[196608]{0}', space=vmem, size = 0x30000, scoped, tag = 'input window, operand 7, single buffered']
    #allocation9 [shape = 's32[1]{0}', space=sflag, size = 0x4, scoped, tag = 'scoped memory for gru_forward.1']
    %19 = vsyncpa [#allocation4], 0
    %20 = vsyncpa [#allocation6], 0
    %21 = vsyncpa [#allocation9], 0
    // Predicated region
    $region2: #{gru_forward.1} parent=1 // pred_check
      _
    $region3: #{gru_forward.1} parent=1 // pred_check_branch
      %23 = sbr.rel (0) target = $region5
    $region4: #{gru_forward.1} parent=1 // pred_region
      _
    $region5: #{gru_forward.1} parent=1 // pred_fallthru
      _
    // Predicated region
    $region6: #{gru_forward.1} parent=1 // pred_check
      _
    $region7: #{gru_forward.1} parent=1 // pred_check_branch
      %25 = sbr.rel (0) target = $region9
    $region8: #{gru_forward.1} parent=1 // pred_region
      _
    $region9: #{gru_forward.1} parent=1 // pred_fallthru
      _
    // Predicated region
    $region10: #{gru_forward.1} parent=1 // pred_check
      _
    $region11: #{gru_forward.1} parent=1 // pred_check_branch
      %27 = sbr.rel (0) target = $region13
    $region12: #{gru_forward.1} parent=1 // pred_region
      %s29 = ssub.s32 768, 768
      %30 = vsyncadd [#allocation4], %s29
      %s31 = sshll.u32 [#allocation3], 4
      %s32 = int_to_ptr.vmem [resolvable:$true] %s31
      %37 = dma.hbm_to_vmem [thread:$0]  %s2, 768, %s32, [#allocation4], 384, 384, 24
    $region13: #{gru_forward.1} parent=1 // pred_fallthru
      _
    // Predicated region
    $region14: #{gru_forward.1} parent=1 // pred_check
      _
    $region15: #{gru_forward.1} parent=1 // pred_check_branch
      %39 = sbr.rel (0) target = $region17
    $region16: #{gru_forward.1} parent=1 // pred_region
      %s41 = ssub.s32 6144, 6144
      %42 = vsyncadd [#allocation6], %s41
      %s43 = sshll.u32 [#allocation5], 4
      %s44 = int_to_ptr.vmem [resolvable:$true] %s43
      %49 = dma.hbm_to_vmem [thread:$0]  %s3, 6144, %s44, [#allocation6], 384, 384, 24
    $region17: #{gru_forward.1} parent=1 // pred_fallthru
      _
    // Predicated region
    $region18: #{gru_forward.1} parent=1 // pred_check
      _
    $region19: #{gru_forward.1} parent=1 // pred_check_branch
      %51 = sbr.rel (0) target = $region21
    $region20: #{gru_forward.1} parent=1 // pred_region
      _
    $region21: #{gru_forward.1} parent=1 // pred_fallthru
      _
    // Predicated region
    $region22: #{gru_forward.1} parent=1 // pred_check
      _
    $region23: #{gru_forward.1} parent=1 // pred_check_branch
      %53 = sbr.rel (0) target = $region25
    $region24: #{gru_forward.1} parent=1 // pred_region
      _
    $region25: #{gru_forward.1} parent=1 // pred_fallthru
      _
    // Predicated region
    $region26: #{gru_forward.1} parent=1 // pred_check
      _
    $region27: #{gru_forward.1} parent=1 // pred_check_branch
      %55 = sbr.rel (0) target = $region29
    $region28: #{gru_forward.1} parent=1 // pred_region
      %s57 = ssub.s32 6144, 6144
      %58 = vsyncadd [#allocation6], %s57
      %s59 = sshll.u32 [#allocation7], 4
      %s60 = int_to_ptr.vmem [resolvable:$true] %s59
      %65 = dma.hbm_to_vmem [thread:$0]  %s6, 6144, %s60, [#allocation6], 384, 384, 24
    $region29: #{gru_forward.1} parent=1 // pred_fallthru
      _
    // Predicated region
    $region30: #{gru_forward.1} parent=1 // pred_check
      _
    $region31: #{gru_forward.1} parent=1 // pred_check_branch
      %67 = sbr.rel (0) target = $region33
    $region32: #{gru_forward.1} parent=1 // pred_region
      %s69 = ssub.s32 6144, 6144
      %70 = vsyncadd [#allocation9], %s69
      %s71 = sshll.u32 [#allocation8], 4
      %s72 = int_to_ptr.vmem [resolvable:$true] %s71
      %77 = dma.hbm_to_vmem [thread:$0]  %s7, 6144, %s72, [#allocation9], 384, 384, 24
    $region33: #{gru_forward.1} parent=1 // pred_fallthru
      _
    // Predicated region
    $region34: #{gru_forward.1} parent=1 // pred_check
      _
    $region35: #{gru_forward.1} parent=1 // pred_check_branch
      %79 = sbr.rel (0) target = $region37
    $region36: #{gru_forward.1} parent=1 // pred_region
      _
    $region37: #{gru_forward.1} parent=1 // pred_fallthru
      _
    // Predicated region
    $region38: #{gru_forward.1} parent=1 // pred_check
      _
    $region39: #{gru_forward.1} parent=1 // pred_check_branch
      %81 = sbr.rel (0) target = $region41
    $region40: #{gru_forward.1} parent=1 // pred_region
      _
    $region41: #{gru_forward.1} parent=1 // pred_fallthru
      _
    // Predicated region
    $region42: #{gru_forward.1} parent=1 // pred_check
      _
    $region43: #{gru_forward.1} parent=1 // pred_check_branch
      %83 = sbr.rel (0) target = $region45
    $region44: #{gru_forward.1} parent=1 // pred_region
      _
    $region45: #{gru_forward.1} parent=1 // pred_fallthru
      _
    // Predicated region
    $region46: #{gru_forward.1} parent=1 // pred_check
      _
    $region47: #{gru_forward.1} parent=1 // pred_check_branch
      %85 = sbr.rel (0) target = $region49
    $region48: #{gru_forward.1} parent=1 // pred_region
      _
    $region49: #{gru_forward.1} parent=1 // pred_fallthru
      _
    // Predicated region
    $region50: #{gru_forward.1} parent=1 // pred_check
      _
    $region51: #{gru_forward.1} parent=1 // pred_check_branch
      %87 = sbr.rel (0) target = $region53
    $region52: #{gru_forward.1} parent=1 // pred_region
      %88 = dma.done [#allocation4], 768
    $region53: #{gru_forward.1} parent=1 // pred_fallthru
      _
    // Predicated region
    $region54: #{gru_forward.1} parent=1 // pred_check
      _
    $region55: #{gru_forward.1} parent=1 // pred_check_branch
      %90 = sbr.rel (0) target = $region57
    $region56: #{gru_forward.1} parent=1 // pred_region
      %91 = dma.done [#allocation6], 6144
    $region57: #{gru_forward.1} parent=1 // pred_fallthru
      _
    // Predicated region
    $region58: #{gru_forward.1} parent=1 // pred_check
      _
    $region59: #{gru_forward.1} parent=1 // pred_check_branch
      %93 = sbr.rel (0) target = $region61
    $region60: #{gru_forward.1} parent=1 // pred_region
      %94 = dma.done [#allocation6], 6144
    $region61: #{gru_forward.1} parent=1 // pred_fallthru
      _
    // Predicated region
    $region62: #{gru_forward.1} parent=1 // pred_check
      _
    $region63: #{gru_forward.1} parent=1 // pred_check_branch
      %96 = sbr.rel (0) target = $region65
    $region64: #{gru_forward.1} parent=1 // pred_region
      %97 = dma.done [#allocation9], 6144
    $region65: #{gru_forward.1} parent=1 // pred_fallthru
      _
    %v98 = vld [vmem:[#allocation5] sm:$0xff]
    %v99 = vld [vmem:[#allocation5 + $0x8] sm:$0xff]
    %v100 = vld [vmem:[#allocation5 + $0x10] sm:$0xff]
    %v101 = vld [vmem:[#allocation5 + $0x18] sm:$0xff]
    %v102 = vld [vmem:[#allocation5 + $0x20] sm:$0xff]
    %v103 = vld [vmem:[#allocation5 + $0x28] sm:$0xff]
    %v104 = vld [vmem:[#allocation5 + $0x30] sm:$0xff]
    %v105 = vld [vmem:[#allocation5 + $0x38] sm:$0xff]
    %v106 = vld [vmem:[#allocation5 + $0x40] sm:$0xff]
    %v107 = vld [vmem:[#allocation5 + $0x48] sm:$0xff]
    %v108 = vld [vmem:[#allocation5 + $0x50] sm:$0xff]
    %v109 = vld [vmem:[#allocation5 + $0x58] sm:$0xff]
    %v110 = vld [vmem:[#allocation5 + $0x60] sm:$0xff]
    %v111 = vld [vmem:[#allocation5 + $0x68] sm:$0xff]
    %v112 = vld [vmem:[#allocation5 + $0x70] sm:$0xff]
    %v113 = vld [vmem:[#allocation5 + $0x78] sm:$0xff]
    %v114 = vld [vmem:[#allocation5 + $0x80] sm:$0xff]
    %v115 = vld [vmem:[#allocation5 + $0x88] sm:$0xff]
    %v116 = vld [vmem:[#allocation5 + $0x90] sm:$0xff]
    %v117 = vld [vmem:[#allocation5 + $0x98] sm:$0xff]
    %v118 = vld [vmem:[#allocation5 + $0xa0] sm:$0xff]
    %v119 = vld [vmem:[#allocation5 + $0xa8] sm:$0xff]
    %v120 = vld [vmem:[#allocation5 + $0xb0] sm:$0xff]
    %v121 = vld [vmem:[#allocation5 + $0xb8] sm:$0xff]
    %v122 = vld [vmem:[#allocation5 + $0xc0] sm:$0xff]
    %v123 = vld [vmem:[#allocation5 + $0xc8] sm:$0xff]
    %v124 = vld [vmem:[#allocation5 + $0xd0] sm:$0xff]
    %v125 = vld [vmem:[#allocation5 + $0xd8] sm:$0xff]
    %v126 = vld [vmem:[#allocation5 + $0xe0] sm:$0xff]
    %v127 = vld [vmem:[#allocation5 + $0xe8] sm:$0xff]
    %v128 = vld [vmem:[#allocation5 + $0xf0] sm:$0xff]
    %v129 = vld [vmem:[#allocation5 + $0xf8] sm:$0xff]
    %v130 = vld [vmem:[#allocation5 + $0x100] sm:$0xff]
    %v131 = vld [vmem:[#allocation5 + $0x108] sm:$0xff]
    %v132 = vld [vmem:[#allocation5 + $0x110] sm:$0xff]
    %v133 = vld [vmem:[#allocation5 + $0x118] sm:$0xff]
    %v134 = vld [vmem:[#allocation5 + $0x120] sm:$0xff]
    %v135 = vld [vmem:[#allocation5 + $0x128] sm:$0xff]
    %v136 = vld [vmem:[#allocation5 + $0x130] sm:$0xff]
    %v137 = vld [vmem:[#allocation5 + $0x138] sm:$0xff]
    %v138 = vld [vmem:[#allocation5 + $0x140] sm:$0xff]
    %v139 = vld [vmem:[#allocation5 + $0x148] sm:$0xff]
    %v140 = vld [vmem:[#allocation5 + $0x150] sm:$0xff]
    %v141 = vld [vmem:[#allocation5 + $0x158] sm:$0xff]
    %v142 = vld [vmem:[#allocation5 + $0x160] sm:$0xff]
    %v143 = vld [vmem:[#allocation5 + $0x168] sm:$0xff]
    %v144 = vld [vmem:[#allocation5 + $0x170] sm:$0xff]
    %v145 = vld [vmem:[#allocation5 + $0x178] sm:$0xff]
    %v146 = vld [vmem:[#allocation8] sm:$0xff]
    %v147 = vld [vmem:[#allocation8 + $0x8] sm:$0xff]
    %v148 = vld [vmem:[#allocation8 + $0x10] sm:$0xff]
    %v149 = vld [vmem:[#allocation8 + $0x18] sm:$0xff]
    %v150 = vld [vmem:[#allocation8 + $0x20] sm:$0xff]
    %v151 = vld [vmem:[#allocation8 + $0x28] sm:$0xff]
    %v152 = vld [vmem:[#allocation8 + $0x30] sm:$0xff]
    %v153 = vld [vmem:[#allocation8 + $0x38] sm:$0xff]
    %v154 = vld [vmem:[#allocation8 + $0x40] sm:$0xff]
    %v155 = vld [vmem:[#allocation8 + $0x48] sm:$0xff]
    %v156 = vld [vmem:[#allocation8 + $0x50] sm:$0xff]
    %v157 = vld [vmem:[#allocation8 + $0x58] sm:$0xff]
    %v158 = vld [vmem:[#allocation8 + $0x60] sm:$0xff]
    %v159 = vld [vmem:[#allocation8 + $0x68] sm:$0xff]
    %v160 = vld [vmem:[#allocation8 + $0x70] sm:$0xff]
    %v161 = vld [vmem:[#allocation8 + $0x78] sm:$0xff]
    %v162 = vld [vmem:[#allocation8 + $0x80] sm:$0xff]
    %v163 = vld [vmem:[#allocation8 + $0x88] sm:$0xff]
    %v164 = vld [vmem:[#allocation8 + $0x90] sm:$0xff]
    %v165 = vld [vmem:[#allocation8 + $0x98] sm:$0xff]
    %v166 = vld [vmem:[#allocation8 + $0xa0] sm:$0xff]
    %v167 = vld [vmem:[#allocation8 + $0xa8] sm:$0xff]
    %v168 = vld [vmem:[#allocation8 + $0xb0] sm:$0xff]
    %v169 = vld [vmem:[#allocation8 + $0xb8] sm:$0xff]
    %v170 = vld [vmem:[#allocation8 + $0xc0] sm:$0xff]
    %v171 = vld [vmem:[#allocation8 + $0xc8] sm:$0xff]
    %v172 = vld [vmem:[#allocation8 + $0xd0] sm:$0xff]
    %v173 = vld [vmem:[#allocation8 + $0xd8] sm:$0xff]
    %v174 = vld [vmem:[#allocation8 + $0xe0] sm:$0xff]
    %v175 = vld [vmem:[#allocation8 + $0xe8] sm:$0xff]
    %v176 = vld [vmem:[#allocation8 + $0xf0] sm:$0xff]
    %v177 = vld [vmem:[#allocation8 + $0xf8] sm:$0xff]
    %v178 = vld [vmem:[#allocation8 + $0x100] sm:$0xff]
    %v179 = vld [vmem:[#allocation8 + $0x108] sm:$0xff]
    %v180 = vld [vmem:[#allocation8 + $0x110] sm:$0xff]
    %v181 = vld [vmem:[#allocation8 + $0x118] sm:$0xff]
    %v182 = vld [vmem:[#allocation8 + $0x120] sm:$0xff]
    %v183 = vld [vmem:[#allocation8 + $0x128] sm:$0xff]
    %v184 = vld [vmem:[#allocation8 + $0x130] sm:$0xff]
    %v185 = vld [vmem:[#allocation8 + $0x138] sm:$0xff]
    %v186 = vld [vmem:[#allocation8 + $0x140] sm:$0xff]
    %v187 = vld [vmem:[#allocation8 + $0x148] sm:$0xff]
    %v188 = vld [vmem:[#allocation8 + $0x150] sm:$0xff]
    %v189 = vld [vmem:[#allocation8 + $0x158] sm:$0xff]
    %v190 = vld [vmem:[#allocation8 + $0x160] sm:$0xff]
    %v191 = vld [vmem:[#allocation8 + $0x168] sm:$0xff]
    %v192 = vld [vmem:[#allocation8 + $0x170] sm:$0xff]
    %v193 = vld [vmem:[#allocation8 + $0x178] sm:$0xff]
    %v194 = vld [vmem:[#allocation7] sm:$0xff]
    %v195 = vld [vmem:[#allocation7 + $0x8] sm:$0xff]
    %v196 = vld [vmem:[#allocation7 + $0x10] sm:$0xff]
    %v197 = vld [vmem:[#allocation7 + $0x18] sm:$0xff]
    %v198 = vld [vmem:[#allocation7 + $0x20] sm:$0xff]
    %v199 = vld [vmem:[#allocation7 + $0x28] sm:$0xff]
    %v200 = vld [vmem:[#allocation7 + $0x30] sm:$0xff]
    %v201 = vld [vmem:[#allocation7 + $0x38] sm:$0xff]
    %v202 = vld [vmem:[#allocation7 + $0x40] sm:$0xff]
    %v203 = vld [vmem:[#allocation7 + $0x48] sm:$0xff]
    %v204 = vld [vmem:[#allocation7 + $0x50] sm:$0xff]
    %v205 = vld [vmem:[#allocation7 + $0x58] sm:$0xff]
    %v206 = vld [vmem:[#allocation7 + $0x60] sm:$0xff]
    %v207 = vld [vmem:[#allocation7 + $0x68] sm:$0xff]
    %v208 = vld [vmem:[#allocation7 + $0x70] sm:$0xff]
    %v209 = vld [vmem:[#allocation7 + $0x78] sm:$0xff]
    %v210 = vld [vmem:[#allocation7 + $0x80] sm:$0xff]
    %v211 = vld [vmem:[#allocation7 + $0x88] sm:$0xff]
    %v212 = vld [vmem:[#allocation7 + $0x90] sm:$0xff]
    %v213 = vld [vmem:[#allocation7 + $0x98] sm:$0xff]
    %v214 = vld [vmem:[#allocation7 + $0xa0] sm:$0xff]
    %v215 = vld [vmem:[#allocation7 + $0xa8] sm:$0xff]
    %v216 = vld [vmem:[#allocation7 + $0xb0] sm:$0xff]
    %v217 = vld [vmem:[#allocation7 + $0xb8] sm:$0xff]
    %v218 = vld [vmem:[#allocation7 + $0xc0] sm:$0xff]
    %v219 = vld [vmem:[#allocation7 + $0xc8] sm:$0xff]
    %v220 = vld [vmem:[#allocation7 + $0xd0] sm:$0xff]
    %v221 = vld [vmem:[#allocation7 + $0xd8] sm:$0xff]
    %v222 = vld [vmem:[#allocation7 + $0xe0] sm:$0xff]
    %v223 = vld [vmem:[#allocation7 + $0xe8] sm:$0xff]
    %v224 = vld [vmem:[#allocation7 + $0xf0] sm:$0xff]
    %v225 = vld [vmem:[#allocation7 + $0xf8] sm:$0xff]
    %v226 = vld [vmem:[#allocation7 + $0x100] sm:$0xff]
    %v227 = vld [vmem:[#allocation7 + $0x108] sm:$0xff]
    %v228 = vld [vmem:[#allocation7 + $0x110] sm:$0xff]
    %v229 = vld [vmem:[#allocation7 + $0x118] sm:$0xff]
    %v230 = vld [vmem:[#allocation7 + $0x120] sm:$0xff]
    %v231 = vld [vmem:[#allocation7 + $0x128] sm:$0xff]
    %v232 = vld [vmem:[#allocation7 + $0x130] sm:$0xff]
    %v233 = vld [vmem:[#allocation7 + $0x138] sm:$0xff]
    %v234 = vld [vmem:[#allocation7 + $0x140] sm:$0xff]
    %v235 = vld [vmem:[#allocation7 + $0x148] sm:$0xff]
    %v236 = vld [vmem:[#allocation7 + $0x150] sm:$0xff]
    %v237 = vld [vmem:[#allocation7 + $0x158] sm:$0xff]
    %v238 = vld [vmem:[#allocation7 + $0x160] sm:$0xff]
    %v239 = vld [vmem:[#allocation7 + $0x168] sm:$0xff]
    %v240 = vld [vmem:[#allocation7 + $0x170] sm:$0xff]
    %v241 = vld [vmem:[#allocation7 + $0x178] sm:$0xff]
    %v242 = vld [vmem:[%s8] sm:$0x7]
    %v244 = vlaneseq
    %v245 = vshrl.u32 %v244, 7
    %v246 = vsub.s32 0, %v245
    %v247 = vrot.slane %v242, %v246
    %v248 = vlaneseq
    %v249 = vshrl.u32 %v248, 7
    %v250 = vsub.s32 1, %v249
    %v251 = vrot.slane %v242, %v250
    %v252 = vlaneseq
    %v253 = vshrl.u32 %v252, 7
    %v254 = vsub.s32 2, %v253
    %v255 = vrot.slane %v242, %v254
    %v259 = vld [vmem:[%s5] sm:$0x1]
    %v261 = vlaneseq
    %v262 = vshrl.u32 %v261, 7
    %v263 = vsub.s32 0, %v262
    %v264 = vrot.slane %v259, %v263
    %v266 = vld [vmem:[%s9] sm:$0x1]
    %v268 = vlaneseq
    %v269 = vshrl.u32 %v268, 7
    %v270 = vsub.s32 0, %v269
    %v271 = vrot.slane %v266, %v270
    %v273 = vld [vmem:[%s0] sm:$0xff]
    %v274 = vld [vmem:[%s0 + $0x8] sm:$0xff]
    %v275 = vld [vmem:[%s0 + $0x10] sm:$0xff]
    %v276 = vld [vmem:[%s0 + $0x18] sm:$0xff]
    %v277 = vld [vmem:[%s0 + $0x20] sm:$0xff]
    %v278 = vld [vmem:[%s0 + $0x28] sm:$0xff]
    %v279 = vld [vmem:[%s0 + $0x30] sm:$0xff]
    %v280 = vld [vmem:[%s0 + $0x38] sm:$0xff]
    %v281 = vld [vmem:[#allocation3] sm:$0xff]
    %v282 = vld [vmem:[#allocation3 + $0x8] sm:$0xff]
    %v283 = vld [vmem:[#allocation3 + $0x10] sm:$0xff]
    %v284 = vld [vmem:[#allocation3 + $0x18] sm:$0xff]
    %v285 = vld [vmem:[#allocation3 + $0x20] sm:$0xff]
    %v286 = vld [vmem:[#allocation3 + $0x28] sm:$0xff]
    %v287 = vld [vmem:[%s4] sm:$0x7]
    %v289 = vlaneseq
    %v290 = vshrl.u32 %v289, 7
    %v291 = vsub.s32 0, %v290
    %v292 = vrot.slane %v287, %v291
    %v293 = vlaneseq
    %v294 = vshrl.u32 %v293, 7
    %v295 = vsub.s32 1, %v294
    %v296 = vrot.slane %v287, %v295
    %v297 = vlaneseq
    %v298 = vshrl.u32 %v297, 7
    %v299 = vsub.s32 2, %v298
    %v300 = vrot.slane %v287, %v299
    %vm304 = vcmask 130048
    %v306 = vsel %vm304, %v273, 0
    %v309 = vsel %vm304, %v274, 0
    %v312 = vsel %vm304, %v275, 0
    %v315 = vsel %vm304, %v276, 0
    %v318 = vsel %vm304, %v277, 0
    %v321 = vsel %vm304, %v278, 0
    %v324 = vsel %vm304, %v279, 0
    %v327 = vsel %vm304, %v280, 0
    %329 = vmatprep.subr.mxu0 %v282
    %330 = vmatpush1.msra.mxu0 %v281
    %331 = vmatprep.subr.mxu0 %v285
    %332 = vmatpush1.msra.mxu0 %v284
    %333 = vmatprep.subr.mxu0 0.0
    %334 = vmatpush1.msra.mxu0 0.0
    %335 = vmatprep.subr.mxu0 0.0
    %336 = vmatpush1.msra.mxu0 0.0
    %337 = vmatprep.subr.mxu0 0.0
    %338 = vmatpush1.msra.mxu0 0.0
    %339 = vmatprep.subr.mxu0 0.0
    %340 = vmatpush1.msra.mxu0 0.0
    %341 = vmatprep.subr.mxu0 0.0
    %342 = vmatpush1.msra.mxu0 0.0
    %343 = vmatprep.subr.mxu0 0.0
    %344 = vmatpush1.msra.mxu0 0.0
    %345 = vmatprep.subr.mxu0 0.0
    %346 = vmatpush1.msra.mxu0 0.0
    %347 = vmatprep.subr.mxu0 0.0
    %348 = vmatpush1.msra.mxu0 0.0
    %349 = vmatprep.subr.mxu0 0.0
    %350 = vmatpush1.msra.mxu0 0.0
    %351 = vmatprep.subr.mxu0 0.0
    %352 = vmatpush1.msra.mxu0 0.0
    %353 = vmatprep.subr.mxu0 0.0
    %354 = vmatpush1.msra.mxu0 0.0
    %355 = vmatprep.subr.mxu0 0.0
    %356 = vmatpush1.msra.mxu0 0.0
    %357 = vmatprep.subr.mxu0 0.0
    %358 = vmatpush1.msra.mxu0 0.0
    %359 = vmatprep.subr.mxu0 0.0
    %360 = vmatpush1.msra.mxu0 0.0
    %361 = vmatprep.subr.mxu0 0.0
    %362 = vmatpush1.msra.mxu0 0.0
    %363 = vmatprep.subr.mxu0 0.0
    %364 = vmatpush1.msra.mxu0 0.0
    %365 = vmatprep.subr.mxu0 0.0
    %366 = vmatpush1.msra.mxu0 0.0
    %367 = vmatprep.subr.mxu0 0.0
    %368 = vmatpush1.msra.mxu0 0.0
    %369 = vmatprep.subr.mxu0 0.0
    %370 = vmatpush1.msra.mxu0 0.0
    %371 = vmatprep.subr.mxu0 0.0
    %372 = vmatpush1.msra.mxu0 0.0
    %373 = vmatprep.subr.mxu0 0.0
    %374 = vmatpush1.msra.mxu0 0.0
    %375 = vmatprep.subr.mxu0 0.0
    %376 = vmatpush1.msra.mxu0 0.0
    %377 = vmatprep.subr.mxu0 0.0
    %378 = vmatpush1.msra.mxu0 0.0
    %379 = vmatprep.subr.mxu0 0.0
    %380 = vmatpush1.msra.mxu0 0.0
    %381 = vmatprep.subr.mxu0 0.0
    %382 = vmatpush1.msra.mxu0 0.0
    %383 = vmatprep.subr.mxu0 0.0
    %384 = vmatpush1.msra.mxu0 0.0
    %385 = vmatprep.subr.mxu0 0.0
    %386 = vmatpush1.msra.mxu0 0.0
    %387 = vmatprep.subr.mxu0 0.0
    %388 = vmatpush1.msra.mxu0 0.0
    %389 = vmatprep.subr.mxu0 0.0
    %390 = vmatpush1.msra.mxu0 0.0
    %391 = vmatprep.subr.mxu0 0.0
    %392 = vmatpush1.msra.mxu0 0.0
    %393 = vmatprep.mubr.f32.mxu0 0.0
    %394 = vmatmul.mubr.f32.gmra.mrb[0].mxu0 %v306
    %v395 = vpop.f32.mrb[0].mxu0
    %v396 = vadd.f32 %v292, %v395
    %v397 = vpop.f32.mrb[0].mxu0
    %v398 = vadd.f32 %v296, %v397
    %399 = vmatprep.mubr.f32.mxu0 0.0
    %400 = vmatmul.mubr.f32.gmra.mrb[0].mxu0 %v309
    %v401 = vpop.f32.mrb[0].mxu0
    %v402 = vadd.f32 %v292, %v401
    %v403 = vpop.f32.mrb[0].mxu0
    %v404 = vadd.f32 %v296, %v403
    %405 = vmatprep.mubr.f32.mxu0 0.0
    %406 = vmatmul.mubr.f32.gmra.mrb[0].mxu0 %v312
    %v407 = vpop.f32.mrb[0].mxu0
    %v408 = vadd.f32 %v292, %v407
    %v409 = vpop.f32.mrb[0].mxu0
    %v410 = vadd.f32 %v296, %v409
    %411 = vmatprep.mubr.f32.mxu0 0.0
    %412 = vmatmul.mubr.f32.gmra.mrb[0].mxu0 %v315
    %v413 = vpop.f32.mrb[0].mxu0
    %v414 = vadd.f32 %v292, %v413
    %v415 = vpop.f32.mrb[0].mxu0
    %v416 = vadd.f32 %v296, %v415
    %417 = vmatprep.mubr.f32.mxu0 0.0
    %418 = vmatmul.mubr.f32.gmra.mrb[0].mxu0 %v318
    %v419 = vpop.f32.mrb[0].mxu0
    %v420 = vadd.f32 %v292, %v419
    %v421 = vpop.f32.mrb[0].mxu0
    %v422 = vadd.f32 %v296, %v421
    %423 = vmatprep.mubr.f32.mxu0 0.0
    %424 = vmatmul.mubr.f32.gmra.mrb[0].mxu0 %v321
    %v425 = vpop.f32.mrb[0].mxu0
    %v426 = vadd.f32 %v292, %v425
    %v427 = vpop.f32.mrb[0].mxu0
    %v428 = vadd.f32 %v296, %v427
    %429 = vmatprep.mubr.f32.mxu0 0.0
    %430 = vmatmul.mubr.f32.gmra.mrb[0].mxu0 %v324
    %v431 = vpop.f32.mrb[0].mxu0
    %v432 = vadd.f32 %v292, %v431
    %v433 = vpop.f32.mrb[0].mxu0
    %v434 = vadd.f32 %v296, %v433
    %435 = vmatprep.mubr.f32.mxu0 0.0
    %436 = vmatmul.mubr.f32.gmra.mrb[0].mxu0 %v327
    %v437 = vpop.f32.mrb[0].mxu0
    %v438 = vadd.f32 %v292, %v437
    %v439 = vpop.f32.mrb[0].mxu0
    %v440 = vadd.f32 %v296, %v439
    %441 = vdwg.mxu0
    %442 = vmatprep.subr.mxu0 0.0
    %443 = vmatpush1.msra.mxu0 %v283
    %444 = vmatprep.subr.mxu0 0.0
    %445 = vmatpush1.msra.mxu0 %v286
    %446 = vmatprep.subr.mxu0 0.0
    %447 = vmatpush1.msra.mxu0 0.0
    %448 = vmatprep.subr.mxu0 0.0
    %449 = vmatpush1.msra.mxu0 0.0
    %450 = vmatprep.subr.mxu0 0.0
    %451 = vmatpush1.msra.mxu0 0.0
    %452 = vmatprep.subr.mxu0 0.0
    %453 = vmatpush1.msra.mxu0 0.0
    %454 = vmatprep.subr.mxu0 0.0
    %455 = vmatpush1.msra.mxu0 0.0
    %456 = vmatprep.subr.mxu0 0.0
    %457 = vmatpush1.msra.mxu0 0.0
    %458 = vmatprep.subr.mxu0 0.0
    %459 = vmatpush1.msra.mxu0 0.0
    %460 = vmatprep.subr.mxu0 0.0
    %461 = vmatpush1.msra.mxu0 0.0
    %462 = vmatprep.subr.mxu0 0.0
    %463 = vmatpush1.msra.mxu0 0.0
    %464 = vmatprep.subr.mxu0 0.0
    %465 = vmatpush1.msra.mxu0 0.0
    %466 = vmatprep.subr.mxu0 0.0
    %467 = vmatpush1.msra.mxu0 0.0
    %468 = vmatprep.subr.mxu0 0.0
    %469 = vmatpush1.msra.mxu0 0.0
    %470 = vmatprep.subr.mxu0 0.0
    %471 = vmatpush1.msra.mxu0 0.0
    %472 = vmatprep.subr.mxu0 0.0
    %473 = vmatpush1.msra.mxu0 0.0
    %474 = vmatprep.subr.mxu0 0.0
    %475 = vmatpush1.msra.mxu0 0.0
    %476 = vmatprep.subr.mxu0 0.0
    %477 = vmatpush1.msra.mxu0 0.0
    %478 = vmatprep.subr.mxu0 0.0
    %479 = vmatpush1.msra.mxu0 0.0
    %480 = vmatprep.subr.mxu0 0.0
    %481 = vmatpush1.msra.mxu0 0.0
    %482 = vmatprep.subr.mxu0 0.0
    %483 = vmatpush1.msra.mxu0 0.0
    %484 = vmatprep.subr.mxu0 0.0
    %485 = vmatpush1.msra.mxu0 0.0
    %486 = vmatprep.subr.mxu0 0.0
    %487 = vmatpush1.msra.mxu0 0.0
    %488 = vmatprep.subr.mxu0 0.0
    %489 = vmatpush1.msra.mxu0 0.0
    %490 = vmatprep.subr.mxu0 0.0
    %491 = vmatpush1.msra.mxu0 0.0
    %492 = vmatprep.subr.mxu0 0.0
    %493 = vmatpush1.msra.mxu0 0.0
    %494 = vmatprep.subr.mxu0 0.0
    %495 = vmatpush1.msra.mxu0 0.0
    %496 = vmatprep.subr.mxu0 0.0
    %497 = vmatpush1.msra.mxu0 0.0
    %498 = vmatprep.subr.mxu0 0.0
    %499 = vmatpush1.msra.mxu0 0.0
    %500 = vmatprep.subr.mxu0 0.0
    %501 = vmatpush1.msra.mxu0 0.0
    %502 = vmatprep.subr.mxu0 0.0
    %503 = vmatpush1.msra.mxu0 0.0
    %504 = vmatprep.subr.mxu0 0.0
    %505 = vmatpush1.msra.mxu0 0.0
    %506 = vmatprep.mubr.f32.mxu0 0.0
    %507 = vmatmul.mubr.f32.gmra.mrb[0].mxu0 %v306
    %v508 = vpop.f32.mrb[0].mxu0
    %v509 = vadd.f32 %v300, %v508
    %v510 = vpop.f32.mrb[0].mxu0
    %511 = vmatprep.mubr.f32.mxu0 0.0
    %512 = vmatmul.mubr.f32.gmra.mrb[0].mxu0 %v309
    %v513 = vpop.f32.mrb[0].mxu0
    %v514 = vadd.f32 %v300, %v513
    %v515 = vpop.f32.mrb[0].mxu0
    %516 = vmatprep.mubr.f32.mxu0 0.0
    %517 = vmatmul.mubr.f32.gmra.mrb[0].mxu0 %v312
    %v518 = vpop.f32.mrb[0].mxu0
    %v519 = vadd.f32 %v300, %v518
    %v520 = vpop.f32.mrb[0].mxu0
    %521 = vmatprep.mubr.f32.mxu0 0.0
    %522 = vmatmul.mubr.f32.gmra.mrb[0].mxu0 %v315
    %v523 = vpop.f32.mrb[0].mxu0
    %v524 = vadd.f32 %v300, %v523
    %v525 = vpop.f32.mrb[0].mxu0
    %526 = vmatprep.mubr.f32.mxu0 0.0
    %527 = vmatmul.mubr.f32.gmra.mrb[0].mxu0 %v318
    %v528 = vpop.f32.mrb[0].mxu0
    %v529 = vadd.f32 %v300, %v528
    %v530 = vpop.f32.mrb[0].mxu0
    %531 = vmatprep.mubr.f32.mxu0 0.0
    %532 = vmatmul.mubr.f32.gmra.mrb[0].mxu0 %v321
    %v533 = vpop.f32.mrb[0].mxu0
    %v534 = vadd.f32 %v300, %v533
    %v535 = vpop.f32.mrb[0].mxu0
    %536 = vmatprep.mubr.f32.mxu0 0.0
    %537 = vmatmul.mubr.f32.gmra.mrb[0].mxu0 %v324
    %v538 = vpop.f32.mrb[0].mxu0
    %v539 = vadd.f32 %v300, %v538
    %v540 = vpop.f32.mrb[0].mxu0
    %541 = vmatprep.mubr.f32.mxu0 0.0
    %542 = vmatmul.mubr.f32.gmra.mrb[0].mxu0 %v327
    %v543 = vpop.f32.mrb[0].mxu0
    %v544 = vadd.f32 %v300, %v543
    %v545 = vpop.f32.mrb[0].mxu0
    %546 = vdwg.mxu0
    %547 = vst [vmem:[#allocation2] sm:$0xff] %v396
    %548 = vst [vmem:[#allocation2 + $0x8] sm:$0xff] %v398
    %549 = vst [vmem:[#allocation2 + $0x10] sm:$0xff] %v509
    %550 = vst [vmem:[#allocation2 + $0x18] sm:$0xff] %v402
    %551 = vst [vmem:[#allocation2 + $0x20] sm:$0xff] %v404
    %552 = vst [vmem:[#allocation2 + $0x28] sm:$0xff] %v514
    %553 = vst [vmem:[#allocation2 + $0x30] sm:$0xff] %v408
    %554 = vst [vmem:[#allocation2 + $0x38] sm:$0xff] %v410
    %555 = vst [vmem:[#allocation2 + $0x40] sm:$0xff] %v519
    %556 = vst [vmem:[#allocation2 + $0x48] sm:$0xff] %v414
    %557 = vst [vmem:[#allocation2 + $0x50] sm:$0xff] %v416
    %558 = vst [vmem:[#allocation2 + $0x58] sm:$0xff] %v524
    %559 = vst [vmem:[#allocation2 + $0x60] sm:$0xff] %v420
    %560 = vst [vmem:[#allocation2 + $0x68] sm:$0xff] %v422
    %561 = vst [vmem:[#allocation2 + $0x70] sm:$0xff] %v529
    %562 = vst [vmem:[#allocation2 + $0x78] sm:$0xff] %v426
    %563 = vst [vmem:[#allocation2 + $0x80] sm:$0xff] %v428
    %564 = vst [vmem:[#allocation2 + $0x88] sm:$0xff] %v534
    %565 = vst [vmem:[#allocation2 + $0x90] sm:$0xff] %v432
    %566 = vst [vmem:[#allocation2 + $0x98] sm:$0xff] %v434
    %567 = vst [vmem:[#allocation2 + $0xa0] sm:$0xff] %v539
    %568 = vst [vmem:[#allocation2 + $0xa8] sm:$0xff] %v438
    %569 = vst [vmem:[#allocation2 + $0xb0] sm:$0xff] %v440
    %570 = vst [vmem:[#allocation2 + $0xb8] sm:$0xff] %v544
    %v571 = vld [vmem:[%s1] sm:$0xff]
    %s572 = scalar_lea.vmem %s1, 8
    %v573 = vld [vmem:[%s572] sm:$0xff]
    %574 = vmatprep.subr.mxu0 %v99
    %575 = vmatpush1.msra.mxu0 %v98
    %576 = vmatprep.subr.mxu0 %v102
    %577 = vmatpush1.msra.mxu0 %v101
    %578 = vmatprep.subr.mxu0 %v105
    %579 = vmatpush1.msra.mxu0 %v104
    %580 = vmatprep.subr.mxu0 %v108
    %581 = vmatpush1.msra.mxu0 %v107
    %582 = vmatprep.subr.mxu0 %v111
    %583 = vmatpush1.msra.mxu0 %v110
    %584 = vmatprep.subr.mxu0 %v114
    %585 = vmatpush1.msra.mxu0 %v113
    %586 = vmatprep.subr.mxu0 %v117
    %587 = vmatpush1.msra.mxu0 %v116
    %588 = vmatprep.subr.mxu0 %v120
    %589 = vmatpush1.msra.mxu0 %v119
    %590 = vmatprep.subr.mxu0 %v123
    %591 = vmatpush1.msra.mxu0 %v122
    %592 = vmatprep.subr.mxu0 %v126
    %593 = vmatpush1.msra.mxu0 %v125
    %594 = vmatprep.subr.mxu0 %v129
    %595 = vmatpush1.msra.mxu0 %v128
    %596 = vmatprep.subr.mxu0 %v132
    %597 = vmatpush1.msra.mxu0 %v131
    %598 = vmatprep.subr.mxu0 %v135
    %599 = vmatpush1.msra.mxu0 %v134
    %600 = vmatprep.subr.mxu0 %v138
    %601 = vmatpush1.msra.mxu0 %v137
    %602 = vmatprep.subr.mxu0 %v141
    %603 = vmatpush1.msra.mxu0 %v140
    %604 = vmatprep.subr.mxu0 %v144
    %605 = vmatpush1.msra.mxu0 %v143
    %606 = vmatprep.subr.mxu0 0.0
    %607 = vmatpush1.msra.mxu0 0.0
    %608 = vmatprep.subr.mxu0 0.0
    %609 = vmatpush1.msra.mxu0 0.0
    %610 = vmatprep.subr.mxu0 0.0
    %611 = vmatpush1.msra.mxu0 0.0
    %612 = vmatprep.subr.mxu0 0.0
    %613 = vmatpush1.msra.mxu0 0.0
    %614 = vmatprep.subr.mxu0 0.0
    %615 = vmatpush1.msra.mxu0 0.0
    %616 = vmatprep.subr.mxu0 0.0
    %617 = vmatpush1.msra.mxu0 0.0
    %618 = vmatprep.subr.mxu0 0.0
    %619 = vmatpush1.msra.mxu0 0.0
    %620 = vmatprep.subr.mxu0 0.0
    %621 = vmatpush1.msra.mxu0 0.0
    %622 = vmatprep.subr.mxu0 0.0
    %623 = vmatpush1.msra.mxu0 0.0
    %624 = vmatprep.subr.mxu0 0.0
    %625 = vmatpush1.msra.mxu0 0.0
    %626 = vmatprep.subr.mxu0 0.0
    %627 = vmatpush1.msra.mxu0 0.0
    %628 = vmatprep.subr.mxu0 0.0
    %629 = vmatpush1.msra.mxu0 0.0
    %630 = vmatprep.subr.mxu0 0.0
    %631 = vmatpush1.msra.mxu0 0.0
    %632 = vmatprep.subr.mxu0 0.0
    %633 = vmatpush1.msra.mxu0 0.0
    %634 = vmatprep.subr.mxu0 0.0
    %635 = vmatpush1.msra.mxu0 0.0
    %636 = vmatprep.subr.mxu0 0.0
    %637 = vmatpush1.msra.mxu0 0.0
    %638 = vmatprep.mubr.f32.mxu0 0.0
    %639 = vmatmul.mubr.f32.gmra.mrb[0].mxu0 %v571
    %v640 = vpop.f32.mrb[0].mxu0
    %v641 = vadd.f32 0.0, %v640
    %v642 = vpop.f32.mrb[0].mxu0
    %v643 = vadd.f32 0.0, %v642
    %644 = vdwg.mxu0
    %645 = vmatprep.subr.mxu0 0.0
    %646 = vmatpush1.msra.mxu0 %v100
    %647 = vmatprep.subr.mxu0 0.0
    %648 = vmatpush1.msra.mxu0 %v103
    %649 = vmatprep.subr.mxu0 0.0
    %650 = vmatpush1.msra.mxu0 %v106
    %651 = vmatprep.subr.mxu0 0.0
    %652 = vmatpush1.msra.mxu0 %v109
    %653 = vmatprep.subr.mxu0 0.0
    %654 = vmatpush1.msra.mxu0 %v112
    %655 = vmatprep.subr.mxu0 0.0
    %656 = vmatpush1.msra.mxu0 %v115
    %657 = vmatprep.subr.mxu0 0.0
    %658 = vmatpush1.msra.mxu0 %v118
    %659 = vmatprep.subr.mxu0 0.0
    %660 = vmatpush1.msra.mxu0 %v121
    %661 = vmatprep.subr.mxu0 0.0
    %662 = vmatpush1.msra.mxu0 %v124
    %663 = vmatprep.subr.mxu0 0.0
    %664 = vmatpush1.msra.mxu0 %v127
    %665 = vmatprep.subr.mxu0 0.0
    %666 = vmatpush1.msra.mxu0 %v130
    %667 = vmatprep.subr.mxu0 0.0
    %668 = vmatpush1.msra.mxu0 %v133
    %669 = vmatprep.subr.mxu0 0.0
    %670 = vmatpush1.msra.mxu0 %v136
    %671 = vmatprep.subr.mxu0 0.0
    %672 = vmatpush1.msra.mxu0 %v139
    %673 = vmatprep.subr.mxu0 0.0
    %674 = vmatpush1.msra.mxu0 %v142
    %675 = vmatprep.subr.mxu0 0.0
    %676 = vmatpush1.msra.mxu0 %v145
    %677 = vmatprep.subr.mxu0 0.0
    %678 = vmatpush1.msra.mxu0 0.0
    %679 = vmatprep.subr.mxu0 0.0
    %680 = vmatpush1.msra.mxu0 0.0
    %681 = vmatprep.subr.mxu0 0.0
    %682 = vmatpush1.msra.mxu0 0.0
    %683 = vmatprep.subr.mxu0 0.0
    %684 = vmatpush1.msra.mxu0 0.0
    %685 = vmatprep.subr.mxu0 0.0
    %686 = vmatpush1.msra.mxu0 0.0
    %687 = vmatprep.subr.mxu0 0.0
    %688 = vmatpush1.msra.mxu0 0.0
    %689 = vmatprep.subr.mxu0 0.0
    %690 = vmatpush1.msra.mxu0 0.0
    %691 = vmatprep.subr.mxu0 0.0
    %692 = vmatpush1.msra.mxu0 0.0
    %693 = vmatprep.subr.mxu0 0.0
    %694 = vmatpush1.msra.mxu0 0.0
    %695 = vmatprep.subr.mxu0 0.0
    %696 = vmatpush1.msra.mxu0 0.0
    %697 = vmatprep.subr.mxu0 0.0
    %698 = vmatpush1.msra.mxu0 0.0
    %699 = vmatprep.subr.mxu0 0.0
    %700 = vmatpush1.msra.mxu0 0.0
    %701 = vmatprep.subr.mxu0 0.0
    %702 = vmatpush1.msra.mxu0 0.0
    %703 = vmatprep.subr.mxu0 0.0
    %704 = vmatpush1.msra.mxu0 0.0
    %705 = vmatprep.subr.mxu0 0.0
    %706 = vmatpush1.msra.mxu0 0.0
    %707 = vmatprep.subr.mxu0 0.0
    %708 = vmatpush1.msra.mxu0 0.0
    %709 = vmatprep.mubr.f32.mxu0 0.0
    %710 = vmatmul.mubr.f32.gmra.mrb[0].mxu0 %v571
    %v711 = vpop.f32.mrb[0].mxu0
    %v712 = vadd.f32 0.0, %v711
    %v713 = vpop.f32.mrb[0].mxu0
    %714 = vdwg.mxu0
    %v715 = vld [vmem:[#allocation2] sm:$0xff]
    %v716 = vld [vmem:[#allocation2 + $0x8] sm:$0xff]
    %v717 = vld [vmem:[#allocation2 + $0x10] sm:$0xff]
    %v718 = vadd.f32 %v715, %v641
    %v719 = vxor.u32 %v718, 2147483648
    %v720 = vmul.f32 %v719, 1.442695
    %v721 = vpow.pop %v720
    %v722 = vadd.f32 %v721, 1.0
    %v723 = vrcp.pop %v722
    %v724 = vmul.f32 1.0, %v723
    %v725 = vadd.f32 %v716, %v643
    %v726 = vxor.u32 %v725, 2147483648
    %v727 = vmul.f32 %v726, 1.442695
    %v728 = vpow.pop %v727
    %v729 = vadd.f32 %v728, 1.0
    %v730 = vrcp.pop %v729
    %v731 = vmul.f32 1.0, %v730
    %v732 = vadd.f32 %v712, %v264
    %v733 = vmul.f32 %v724, %v732
    %v734 = vadd.f32 %v717, %v733
    %v735 = vtanh.pop %v734
    %v736 = vsub.f32 %v571, %v735
    %v737 = vmul.f32 %v731, %v736
    %v738 = vadd.f32 %v735, %v737
    %739 = vmatprep.subr.mxu0 %v195
    %740 = vmatpush1.msra.mxu0 %v194
    %741 = vmatprep.subr.mxu0 %v198
    %742 = vmatpush1.msra.mxu0 %v197
    %743 = vmatprep.subr.mxu0 %v201
    %744 = vmatpush1.msra.mxu0 %v200
    %745 = vmatprep.subr.mxu0 %v204
    %746 = vmatpush1.msra.mxu0 %v203
    %747 = vmatprep.subr.mxu0 %v207
    %748 = vmatpush1.msra.mxu0 %v206
    %749 = vmatprep.subr.mxu0 %v210
    %750 = vmatpush1.msra.mxu0 %v209
    %751 = vmatprep.subr.mxu0 %v213
    %752 = vmatpush1.msra.mxu0 %v212
    %753 = vmatprep.subr.mxu0 %v216
    %754 = vmatpush1.msra.mxu0 %v215
    %755 = vmatprep.subr.mxu0 %v219
    %756 = vmatpush1.msra.mxu0 %v218
    %757 = vmatprep.subr.mxu0 %v222
    %758 = vmatpush1.msra.mxu0 %v221
    %759 = vmatprep.subr.mxu0 %v225
    %760 = vmatpush1.msra.mxu0 %v224
    %761 = vmatprep.subr.mxu0 %v228
    %762 = vmatpush1.msra.mxu0 %v227
    %763 = vmatprep.subr.mxu0 %v231
    %764 = vmatpush1.msra.mxu0 %v230
    %765 = vmatprep.subr.mxu0 %v234
    %766 = vmatpush1.msra.mxu0 %v233
    %767 = vmatprep.subr.mxu0 %v237
    %768 = vmatpush1.msra.mxu0 %v236
    %769 = vmatprep.subr.mxu0 %v240
    %770 = vmatpush1.msra.mxu0 %v239
    %771 = vmatprep.subr.mxu0 0.0
    %772 = vmatpush1.msra.mxu0 0.0
    %773 = vmatprep.subr.mxu0 0.0
    %774 = vmatpush1.msra.mxu0 0.0
    %775 = vmatprep.subr.mxu0 0.0
    %776 = vmatpush1.msra.mxu0 0.0
    %777 = vmatprep.subr.mxu0 0.0
    %778 = vmatpush1.msra.mxu0 0.0
    %779 = vmatprep.subr.mxu0 0.0
    %780 = vmatpush1.msra.mxu0 0.0
    %781 = vmatprep.subr.mxu0 0.0
    %782 = vmatpush1.msra.mxu0 0.0
    %783 = vmatprep.subr.mxu0 0.0
    %784 = vmatpush1.msra.mxu0 0.0
    %785 = vmatprep.subr.mxu0 0.0
    %786 = vmatpush1.msra.mxu0 0.0
    %787 = vmatprep.subr.mxu0 0.0
    %788 = vmatpush1.msra.mxu0 0.0
    %789 = vmatprep.subr.mxu0 0.0
    %790 = vmatpush1.msra.mxu0 0.0
    %791 = vmatprep.subr.mxu0 0.0
    %792 = vmatpush1.msra.mxu0 0.0
    %793 = vmatprep.subr.mxu0 0.0
    %794 = vmatpush1.msra.mxu0 0.0
    %795 = vmatprep.subr.mxu0 0.0
    %796 = vmatpush1.msra.mxu0 0.0
    %797 = vmatprep.subr.mxu0 0.0
    %798 = vmatpush1.msra.mxu0 0.0
    %799 = vmatprep.subr.mxu0 0.0
    %800 = vmatpush1.msra.mxu0 0.0
    %801 = vmatprep.subr.mxu0 0.0
    %802 = vmatpush1.msra.mxu0 0.0
    %803 = vmatprep.mubr.f32.mxu0 0.0
    %804 = vmatmul.mubr.f32.gmra.mrb[0].mxu0 %v738
    %v805 = vpop.f32.mrb[0].mxu0
    %v806 = vadd.f32 %v247, %v805
    %v807 = vpop.f32.mrb[0].mxu0
    %v808 = vadd.f32 %v251, %v807
    %809 = vdwg.mxu0
    %810 = vmatprep.subr.mxu0 0.0
    %811 = vmatpush1.msra.mxu0 %v196
    %812 = vmatprep.subr.mxu0 0.0
    %813 = vmatpush1.msra.mxu0 %v199
    %814 = vmatprep.subr.mxu0 0.0
    %815 = vmatpush1.msra.mxu0 %v202
    %816 = vmatprep.subr.mxu0 0.0
    %817 = vmatpush1.msra.mxu0 %v205
    %818 = vmatprep.subr.mxu0 0.0
    %819 = vmatpush1.msra.mxu0 %v208
    %820 = vmatprep.subr.mxu0 0.0
    %821 = vmatpush1.msra.mxu0 %v211
    %822 = vmatprep.subr.mxu0 0.0
    %823 = vmatpush1.msra.mxu0 %v214
    %824 = vmatprep.subr.mxu0 0.0
    %825 = vmatpush1.msra.mxu0 %v217
    %826 = vmatprep.subr.mxu0 0.0
    %827 = vmatpush1.msra.mxu0 %v220
    %828 = vmatprep.subr.mxu0 0.0
    %829 = vmatpush1.msra.mxu0 %v223
    %830 = vmatprep.subr.mxu0 0.0
    %831 = vmatpush1.msra.mxu0 %v226
    %832 = vmatprep.subr.mxu0 0.0
    %833 = vmatpush1.msra.mxu0 %v229
    %834 = vmatprep.subr.mxu0 0.0
    %835 = vmatpush1.msra.mxu0 %v232
    %836 = vmatprep.subr.mxu0 0.0
    %837 = vmatpush1.msra.mxu0 %v235
    %838 = vmatprep.subr.mxu0 0.0
    %839 = vmatpush1.msra.mxu0 %v238
    %840 = vmatprep.subr.mxu0 0.0
    %841 = vmatpush1.msra.mxu0 %v241
    %842 = vmatprep.subr.mxu0 0.0
    %843 = vmatpush1.msra.mxu0 0.0
    %844 = vmatprep.subr.mxu0 0.0
    %845 = vmatpush1.msra.mxu0 0.0
    %846 = vmatprep.subr.mxu0 0.0
    %847 = vmatpush1.msra.mxu0 0.0
    %848 = vmatprep.subr.mxu0 0.0
    %849 = vmatpush1.msra.mxu0 0.0
    %850 = vmatprep.subr.mxu0 0.0
    %851 = vmatpush1.msra.mxu0 0.0
    %852 = vmatprep.subr.mxu0 0.0
    %853 = vmatpush1.msra.mxu0 0.0
    %854 = vmatprep.subr.mxu0 0.0
    %855 = vmatpush1.msra.mxu0 0.0
    %856 = vmatprep.subr.mxu0 0.0
    %857 = vmatpush1.msra.mxu0 0.0
    %858 = vmatprep.subr.mxu0 0.0
    %859 = vmatpush1.msra.mxu0 0.0
    %860 = vmatprep.subr.mxu0 0.0
    %861 = vmatpush1.msra.mxu0 0.0
    %862 = vmatprep.subr.mxu0 0.0
    %863 = vmatpush1.msra.mxu0 0.0
    %864 = vmatprep.subr.mxu0 0.0
    %865 = vmatpush1.msra.mxu0 0.0
    %866 = vmatprep.subr.mxu0 0.0
    %867 = vmatpush1.msra.mxu0 0.0
    %868 = vmatprep.subr.mxu0 0.0
    %869 = vmatpush1.msra.mxu0 0.0
    %870 = vmatprep.subr.mxu0 0.0
    %871 = vmatpush1.msra.mxu0 0.0
    %872 = vmatprep.subr.mxu0 0.0
    %873 = vmatpush1.msra.mxu0 0.0
    %874 = vmatprep.mubr.f32.mxu0 0.0
    %875 = vmatmul.mubr.f32.gmra.mrb[0].mxu0 %v738
    %v876 = vpop.f32.mrb[0].mxu0
    %v877 = vadd.f32 %v255, %v876
    %v878 = vpop.f32.mrb[0].mxu0
    %879 = vdwg.mxu0
    %880 = vmatprep.subr.mxu0 %v147
    %881 = vmatpush1.msra.mxu0 %v146
    %882 = vmatprep.subr.mxu0 %v150
    %883 = vmatpush1.msra.mxu0 %v149
    %884 = vmatprep.subr.mxu0 %v153
    %885 = vmatpush1.msra.mxu0 %v152
    %886 = vmatprep.subr.mxu0 %v156
    %887 = vmatpush1.msra.mxu0 %v155
    %888 = vmatprep.subr.mxu0 %v159
    %889 = vmatpush1.msra.mxu0 %v158
    %890 = vmatprep.subr.mxu0 %v162
    %891 = vmatpush1.msra.mxu0 %v161
    %892 = vmatprep.subr.mxu0 %v165
    %893 = vmatpush1.msra.mxu0 %v164
    %894 = vmatprep.subr.mxu0 %v168
    %895 = vmatpush1.msra.mxu0 %v167
    %896 = vmatprep.subr.mxu0 %v171
    %897 = vmatpush1.msra.mxu0 %v170
    %898 = vmatprep.subr.mxu0 %v174
    %899 = vmatpush1.msra.mxu0 %v173
    %900 = vmatprep.subr.mxu0 %v177
    %901 = vmatpush1.msra.mxu0 %v176
    %902 = vmatprep.subr.mxu0 %v180
    %903 = vmatpush1.msra.mxu0 %v179
    %904 = vmatprep.subr.mxu0 %v183
    %905 = vmatpush1.msra.mxu0 %v182
    %906 = vmatprep.subr.mxu0 %v186
    %907 = vmatpush1.msra.mxu0 %v185
    %908 = vmatprep.subr.mxu0 %v189
    %909 = vmatpush1.msra.mxu0 %v188
    %910 = vmatprep.subr.mxu0 %v192
    %911 = vmatpush1.msra.mxu0 %v191
    %912 = vmatprep.subr.mxu0 0.0
    %913 = vmatpush1.msra.mxu0 0.0
    %914 = vmatprep.subr.mxu0 0.0
    %915 = vmatpush1.msra.mxu0 0.0
    %916 = vmatprep.subr.mxu0 0.0
    %917 = vmatpush1.msra.mxu0 0.0
    %918 = vmatprep.subr.mxu0 0.0
    %919 = vmatpush1.msra.mxu0 0.0
    %920 = vmatprep.subr.mxu0 0.0
    %921 = vmatpush1.msra.mxu0 0.0
    %922 = vmatprep.subr.mxu0 0.0
    %923 = vmatpush1.msra.mxu0 0.0
    %924 = vmatprep.subr.mxu0 0.0
    %925 = vmatpush1.msra.mxu0 0.0
    %926 = vmatprep.subr.mxu0 0.0
    %927 = vmatpush1.msra.mxu0 0.0
    %928 = vmatprep.subr.mxu0 0.0
    %929 = vmatpush1.msra.mxu0 0.0
    %930 = vmatprep.subr.mxu0 0.0
    %931 = vmatpush1.msra.mxu0 0.0
    %932 = vmatprep.subr.mxu0 0.0
    %933 = vmatpush1.msra.mxu0 0.0
    %934 = vmatprep.subr.mxu0 0.0
    %935 = vmatpush1.msra.mxu0 0.0
    %936 = vmatprep.subr.mxu0 0.0
    %937 = vmatpush1.msra.mxu0 0.0
    %938 = vmatprep.subr.mxu0 0.0
    %939 = vmatpush1.msra.mxu0 0.0
    %940 = vmatprep.subr.mxu0 0.0
    %941 = vmatpush1.msra.mxu0 0.0
    %942 = vmatprep.subr.mxu0 0.0
    %943 = vmatpush1.msra.mxu0 0.0
    %944 = vmatprep.mubr.f32.mxu0 0.0
    %945 = vmatmul.mubr.f32.gmra.mrb[0].mxu0 %v573
    %v946 = vpop.f32.mrb[0].mxu0
    %v947 = vadd.f32 0.0, %v946
    %v948 = vpop.f32.mrb[0].mxu0
    %v949 = vadd.f32 0.0, %v948
    %950 = vdwg.mxu0
    %951 = vmatprep.subr.mxu0 0.0
    %952 = vmatpush1.msra.mxu0 %v148
    %953 = vmatprep.subr.mxu0 0.0
    %954 = vmatpush1.msra.mxu0 %v151
    %955 = vmatprep.subr.mxu0 0.0
    %956 = vmatpush1.msra.mxu0 %v154
    %957 = vmatprep.subr.mxu0 0.0
    %958 = vmatpush1.msra.mxu0 %v157
    %959 = vmatprep.subr.mxu0 0.0
    %960 = vmatpush1.msra.mxu0 %v160
    %961 = vmatprep.subr.mxu0 0.0
    %962 = vmatpush1.msra.mxu0 %v163
    %963 = vmatprep.subr.mxu0 0.0
    %964 = vmatpush1.msra.mxu0 %v166
    %965 = vmatprep.subr.mxu0 0.0
    %966 = vmatpush1.msra.mxu0 %v169
    %967 = vmatprep.subr.mxu0 0.0
    %968 = vmatpush1.msra.mxu0 %v172
    %969 = vmatprep.subr.mxu0 0.0
    %970 = vmatpush1.msra.mxu0 %v175
    %971 = vmatprep.subr.mxu0 0.0
    %972 = vmatpush1.msra.mxu0 %v178
    %973 = vmatprep.subr.mxu0 0.0
    %974 = vmatpush1.msra.mxu0 %v181
    %975 = vmatprep.subr.mxu0 0.0
    %976 = vmatpush1.msra.mxu0 %v184
    %977 = vmatprep.subr.mxu0 0.0
    %978 = vmatpush1.msra.mxu0 %v187
    %979 = vmatprep.subr.mxu0 0.0
    %980 = vmatpush1.msra.mxu0 %v190
    %981 = vmatprep.subr.mxu0 0.0
    %982 = vmatpush1.msra.mxu0 %v193
    %983 = vmatprep.subr.mxu0 0.0
    %984 = vmatpush1.msra.mxu0 0.0
    %985 = vmatprep.subr.mxu0 0.0
    %986 = vmatpush1.msra.mxu0 0.0
    %987 = vmatprep.subr.mxu0 0.0
    %988 = vmatpush1.msra.mxu0 0.0
    %989 = vmatprep.subr.mxu0 0.0
    %990 = vmatpush1.msra.mxu0 0.0
    %991 = vmatprep.subr.mxu0 0.0
    %992 = vmatpush1.msra.mxu0 0.0
    %993 = vmatprep.subr.mxu0 0.0
    %994 = vmatpush1.msra.mxu0 0.0
    %995 = vmatprep.subr.mxu0 0.0
    %996 = vmatpush1.msra.mxu0 0.0
    %997 = vmatprep.subr.mxu0 0.0
    %998 = vmatpush1.msra.mxu0 0.0
    %999 = vmatprep.subr.mxu0 0.0
    %1000 = vmatpush1.msra.mxu0 0.0
    %1001 = vmatprep.subr.mxu0 0.0
    %1002 = vmatpush1.msra.mxu0 0.0
    %1003 = vmatprep.subr.mxu0 0.0
    %1004 = vmatpush1.msra.mxu0 0.0
    %1005 = vmatprep.subr.mxu0 0.0
    %1006 = vmatpush1.msra.mxu0 0.0
    %1007 = vmatprep.subr.mxu0 0.0
    %1008 = vmatpush1.msra.mxu0 0.0
    %1009 = vmatprep.subr.mxu0 0.0
    %1010 = vmatpush1.msra.mxu0 0.0
    %1011 = vmatprep.subr.mxu0 0.0
    %1012 = vmatpush1.msra.mxu0 0.0
    %1013 = vmatprep.subr.mxu0 0.0
    %1014 = vmatpush1.msra.mxu0 0.0
    %1015 = vmatprep.mubr.f32.mxu0 0.0
    %1016 = vmatmul.mubr.f32.gmra.mrb[0].mxu0 %v573
    %v1017 = vpop.f32.mrb[0].mxu0
    %v1018 = vadd.f32 0.0, %v1017
    %v1019 = vpop.f32.mrb[0].mxu0
    %1020 = vdwg.mxu0
    %v1021 = vadd.f32 %v806, %v947
    %v1022 = vxor.u32 %v1021, 2147483648
    %v1023 = vmul.f32 %v1022, 1.442695
    %v1024 = vpow.pop %v1023
    %v1025 = vadd.f32 %v1024, 1.0
    %v1026 = vrcp.pop %v1025
    %v1027 = vmul.f32 1.0, %v1026
    %v1028 = vadd.f32 %v808, %v949
    %v1029 = vxor.u32 %v1028, 2147483648
    %v1030 = vmul.f32 %v1029, 1.442695
    %v1031 = vpow.pop %v1030
    %v1032 = vadd.f32 %v1031, 1.0
    %v1033 = vrcp.pop %v1032
    %v1034 = vmul.f32 1.0, %v1033
    %v1035 = vadd.f32 %v1018, %v271
    %v1036 = vmul.f32 %v1027, %v1035
    %v1037 = vadd.f32 %v877, %v1036
    %v1038 = vtanh.pop %v1037
    %v1039 = vsub.f32 %v573, %v1038
    %v1040 = vmul.f32 %v1034, %v1039
    %v1041 = vadd.f32 %v1038, %v1040
    %1042 = vst [vmem:[%s13] sm:$0xff] %v1041
    %1043 = vmatprep.subr.mxu0 %v99
    %1044 = vmatpush1.msra.mxu0 %v98
    %1045 = vmatprep.subr.mxu0 %v102
    %1046 = vmatpush1.msra.mxu0 %v101
    %1047 = vmatprep.subr.mxu0 %v105
    %1048 = vmatpush1.msra.mxu0 %v104
    %1049 = vmatprep.subr.mxu0 %v108
    %1050 = vmatpush1.msra.mxu0 %v107
    %1051 = vmatprep.subr.mxu0 %v111
    %1052 = vmatpush1.msra.mxu0 %v110
    %1053 = vmatprep.subr.mxu0 %v114
    %1054 = vmatpush1.msra.mxu0 %v113
    %1055 = vmatprep.subr.mxu0 %v117
    %1056 = vmatpush1.msra.mxu0 %v116
    %1057 = vmatprep.subr.mxu0 %v120
    %1058 = vmatpush1.msra.mxu0 %v119
    %1059 = vmatprep.subr.mxu0 %v123
    %1060 = vmatpush1.msra.mxu0 %v122
    %1061 = vmatprep.subr.mxu0 %v126
    %1062 = vmatpush1.msra.mxu0 %v125
    %1063 = vmatprep.subr.mxu0 %v129
    %1064 = vmatpush1.msra.mxu0 %v128
    %1065 = vmatprep.subr.mxu0 %v132
    %1066 = vmatpush1.msra.mxu0 %v131
    %1067 = vmatprep.subr.mxu0 %v135
    %1068 = vmatpush1.msra.mxu0 %v134
    %1069 = vmatprep.subr.mxu0 %v138
    %1070 = vmatpush1.msra.mxu0 %v137
    %1071 = vmatprep.subr.mxu0 %v141
    %1072 = vmatpush1.msra.mxu0 %v140
    %1073 = vmatprep.subr.mxu0 %v144
    %1074 = vmatpush1.msra.mxu0 %v143
    %1075 = vmatprep.subr.mxu0 0.0
    %1076 = vmatpush1.msra.mxu0 0.0
    %1077 = vmatprep.subr.mxu0 0.0
    %1078 = vmatpush1.msra.mxu0 0.0
    %1079 = vmatprep.subr.mxu0 0.0
    %1080 = vmatpush1.msra.mxu0 0.0
    %1081 = vmatprep.subr.mxu0 0.0
    %1082 = vmatpush1.msra.mxu0 0.0
    %1083 = vmatprep.subr.mxu0 0.0
    %1084 = vmatpush1.msra.mxu0 0.0
    %1085 = vmatprep.subr.mxu0 0.0
    %1086 = vmatpush1.msra.mxu0 0.0
    %1087 = vmatprep.subr.mxu0 0.0
    %1088 = vmatpush1.msra.mxu0 0.0
    %1089 = vmatprep.subr.mxu0 0.0
    %1090 = vmatpush1.msra.mxu0 0.0
    %1091 = vmatprep.subr.mxu0 0.0
    %1092 = vmatpush1.msra.mxu0 0.0
    %1093 = vmatprep.subr.mxu0 0.0
    %1094 = vmatpush1.msra.mxu0 0.0
    %1095 = vmatprep.subr.mxu0 0.0
    %1096 = vmatpush1.msra.mxu0 0.0
    %1097 = vmatprep.subr.mxu0 0.0
    %1098 = vmatpush1.msra.mxu0 0.0
    %1099 = vmatprep.subr.mxu0 0.0
    %1100 = vmatpush1.msra.mxu0 0.0
    %1101 = vmatprep.subr.mxu0 0.0
    %1102 = vmatpush1.msra.mxu0 0.0
    %1103 = vmatprep.subr.mxu0 0.0
    %1104 = vmatpush1.msra.mxu0 0.0
    %1105 = vmatprep.subr.mxu0 0.0
    %1106 = vmatpush1.msra.mxu0 0.0
    %1107 = vmatprep.mubr.f32.mxu0 0.0
    %1108 = vmatmul.mubr.f32.gmra.mrb[0].mxu0 %v738
    %v1109 = vpop.f32.mrb[0].mxu0
    %v1110 = vadd.f32 0.0, %v1109
    %v1111 = vpop.f32.mrb[0].mxu0
    %v1112 = vadd.f32 0.0, %v1111
    %1113 = vdwg.mxu0
    %1114 = vmatprep.subr.mxu0 0.0
    %1115 = vmatpush1.msra.mxu0 %v100
    %1116 = vmatprep.subr.mxu0 0.0
    %1117 = vmatpush1.msra.mxu0 %v103
    %1118 = vmatprep.subr.mxu0 0.0
    %1119 = vmatpush1.msra.mxu0 %v106
    %1120 = vmatprep.subr.mxu0 0.0
    %1121 = vmatpush1.msra.mxu0 %v109
    %1122 = vmatprep.subr.mxu0 0.0
    %1123 = vmatpush1.msra.mxu0 %v112
    %1124 = vmatprep.subr.mxu0 0.0
    %1125 = vmatpush1.msra.mxu0 %v115
    %1126 = vmatprep.subr.mxu0 0.0
    %1127 = vmatpush1.msra.mxu0 %v118
    %1128 = vmatprep.subr.mxu0 0.0
    %1129 = vmatpush1.msra.mxu0 %v121
    %1130 = vmatprep.subr.mxu0 0.0
    %1131 = vmatpush1.msra.mxu0 %v124
    %1132 = vmatprep.subr.mxu0 0.0
    %1133 = vmatpush1.msra.mxu0 %v127
    %1134 = vmatprep.subr.mxu0 0.0
    %1135 = vmatpush1.msra.mxu0 %v130
    %1136 = vmatprep.subr.mxu0 0.0
    %1137 = vmatpush1.msra.mxu0 %v133
    %1138 = vmatprep.subr.mxu0 0.0
    %1139 = vmatpush1.msra.mxu0 %v136
    %1140 = vmatprep.subr.mxu0 0.0
    %1141 = vmatpush1.msra.mxu0 %v139
    %1142 = vmatprep.subr.mxu0 0.0
    %1143 = vmatpush1.msra.mxu0 %v142
    %1144 = vmatprep.subr.mxu0 0.0
    %1145 = vmatpush1.msra.mxu0 %v145
    %1146 = vmatprep.subr.mxu0 0.0
    %1147 = vmatpush1.msra.mxu0 0.0
    %1148 = vmatprep.subr.mxu0 0.0
    %1149 = vmatpush1.msra.mxu0 0.0
    %1150 = vmatprep.subr.mxu0 0.0
    %1151 = vmatpush1.msra.mxu0 0.0
    %1152 = vmatprep.subr.mxu0 0.0
    %1153 = vmatpush1.msra.mxu0 0.0
    %1154 = vmatprep.subr.mxu0 0.0
    %1155 = vmatpush1.msra.mxu0 0.0
    %1156 = vmatprep.subr.mxu0 0.0
    %1157 = vmatpush1.msra.mxu0 0.0
    %1158 = vmatprep.subr.mxu0 0.0
    %1159 = vmatpush1.msra.mxu0 0.0
    %1160 = vmatprep.subr.mxu0 0.0
    %1161 = vmatpush1.msra.mxu0 0.0
    %1162 = vmatprep.subr.mxu0 0.0
    %1163 = vmatpush1.msra.mxu0 0.0
    %1164 = vmatprep.subr.mxu0 0.0
    %1165 = vmatpush1.msra.mxu0 0.0
    %1166 = vmatprep.subr.mxu0 0.0
    %1167 = vmatpush1.msra.mxu0 0.0
    %1168 = vmatprep.subr.mxu0 0.0
    %1169 = vmatpush1.msra.mxu0 0.0
    %1170 = vmatprep.subr.mxu0 0.0
    %1171 = vmatpush1.msra.mxu0 0.0
    %1172 = vmatprep.subr.mxu0 0.0
    %1173 = vmatpush1.msra.mxu0 0.0
    %1174 = vmatprep.subr.mxu0 0.0
    %1175 = vmatpush1.msra.mxu0 0.0
    %1176 = vmatprep.subr.mxu0 0.0
    %1177 = vmatpush1.msra.mxu0 0.0
    %1178 = vmatprep.mubr.f32.mxu0 0.0
    %1179 = vmatmul.mubr.f32.gmra.mrb[0].mxu0 %v738
    %v1180 = vpop.f32.mrb[0].mxu0
    %v1181 = vadd.f32 0.0, %v1180
    %v1182 = vpop.f32.mrb[0].mxu0
    %1183 = vdwg.mxu0
    %s1184 = scalar_lea.vmem [#allocation2], 24
    %v1185 = vld [vmem:[%s1184] sm:$0xff]
    %v1186 = vld [vmem:[%s1184 + $0x8] sm:$0xff]
    %v1187 = vld [vmem:[%s1184 + $0x10] sm:$0xff]
    %v1188 = vadd.f32 %v1185, %v1110
    %v1189 = vxor.u32 %v1188, 2147483648
    %v1190 = vmul.f32 %v1189, 1.442695
    %v1191 = vpow.pop %v1190
    %v1192 = vadd.f32 %v1191, 1.0
    %v1193 = vrcp.pop %v1192
    %v1194 = vmul.f32 1.0, %v1193
    %v1195 = vadd.f32 %v1186, %v1112
    %v1196 = vxor.u32 %v1195, 2147483648
    %v1197 = vmul.f32 %v1196, 1.442695
    %v1198 = vpow.pop %v1197
    %v1199 = vadd.f32 %v1198, 1.0
    %v1200 = vrcp.pop %v1199
    %v1201 = vmul.f32 1.0, %v1200
    %v1202 = vadd.f32 %v1181, %v264
    %v1203 = vmul.f32 %v1194, %v1202
    %v1204 = vadd.f32 %v1187, %v1203
    %v1205 = vtanh.pop %v1204
    %v1206 = vsub.f32 %v738, %v1205
    %v1207 = vmul.f32 %v1201, %v1206
    %v1208 = vadd.f32 %v1205, %v1207
    %1209 = vmatprep.subr.mxu0 %v195
    %1210 = vmatpush1.msra.mxu0 %v194
    %1211 = vmatprep.subr.mxu0 %v198
    %1212 = vmatpush1.msra.mxu0 %v197
    %1213 = vmatprep.subr.mxu0 %v201
    %1214 = vmatpush1.msra.mxu0 %v200
    %1215 = vmatprep.subr.mxu0 %v204
    %1216 = vmatpush1.msra.mxu0 %v203
    %1217 = vmatprep.subr.mxu0 %v207
    %1218 = vmatpush1.msra.mxu0 %v206
    %1219 = vmatprep.subr.mxu0 %v210
    %1220 = vmatpush1.msra.mxu0 %v209
    %1221 = vmatprep.subr.mxu0 %v213
    %1222 = vmatpush1.msra.mxu0 %v212
    %1223 = vmatprep.subr.mxu0 %v216
    %1224 = vmatpush1.msra.mxu0 %v215
    %1225 = vmatprep.subr.mxu0 %v219
    %1226 = vmatpush1.msra.mxu0 %v218
    %1227 = vmatprep.subr.mxu0 %v222
    %1228 = vmatpush1.msra.mxu0 %v221
    %1229 = vmatprep.subr.mxu0 %v225
    %1230 = vmatpush1.msra.mxu0 %v224
    %1231 = vmatprep.subr.mxu0 %v228
    %1232 = vmatpush1.msra.mxu0 %v227
    %1233 = vmatprep.subr.mxu0 %v231
    %1234 = vmatpush1.msra.mxu0 %v230
    %1235 = vmatprep.subr.mxu0 %v234
    %1236 = vmatpush1.msra.mxu0 %v233
    %1237 = vmatprep.subr.mxu0 %v237
    %1238 = vmatpush1.msra.mxu0 %v236
    %1239 = vmatprep.subr.mxu0 %v240
    %1240 = vmatpush1.msra.mxu0 %v239
    %1241 = vmatprep.subr.mxu0 0.0
    %1242 = vmatpush1.msra.mxu0 0.0
    %1243 = vmatprep.subr.mxu0 0.0
    %1244 = vmatpush1.msra.mxu0 0.0
    %1245 = vmatprep.subr.mxu0 0.0
    %1246 = vmatpush1.msra.mxu0 0.0
    %1247 = vmatprep.subr.mxu0 0.0
    %1248 = vmatpush1.msra.mxu0 0.0
    %1249 = vmatprep.subr.mxu0 0.0
    %1250 = vmatpush1.msra.mxu0 0.0
    %1251 = vmatprep.subr.mxu0 0.0
    %1252 = vmatpush1.msra.mxu0 0.0
    %1253 = vmatprep.subr.mxu0 0.0
    %1254 = vmatpush1.msra.mxu0 0.0
    %1255 = vmatprep.subr.mxu0 0.0
    %1256 = vmatpush1.msra.mxu0 0.0
    %1257 = vmatprep.subr.mxu0 0.0
    %1258 = vmatpush1.msra.mxu0 0.0
    %1259 = vmatprep.subr.mxu0 0.0
    %1260 = vmatpush1.msra.mxu0 0.0
    %1261 = vmatprep.subr.mxu0 0.0
    %1262 = vmatpush1.msra.mxu0 0.0
    %1263 = vmatprep.subr.mxu0 0.0
    %1264 = vmatpush1.msra.mxu0 0.0
    %1265 = vmatprep.subr.mxu0 0.0
    %1266 = vmatpush1.msra.mxu0 0.0
    %1267 = vmatprep.subr.mxu0 0.0
    %1268 = vmatpush1.msra.mxu0 0.0
    %1269 = vmatprep.subr.mxu0 0.0
    %1270 = vmatpush1.msra.mxu0 0.0
    %1271 = vmatprep.subr.mxu0 0.0
    %1272 = vmatpush1.msra.mxu0 0.0
    %1273 = vmatprep.mubr.f32.mxu0 0.0
    %1274 = vmatmul.mubr.f32.gmra.mrb[0].mxu0 %v1208
    %v1275 = vpop.f32.mrb[0].mxu0
    %v1276 = vadd.f32 %v247, %v1275
    %v1277 = vpop.f32.mrb[0].mxu0
    %v1278 = vadd.f32 %v251, %v1277
    %1279 = vdwg.mxu0
    %1280 = vmatprep.subr.mxu0 0.0
    %1281 = vmatpush1.msra.mxu0 %v196
    %1282 = vmatprep.subr.mxu0 0.0
    %1283 = vmatpush1.msra.mxu0 %v199
    %1284 = vmatprep.subr.mxu0 0.0
    %1285 = vmatpush1.msra.mxu0 %v202
    %1286 = vmatprep.subr.mxu0 0.0
    %1287 = vmatpush1.msra.mxu0 %v205
    %1288 = vmatprep.subr.mxu0 0.0
    %1289 = vmatpush1.msra.mxu0 %v208
    %1290 = vmatprep.subr.mxu0 0.0
    %1291 = vmatpush1.msra.mxu0 %v211
    %1292 = vmatprep.subr.mxu0 0.0
    %1293 = vmatpush1.msra.mxu0 %v214
    %1294 = vmatprep.subr.mxu0 0.0
    %1295 = vmatpush1.msra.mxu0 %v217
    %1296 = vmatprep.subr.mxu0 0.0
    %1297 = vmatpush1.msra.mxu0 %v220
    %1298 = vmatprep.subr.mxu0 0.0
    %1299 = vmatpush1.msra.mxu0 %v223
    %1300 = vmatprep.subr.mxu0 0.0
    %1301 = vmatpush1.msra.mxu0 %v226
    %1302 = vmatprep.subr.mxu0 0.0
    %1303 = vmatpush1.msra.mxu0 %v229
    %1304 = vmatprep.subr.mxu0 0.0
    %1305 = vmatpush1.msra.mxu0 %v232
    %1306 = vmatprep.subr.mxu0 0.0
    %1307 = vmatpush1.msra.mxu0 %v235
    %1308 = vmatprep.subr.mxu0 0.0
    %1309 = vmatpush1.msra.mxu0 %v238
    %1310 = vmatprep.subr.mxu0 0.0
    %1311 = vmatpush1.msra.mxu0 %v241
    %1312 = vmatprep.subr.mxu0 0.0
    %1313 = vmatpush1.msra.mxu0 0.0
    %1314 = vmatprep.subr.mxu0 0.0
    %1315 = vmatpush1.msra.mxu0 0.0
    %1316 = vmatprep.subr.mxu0 0.0
    %1317 = vmatpush1.msra.mxu0 0.0
    %1318 = vmatprep.subr.mxu0 0.0
    %1319 = vmatpush1.msra.mxu0 0.0
    %1320 = vmatprep.subr.mxu0 0.0
    %1321 = vmatpush1.msra.mxu0 0.0
    %1322 = vmatprep.subr.mxu0 0.0
    %1323 = vmatpush1.msra.mxu0 0.0
    %1324 = vmatprep.subr.mxu0 0.0
    %1325 = vmatpush1.msra.mxu0 0.0
    %1326 = vmatprep.subr.mxu0 0.0
    %1327 = vmatpush1.msra.mxu0 0.0
    %1328 = vmatprep.subr.mxu0 0.0
    %1329 = vmatpush1.msra.mxu0 0.0
    %1330 = vmatprep.subr.mxu0 0.0
    %1331 = vmatpush1.msra.mxu0 0.0
    %1332 = vmatprep.subr.mxu0 0.0
    %1333 = vmatpush1.msra.mxu0 0.0
    %1334 = vmatprep.subr.mxu0 0.0
    %1335 = vmatpush1.msra.mxu0 0.0
    %1336 = vmatprep.subr.mxu0 0.0
    %1337 = vmatpush1.msra.mxu0 0.0
    %1338 = vmatprep.subr.mxu0 0.0
    %1339 = vmatpush1.msra.mxu0 0.0
    %1340 = vmatprep.subr.mxu0 0.0
    %1341 = vmatpush1.msra.mxu0 0.0
    %1342 = vmatprep.subr.mxu0 0.0
    %1343 = vmatpush1.msra.mxu0 0.0
    %1344 = vmatprep.mubr.f32.mxu0 0.0
    %1345 = vmatmul.mubr.f32.gmra.mrb[0].mxu0 %v1208
    %v1346 = vpop.f32.mrb[0].mxu0
    %v1347 = vadd.f32 %v255, %v1346
    %v1348 = vpop.f32.mrb[0].mxu0
    %1349 = vdwg.mxu0
    %1350 = vmatprep.subr.mxu0 %v147
    %1351 = vmatpush1.msra.mxu0 %v146
    %1352 = vmatprep.subr.mxu0 %v150
    %1353 = vmatpush1.msra.mxu0 %v149
    %1354 = vmatprep.subr.mxu0 %v153
    %1355 = vmatpush1.msra.mxu0 %v152
    %1356 = vmatprep.subr.mxu0 %v156
    %1357 = vmatpush1.msra.mxu0 %v155
    %1358 = vmatprep.subr.mxu0 %v159
    %1359 = vmatpush1.msra.mxu0 %v158
    %1360 = vmatprep.subr.mxu0 %v162
    %1361 = vmatpush1.msra.mxu0 %v161
    %1362 = vmatprep.subr.mxu0 %v165
    %1363 = vmatpush1.msra.mxu0 %v164
    %1364 = vmatprep.subr.mxu0 %v168
    %1365 = vmatpush1.msra.mxu0 %v167
    %1366 = vmatprep.subr.mxu0 %v171
    %1367 = vmatpush1.msra.mxu0 %v170
    %1368 = vmatprep.subr.mxu0 %v174
    %1369 = vmatpush1.msra.mxu0 %v173
    %1370 = vmatprep.subr.mxu0 %v177
    %1371 = vmatpush1.msra.mxu0 %v176
    %1372 = vmatprep.subr.mxu0 %v180
    %1373 = vmatpush1.msra.mxu0 %v179
    %1374 = vmatprep.subr.mxu0 %v183
    %1375 = vmatpush1.msra.mxu0 %v182
    %1376 = vmatprep.subr.mxu0 %v186
    %1377 = vmatpush1.msra.mxu0 %v185
    %1378 = vmatprep.subr.mxu0 %v189
    %1379 = vmatpush1.msra.mxu0 %v188
    %1380 = vmatprep.subr.mxu0 %v192
    %1381 = vmatpush1.msra.mxu0 %v191
    %1382 = vmatprep.subr.mxu0 0.0
    %1383 = vmatpush1.msra.mxu0 0.0
    %1384 = vmatprep.subr.mxu0 0.0
    %1385 = vmatpush1.msra.mxu0 0.0
    %1386 = vmatprep.subr.mxu0 0.0
    %1387 = vmatpush1.msra.mxu0 0.0
    %1388 = vmatprep.subr.mxu0 0.0
    %1389 = vmatpush1.msra.mxu0 0.0
    %1390 = vmatprep.subr.mxu0 0.0
    %1391 = vmatpush1.msra.mxu0 0.0
    %1392 = vmatprep.subr.mxu0 0.0
    %1393 = vmatpush1.msra.mxu0 0.0
    %1394 = vmatprep.subr.mxu0 0.0
    %1395 = vmatpush1.msra.mxu0 0.0
    %1396 = vmatprep.subr.mxu0 0.0
    %1397 = vmatpush1.msra.mxu0 0.0
    %1398 = vmatprep.subr.mxu0 0.0
    %1399 = vmatpush1.msra.mxu0 0.0
    %1400 = vmatprep.subr.mxu0 0.0
    %1401 = vmatpush1.msra.mxu0 0.0
    %1402 = vmatprep.subr.mxu0 0.0
    %1403 = vmatpush1.msra.mxu0 0.0
    %1404 = vmatprep.subr.mxu0 0.0
    %1405 = vmatpush1.msra.mxu0 0.0
    %1406 = vmatprep.subr.mxu0 0.0
    %1407 = vmatpush1.msra.mxu0 0.0
    %1408 = vmatprep.subr.mxu0 0.0
    %1409 = vmatpush1.msra.mxu0 0.0
    %1410 = vmatprep.subr.mxu0 0.0
    %1411 = vmatpush1.msra.mxu0 0.0
    %1412 = vmatprep.subr.mxu0 0.0
    %1413 = vmatpush1.msra.mxu0 0.0
    %1414 = vmatprep.mubr.f32.mxu0 0.0
    %1415 = vmatmul.mubr.f32.gmra.mrb[0].mxu0 %v1041
    %v1416 = vpop.f32.mrb[0].mxu0
    %v1417 = vadd.f32 0.0, %v1416
    %v1418 = vpop.f32.mrb[0].mxu0
    %v1419 = vadd.f32 0.0, %v1418
    %1420 = vdwg.mxu0
    %1421 = vmatprep.subr.mxu0 0.0
    %1422 = vmatpush1.msra.mxu0 %v148
    %1423 = vmatprep.subr.mxu0 0.0
    %1424 = vmatpush1.msra.mxu0 %v151
    %1425 = vmatprep.subr.mxu0 0.0
    %1426 = vmatpush1.msra.mxu0 %v154
    %1427 = vmatprep.subr.mxu0 0.0
    %1428 = vmatpush1.msra.mxu0 %v157
    %1429 = vmatprep.subr.mxu0 0.0
    %1430 = vmatpush1.msra.mxu0 %v160
    %1431 = vmatprep.subr.mxu0 0.0
    %1432 = vmatpush1.msra.mxu0 %v163
    %1433 = vmatprep.subr.mxu0 0.0
    %1434 = vmatpush1.msra.mxu0 %v166
    %1435 = vmatprep.subr.mxu0 0.0
    %1436 = vmatpush1.msra.mxu0 %v169
    %1437 = vmatprep.subr.mxu0 0.0
    %1438 = vmatpush1.msra.mxu0 %v172
    %1439 = vmatprep.subr.mxu0 0.0
    %1440 = vmatpush1.msra.mxu0 %v175
    %1441 = vmatprep.subr.mxu0 0.0
    %1442 = vmatpush1.msra.mxu0 %v178
    %1443 = vmatprep.subr.mxu0 0.0
    %1444 = vmatpush1.msra.mxu0 %v181
    %1445 = vmatprep.subr.mxu0 0.0
    %1446 = vmatpush1.msra.mxu0 %v184
    %1447 = vmatprep.subr.mxu0 0.0
    %1448 = vmatpush1.msra.mxu0 %v187
    %1449 = vmatprep.subr.mxu0 0.0
    %1450 = vmatpush1.msra.mxu0 %v190
    %1451 = vmatprep.subr.mxu0 0.0
    %1452 = vmatpush1.msra.mxu0 %v193
    %1453 = vmatprep.subr.mxu0 0.0
    %1454 = vmatpush1.msra.mxu0 0.0
    %1455 = vmatprep.subr.mxu0 0.0
    %1456 = vmatpush1.msra.mxu0 0.0
    %1457 = vmatprep.subr.mxu0 0.0
    %1458 = vmatpush1.msra.mxu0 0.0
    %1459 = vmatprep.subr.mxu0 0.0
    %1460 = vmatpush1.msra.mxu0 0.0
    %1461 = vmatprep.subr.mxu0 0.0
    %1462 = vmatpush1.msra.mxu0 0.0
    %1463 = vmatprep.subr.mxu0 0.0
    %1464 = vmatpush1.msra.mxu0 0.0
    %1465 = vmatprep.subr.mxu0 0.0
    %1466 = vmatpush1.msra.mxu0 0.0
    %1467 = vmatprep.subr.mxu0 0.0
    %1468 = vmatpush1.msra.mxu0 0.0
    %1469 = vmatprep.subr.mxu0 0.0
    %1470 = vmatpush1.msra.mxu0 0.0
    %1471 = vmatprep.subr.mxu0 0.0
    %1472 = vmatpush1.msra.mxu0 0.0
    %1473 = vmatprep.subr.mxu0 0.0
    %1474 = vmatpush1.msra.mxu0 0.0
    %1475 = vmatprep.subr.mxu0 0.0
    %1476 = vmatpush1.msra.mxu0 0.0
    %1477 = vmatprep.subr.mxu0 0.0
    %1478 = vmatpush1.msra.mxu0 0.0
    %1479 = vmatprep.subr.mxu0 0.0
    %1480 = vmatpush1.msra.mxu0 0.0
    %1481 = vmatprep.subr.mxu0 0.0
    %1482 = vmatpush1.msra.mxu0 0.0
    %1483 = vmatprep.subr.mxu0 0.0
    %1484 = vmatpush1.msra.mxu0 0.0
    %1485 = vmatprep.mubr.f32.mxu0 0.0
    %1486 = vmatmul.mubr.f32.gmra.mrb[0].mxu0 %v1041
    %v1487 = vpop.f32.mrb[0].mxu0
    %v1488 = vadd.f32 0.0, %v1487
    %v1489 = vpop.f32.mrb[0].mxu0
    %1490 = vdwg.mxu0
    %v1491 = vadd.f32 %v1276, %v1417
    %v1492 = vxor.u32 %v1491, 2147483648
    %v1493 = vmul.f32 %v1492, 1.442695
    %v1494 = vpow.pop %v1493
    %v1495 = vadd.f32 %v1494, 1.0
    %v1496 = vrcp.pop %v1495
    %v1497 = vmul.f32 1.0, %v1496
    %v1498 = vadd.f32 %v1278, %v1419
    %v1499 = vxor.u32 %v1498, 2147483648
    %v1500 = vmul.f32 %v1499, 1.442695
    %v1501 = vpow.pop %v1500
    %v1502 = vadd.f32 %v1501, 1.0
    %v1503 = vrcp.pop %v1502
    %v1504 = vmul.f32 1.0, %v1503
    %v1505 = vadd.f32 %v1488, %v271
    %v1506 = vmul.f32 %v1497, %v1505
    %v1507 = vadd.f32 %v1347, %v1506
    %v1508 = vtanh.pop %v1507
    %v1509 = vsub.f32 %v1041, %v1508
    %v1510 = vmul.f32 %v1504, %v1509
    %v1511 = vadd.f32 %v1508, %v1510
    %s1512 = scalar_lea.vmem %s13, 8
    %1513 = vst [vmem:[%s1512] sm:$0xff] %v1511
    %1514 = vmatprep.subr.mxu0 %v99
    %1515 = vmatpush1.msra.mxu0 %v98
    %1516 = vmatprep.subr.mxu0 %v102
    %1517 = vmatpush1.msra.mxu0 %v101
    %1518 = vmatprep.subr.mxu0 %v105
    %1519 = vmatpush1.msra.mxu0 %v104
    %1520 = vmatprep.subr.mxu0 %v108
    %1521 = vmatpush1.msra.mxu0 %v107
    %1522 = vmatprep.subr.mxu0 %v111
    %1523 = vmatpush1.msra.mxu0 %v110
    %1524 = vmatprep.subr.mxu0 %v114
    %1525 = vmatpush1.msra.mxu0 %v113
    %1526 = vmatprep.subr.mxu0 %v117
    %1527 = vmatpush1.msra.mxu0 %v116
    %1528 = vmatprep.subr.mxu0 %v120
    %1529 = vmatpush1.msra.mxu0 %v119
    %1530 = vmatprep.subr.mxu0 %v123
    %1531 = vmatpush1.msra.mxu0 %v122
    %1532 = vmatprep.subr.mxu0 %v126
    %1533 = vmatpush1.msra.mxu0 %v125
    %1534 = vmatprep.subr.mxu0 %v129
    %1535 = vmatpush1.msra.mxu0 %v128
    %1536 = vmatprep.subr.mxu0 %v132
    %1537 = vmatpush1.msra.mxu0 %v131
    %1538 = vmatprep.subr.mxu0 %v135
    %1539 = vmatpush1.msra.mxu0 %v134
    %1540 = vmatprep.subr.mxu0 %v138
    %1541 = vmatpush1.msra.mxu0 %v137
    %1542 = vmatprep.subr.mxu0 %v141
    %1543 = vmatpush1.msra.mxu0 %v140
    %1544 = vmatprep.subr.mxu0 %v144
    %1545 = vmatpush1.msra.mxu0 %v143
    %1546 = vmatprep.subr.mxu0 0.0
    %1547 = vmatpush1.msra.mxu0 0.0
    %1548 = vmatprep.subr.mxu0 0.0
    %1549 = vmatpush1.msra.mxu0 0.0
    %1550 = vmatprep.subr.mxu0 0.0
    %1551 = vmatpush1.msra.mxu0 0.0
    %1552 = vmatprep.subr.mxu0 0.0
    %1553 = vmatpush1.msra.mxu0 0.0
    %1554 = vmatprep.subr.mxu0 0.0
    %1555 = vmatpush1.msra.mxu0 0.0
    %1556 = vmatprep.subr.mxu0 0.0
    %1557 = vmatpush1.msra.mxu0 0.0
    %1558 = vmatprep.subr.mxu0 0.0
    %1559 = vmatpush1.msra.mxu0 0.0
    %1560 = vmatprep.subr.mxu0 0.0
    %1561 = vmatpush1.msra.mxu0 0.0
    %1562 = vmatprep.subr.mxu0 0.0
    %1563 = vmatpush1.msra.mxu0 0.0
    %1564 = vmatprep.subr.mxu0 0.0
    %1565 = vmatpush1.msra.mxu0 0.0
    %1566 = vmatprep.subr.mxu0 0.0
    %1567 = vmatpush1.msra.mxu0 0.0
    %1568 = vmatprep.subr.mxu0 0.0
    %1569 = vmatpush1.msra.mxu0 0.0
    %1570 = vmatprep.subr.mxu0 0.0
    %1571 = vmatpush1.msra.mxu0 0.0
    %1572 = vmatprep.subr.mxu0 0.0
    %1573 = vmatpush1.msra.mxu0 0.0
    %1574 = vmatprep.subr.mxu0 0.0
    %1575 = vmatpush1.msra.mxu0 0.0
    %1576 = vmatprep.subr.mxu0 0.0
    %1577 = vmatpush1.msra.mxu0 0.0
    %1578 = vmatprep.mubr.f32.mxu0 0.0
    %1579 = vmatmul.mubr.f32.gmra.mrb[0].mxu0 %v1208
    %v1580 = vpop.f32.mrb[0].mxu0
    %v1581 = vadd.f32 0.0, %v1580
    %v1582 = vpop.f32.mrb[0].mxu0
    %v1583 = vadd.f32 0.0, %v1582
    %1584 = vdwg.mxu0
    %1585 = vmatprep.subr.mxu0 0.0
    %1586 = vmatpush1.msra.mxu0 %v100
    %1587 = vmatprep.subr.mxu0 0.0
    %1588 = vmatpush1.msra.mxu0 %v103
    %1589 = vmatprep.subr.mxu0 0.0
    %1590 = vmatpush1.msra.mxu0 %v106
    %1591 = vmatprep.subr.mxu0 0.0
    %1592 = vmatpush1.msra.mxu0 %v109
    %1593 = vmatprep.subr.mxu0 0.0
    %1594 = vmatpush1.msra.mxu0 %v112
    %1595 = vmatprep.subr.mxu0 0.0
    %1596 = vmatpush1.msra.mxu0 %v115
    %1597 = vmatprep.subr.mxu0 0.0
    %1598 = vmatpush1.msra.mxu0 %v118
    %1599 = vmatprep.subr.mxu0 0.0
    %1600 = vmatpush1.msra.mxu0 %v121
    %1601 = vmatprep.subr.mxu0 0.0
    %1602 = vmatpush1.msra.mxu0 %v124
    %1603 = vmatprep.subr.mxu0 0.0
    %1604 = vmatpush1.msra.mxu0 %v127
    %1605 = vmatprep.subr.mxu0 0.0
    %1606 = vmatpush1.msra.mxu0 %v130
    %1607 = vmatprep.subr.mxu0 0.0
    %1608 = vmatpush1.msra.mxu0 %v133
    %1609 = vmatprep.subr.mxu0 0.0
    %1610 = vmatpush1.msra.mxu0 %v136
    %1611 = vmatprep.subr.mxu0 0.0
    %1612 = vmatpush1.msra.mxu0 %v139
    %1613 = vmatprep.subr.mxu0 0.0
    %1614 = vmatpush1.msra.mxu0 %v142
    %1615 = vmatprep.subr.mxu0 0.0
    %1616 = vmatpush1.msra.mxu0 %v145
    %1617 = vmatprep.subr.mxu0 0.0
    %1618 = vmatpush1.msra.mxu0 0.0
    %1619 = vmatprep.subr.mxu0 0.0
    %1620 = vmatpush1.msra.mxu0 0.0
    %1621 = vmatprep.subr.mxu0 0.0
    %1622 = vmatpush1.msra.mxu0 0.0
    %1623 = vmatprep.subr.mxu0 0.0
    %1624 = vmatpush1.msra.mxu0 0.0
    %1625 = vmatprep.subr.mxu0 0.0
    %1626 = vmatpush1.msra.mxu0 0.0
    %1627 = vmatprep.subr.mxu0 0.0
    %1628 = vmatpush1.msra.mxu0 0.0
    %1629 = vmatprep.subr.mxu0 0.0
    %1630 = vmatpush1.msra.mxu0 0.0
    %1631 = vmatprep.subr.mxu0 0.0
    %1632 = vmatpush1.msra.mxu0 0.0
    %1633 = vmatprep.subr.mxu0 0.0
    %1634 = vmatpush1.msra.mxu0 0.0
    %1635 = vmatprep.subr.mxu0 0.0
    %1636 = vmatpush1.msra.mxu0 0.0
    %1637 = vmatprep.subr.mxu0 0.0
    %1638 = vmatpush1.msra.mxu0 0.0
    %1639 = vmatprep.subr.mxu0 0.0
    %1640 = vmatpush1.msra.mxu0 0.0
    %1641 = vmatprep.subr.mxu0 0.0
    %1642 = vmatpush1.msra.mxu0 0.0
    %1643 = vmatprep.subr.mxu0 0.0
    %1644 = vmatpush1.msra.mxu0 0.0
    %1645 = vmatprep.subr.mxu0 0.0
    %1646 = vmatpush1.msra.mxu0 0.0
    %1647 = vmatprep.subr.mxu0 0.0
    %1648 = vmatpush1.msra.mxu0 0.0
    %1649 = vmatprep.mubr.f32.mxu0 0.0
    %1650 = vmatmul.mubr.f32.gmra.mrb[0].mxu0 %v1208
    %v1651 = vpop.f32.mrb[0].mxu0
    %v1652 = vadd.f32 0.0, %v1651
    %v1653 = vpop.f32.mrb[0].mxu0
    %1654 = vdwg.mxu0
    %s1655 = scalar_lea.vmem [#allocation2], 48
    %v1656 = vld [vmem:[%s1655] sm:$0xff]
    %v1657 = vld [vmem:[%s1655 + $0x8] sm:$0xff]
    %v1658 = vld [vmem:[%s1655 + $0x10] sm:$0xff]
    %v1659 = vadd.f32 %v1656, %v1581
    %v1660 = vxor.u32 %v1659, 2147483648
    %v1661 = vmul.f32 %v1660, 1.442695
    %v1662 = vpow.pop %v1661
    %v1663 = vadd.f32 %v1662, 1.0
    %v1664 = vrcp.pop %v1663
    %v1665 = vmul.f32 1.0, %v1664
    %v1666 = vadd.f32 %v1657, %v1583
    %v1667 = vxor.u32 %v1666, 2147483648
    %v1668 = vmul.f32 %v1667, 1.442695
    %v1669 = vpow.pop %v1668
    %v1670 = vadd.f32 %v1669, 1.0
    %v1671 = vrcp.pop %v1670
    %v1672 = vmul.f32 1.0, %v1671
    %v1673 = vadd.f32 %v1652, %v264
    %v1674 = vmul.f32 %v1665, %v1673
    %v1675 = vadd.f32 %v1658, %v1674
    %v1676 = vtanh.pop %v1675
    %v1677 = vsub.f32 %v1208, %v1676
    %v1678 = vmul.f32 %v1672, %v1677
    %v1679 = vadd.f32 %v1676, %v1678
    %1680 = vmatprep.subr.mxu0 %v195
    %1681 = vmatpush1.msra.mxu0 %v194
    %1682 = vmatprep.subr.mxu0 %v198
    %1683 = vmatpush1.msra.mxu0 %v197
    %1684 = vmatprep.subr.mxu0 %v201
    %1685 = vmatpush1.msra.mxu0 %v200
    %1686 = vmatprep.subr.mxu0 %v204
    %1687 = vmatpush1.msra.mxu0 %v203
    %1688 = vmatprep.subr.mxu0 %v207
    %1689 = vmatpush1.msra.mxu0 %v206
    %1690 = vmatprep.subr.mxu0 %v210
    %1691 = vmatpush1.msra.mxu0 %v209
    %1692 = vmatprep.subr.mxu0 %v213
    %1693 = vmatpush1.msra.mxu0 %v212
    %1694 = vmatprep.subr.mxu0 %v216
    %1695 = vmatpush1.msra.mxu0 %v215
    %1696 = vmatprep.subr.mxu0 %v219
    %1697 = vmatpush1.msra.mxu0 %v218
    %1698 = vmatprep.subr.mxu0 %v222
    %1699 = vmatpush1.msra.mxu0 %v221
    %1700 = vmatprep.subr.mxu0 %v225
    %1701 = vmatpush1.msra.mxu0 %v224
    %1702 = vmatprep.subr.mxu0 %v228
    %1703 = vmatpush1.msra.mxu0 %v227
    %1704 = vmatprep.subr.mxu0 %v231
    %1705 = vmatpush1.msra.mxu0 %v230
    %1706 = vmatprep.subr.mxu0 %v234
    %1707 = vmatpush1.msra.mxu0 %v233
    %1708 = vmatprep.subr.mxu0 %v237
    %1709 = vmatpush1.msra.mxu0 %v236
    %1710 = vmatprep.subr.mxu0 %v240
    %1711 = vmatpush1.msra.mxu0 %v239
    %1712 = vmatprep.subr.mxu0 0.0
    %1713 = vmatpush1.msra.mxu0 0.0
    %1714 = vmatprep.subr.mxu0 0.0
    %1715 = vmatpush1.msra.mxu0 0.0
    %1716 = vmatprep.subr.mxu0 0.0
    %1717 = vmatpush1.msra.mxu0 0.0
    %1718 = vmatprep.subr.mxu0 0.0
    %1719 = vmatpush1.msra.mxu0 0.0
    %1720 = vmatprep.subr.mxu0 0.0
    %1721 = vmatpush1.msra.mxu0 0.0
    %1722 = vmatprep.subr.mxu0 0.0
    %1723 = vmatpush1.msra.mxu0 0.0
    %1724 = vmatprep.subr.mxu0 0.0
    %1725 = vmatpush1.msra.mxu0 0.0
    %1726 = vmatprep.subr.mxu0 0.0
    %1727 = vmatpush1.msra.mxu0 0.0
    %1728 = vmatprep.subr.mxu0 0.0
    %1729 = vmatpush1.msra.mxu0 0.0
    %1730 = vmatprep.subr.mxu0 0.0
    %1731 = vmatpush1.msra.mxu0 0.0
    %1732 = vmatprep.subr.mxu0 0.0
    %1733 = vmatpush1.msra.mxu0 0.0
    %1734 = vmatprep.subr.mxu0 0.0
    %1735 = vmatpush1.msra.mxu0 0.0
    %1736 = vmatprep.subr.mxu0 0.0
    %1737 = vmatpush1.msra.mxu0 0.0
    %1738 = vmatprep.subr.mxu0 0.0
    %1739 = vmatpush1.msra.mxu0 0.0
    %1740 = vmatprep.subr.mxu0 0.0
    %1741 = vmatpush1.msra.mxu0 0.0
    %1742 = vmatprep.subr.mxu0 0.0
    %1743 = vmatpush1.msra.mxu0 0.0
    %1744 = vmatprep.mubr.f32.mxu0 0.0
    %1745 = vmatmul.mubr.f32.gmra.mrb[0].mxu0 %v1679
    %v1746 = vpop.f32.mrb[0].mxu0
    %v1747 = vadd.f32 %v247, %v1746
    %v1748 = vpop.f32.mrb[0].mxu0
    %v1749 = vadd.f32 %v251, %v1748
    %1750 = vdwg.mxu0
    %1751 = vmatprep.subr.mxu0 0.0
    %1752 = vmatpush1.msra.mxu0 %v196
    %1753 = vmatprep.subr.mxu0 0.0
    %1754 = vmatpush1.msra.mxu0 %v199
    %1755 = vmatprep.subr.mxu0 0.0
    %1756 = vmatpush1.msra.mxu0 %v202
    %1757 = vmatprep.subr.mxu0 0.0
    %1758 = vmatpush1.msra.mxu0 %v205
    %1759 = vmatprep.subr.mxu0 0.0
    %1760 = vmatpush1.msra.mxu0 %v208
    %1761 = vmatprep.subr.mxu0 0.0
    %1762 = vmatpush1.msra.mxu0 %v211
    %1763 = vmatprep.subr.mxu0 0.0
    %1764 = vmatpush1.msra.mxu0 %v214
    %1765 = vmatprep.subr.mxu0 0.0
    %1766 = vmatpush1.msra.mxu0 %v217
    %1767 = vmatprep.subr.mxu0 0.0
    %1768 = vmatpush1.msra.mxu0 %v220
    %1769 = vmatprep.subr.mxu0 0.0
    %1770 = vmatpush1.msra.mxu0 %v223
    %1771 = vmatprep.subr.mxu0 0.0
    %1772 = vmatpush1.msra.mxu0 %v226
    %1773 = vmatprep.subr.mxu0 0.0
    %1774 = vmatpush1.msra.mxu0 %v229
    %1775 = vmatprep.subr.mxu0 0.0
    %1776 = vmatpush1.msra.mxu0 %v232
    %1777 = vmatprep.subr.mxu0 0.0
    %1778 = vmatpush1.msra.mxu0 %v235
    %1779 = vmatprep.subr.mxu0 0.0
    %1780 = vmatpush1.msra.mxu0 %v238
    %1781 = vmatprep.subr.mxu0 0.0
    %1782 = vmatpush1.msra.mxu0 %v241
    %1783 = vmatprep.subr.mxu0 0.0
    %1784 = vmatpush1.msra.mxu0 0.0
    %1785 = vmatprep.subr.mxu0 0.0
    %1786 = vmatpush1.msra.mxu0 0.0
    %1787 = vmatprep.subr.mxu0 0.0
    %1788 = vmatpush1.msra.mxu0 0.0
    %1789 = vmatprep.subr.mxu0 0.0
    %1790 = vmatpush1.msra.mxu0 0.0
    %1791 = vmatprep.subr.mxu0 0.0
    %1792 = vmatpush1.msra.mxu0 0.0
    %1793 = vmatprep.subr.mxu0 0.0
    %1794 = vmatpush1.msra.mxu0 0.0
    %1795 = vmatprep.subr.mxu0 0.0
    %1796 = vmatpush1.msra.mxu0 0.0
    %1797 = vmatprep.subr.mxu0 0.0
    %1798 = vmatpush1.msra.mxu0 0.0
    %1799 = vmatprep.subr.mxu0 0.0
    %1800 = vmatpush1.msra.mxu0 0.0
    %1801 = vmatprep.subr.mxu0 0.0
    %1802 = vmatpush1.msra.mxu0 0.0
    %1803 = vmatprep.subr.mxu0 0.0
    %1804 = vmatpush1.msra.mxu0 0.0
    %1805 = vmatprep.subr.mxu0 0.0
    %1806 = vmatpush1.msra.mxu0 0.0
    %1807 = vmatprep.subr.mxu0 0.0
    %1808 = vmatpush1.msra.mxu0 0.0
    %1809 = vmatprep.subr.mxu0 0.0
    %1810 = vmatpush1.msra.mxu0 0.0
    %1811 = vmatprep.subr.mxu0 0.0
    %1812 = vmatpush1.msra.mxu0 0.0
    %1813 = vmatprep.subr.mxu0 0.0
    %1814 = vmatpush1.msra.mxu0 0.0
    %1815 = vmatprep.mubr.f32.mxu0 0.0
    %1816 = vmatmul.mubr.f32.gmra.mrb[0].mxu0 %v1679
    %v1817 = vpop.f32.mrb[0].mxu0
    %v1818 = vadd.f32 %v255, %v1817
    %v1819 = vpop.f32.mrb[0].mxu0
    %1820 = vdwg.mxu0
    %1821 = vmatprep.subr.mxu0 %v147
    %1822 = vmatpush1.msra.mxu0 %v146
    %1823 = vmatprep.subr.mxu0 %v150
    %1824 = vmatpush1.msra.mxu0 %v149
    %1825 = vmatprep.subr.mxu0 %v153
    %1826 = vmatpush1.msra.mxu0 %v152
    %1827 = vmatprep.subr.mxu0 %v156
    %1828 = vmatpush1.msra.mxu0 %v155
    %1829 = vmatprep.subr.mxu0 %v159
    %1830 = vmatpush1.msra.mxu0 %v158
    %1831 = vmatprep.subr.mxu0 %v162
    %1832 = vmatpush1.msra.mxu0 %v161
    %1833 = vmatprep.subr.mxu0 %v165
    %1834 = vmatpush1.msra.mxu0 %v164
    %1835 = vmatprep.subr.mxu0 %v168
    %1836 = vmatpush1.msra.mxu0 %v167
    %1837 = vmatprep.subr.mxu0 %v171
    %1838 = vmatpush1.msra.mxu0 %v170
    %1839 = vmatprep.subr.mxu0 %v174
    %1840 = vmatpush1.msra.mxu0 %v173
    %1841 = vmatprep.subr.mxu0 %v177
    %1842 = vmatpush1.msra.mxu0 %v176
    %1843 = vmatprep.subr.mxu0 %v180
    %1844 = vmatpush1.msra.mxu0 %v179
    %1845 = vmatprep.subr.mxu0 %v183
    %1846 = vmatpush1.msra.mxu0 %v182
    %1847 = vmatprep.subr.mxu0 %v186
    %1848 = vmatpush1.msra.mxu0 %v185
    %1849 = vmatprep.subr.mxu0 %v189
    %1850 = vmatpush1.msra.mxu0 %v188
    %1851 = vmatprep.subr.mxu0 %v192
    %1852 = vmatpush1.msra.mxu0 %v191
    %1853 = vmatprep.subr.mxu0 0.0
    %1854 = vmatpush1.msra.mxu0 0.0
    %1855 = vmatprep.subr.mxu0 0.0
    %1856 = vmatpush1.msra.mxu0 0.0
    %1857 = vmatprep.subr.mxu0 0.0
    %1858 = vmatpush1.msra.mxu0 0.0
    %1859 = vmatprep.subr.mxu0 0.0
    %1860 = vmatpush1.msra.mxu0 0.0
    %1861 = vmatprep.subr.mxu0 0.0
    %1862 = vmatpush1.msra.mxu0 0.0
    %1863 = vmatprep.subr.mxu0 0.0
    %1864 = vmatpush1.msra.mxu0 0.0
    %1865 = vmatprep.subr.mxu0 0.0
    %1866 = vmatpush1.msra.mxu0 0.0
    %1867 = vmatprep.subr.mxu0 0.0
    %1868 = vmatpush1.msra.mxu0 0.0
    %1869 = vmatprep.subr.mxu0 0.0
    %1870 = vmatpush1.msra.mxu0 0.0
    %1871 = vmatprep.subr.mxu0 0.0
    %1872 = vmatpush1.msra.mxu0 0.0
    %1873 = vmatprep.subr.mxu0 0.0
    %1874 = vmatpush1.msra.mxu0 0.0
    %1875 = vmatprep.subr.mxu0 0.0
    %1876 = vmatpush1.msra.mxu0 0.0
    %1877 = vmatprep.subr.mxu0 0.0
    %1878 = vmatpush1.msra.mxu0 0.0
    %1879 = vmatprep.subr.mxu0 0.0
    %1880 = vmatpush1.msra.mxu0 0.0
    %1881 = vmatprep.subr.mxu0 0.0
    %1882 = vmatpush1.msra.mxu0 0.0
    %1883 = vmatprep.subr.mxu0 0.0
    %1884 = vmatpush1.msra.mxu0 0.0
    %1885 = vmatprep.mubr.f32.mxu0 0.0
    %1886 = vmatmul.mubr.f32.gmra.mrb[0].mxu0 %v1511
    %v1887 = vpop.f32.mrb[0].mxu0
    %v1888 = vadd.f32 0.0, %v1887
    %v1889 = vpop.f32.mrb[0].mxu0
    %v1890 = vadd.f32 0.0, %v1889
    %1891 = vdwg.mxu0
    %1892 = vmatprep.subr.mxu0 0.0
    %1893 = vmatpush1.msra.mxu0 %v148
    %1894 = vmatprep.subr.mxu0 0.0
    %1895 = vmatpush1.msra.mxu0 %v151
    %1896 = vmatprep.subr.mxu0 0.0
    %1897 = vmatpush1.msra.mxu0 %v154
    %1898 = vmatprep.subr.mxu0 0.0
    %1899 = vmatpush1.msra.mxu0 %v157
    %1900 = vmatprep.subr.mxu0 0.0
    %1901 = vmatpush1.msra.mxu0 %v160
    %1902 = vmatprep.subr.mxu0 0.0
    %1903 = vmatpush1.msra.mxu0 %v163
    %1904 = vmatprep.subr.mxu0 0.0
    %1905 = vmatpush1.msra.mxu0 %v166
    %1906 = vmatprep.subr.mxu0 0.0
    %1907 = vmatpush1.msra.mxu0 %v169
    %1908 = vmatprep.subr.mxu0 0.0
    %1909 = vmatpush1.msra.mxu0 %v172
    %1910 = vmatprep.subr.mxu0 0.0
    %1911 = vmatpush1.msra.mxu0 %v175
    %1912 = vmatprep.subr.mxu0 0.0
    %1913 = vmatpush1.msra.mxu0 %v178
    %1914 = vmatprep.subr.mxu0 0.0
    %1915 = vmatpush1.msra.mxu0 %v181
    %1916 = vmatprep.subr.mxu0 0.0
    %1917 = vmatpush1.msra.mxu0 %v184
    %1918 = vmatprep.subr.mxu0 0.0
    %1919 = vmatpush1.msra.mxu0 %v187
    %1920 = vmatprep.subr.mxu0 0.0
    %1921 = vmatpush1.msra.mxu0 %v190
    %1922 = vmatprep.subr.mxu0 0.0
    %1923 = vmatpush1.msra.mxu0 %v193
    %1924 = vmatprep.subr.mxu0 0.0
    %1925 = vmatpush1.msra.mxu0 0.0
    %1926 = vmatprep.subr.mxu0 0.0
    %1927 = vmatpush1.msra.mxu0 0.0
    %1928 = vmatprep.subr.mxu0 0.0
    %1929 = vmatpush1.msra.mxu0 0.0
    %1930 = vmatprep.subr.mxu0 0.0
    %1931 = vmatpush1.msra.mxu0 0.0
    %1932 = vmatprep.subr.mxu0 0.0
    %1933 = vmatpush1.msra.mxu0 0.0
    %1934 = vmatprep.subr.mxu0 0.0
    %1935 = vmatpush1.msra.mxu0 0.0
    %1936 = vmatprep.subr.mxu0 0.0
    %1937 = vmatpush1.msra.mxu0 0.0
    %1938 = vmatprep.subr.mxu0 0.0
    %1939 = vmatpush1.msra.mxu0 0.0
    %1940 = vmatprep.subr.mxu0 0.0
    %1941 = vmatpush1.msra.mxu0 0.0
    %1942 = vmatprep.subr.mxu0 0.0
    %1943 = vmatpush1.msra.mxu0 0.0
    %1944 = vmatprep.subr.mxu0 0.0
    %1945 = vmatpush1.msra.mxu0 0.0
    %1946 = vmatprep.subr.mxu0 0.0
    %1947 = vmatpush1.msra.mxu0 0.0
    %1948 = vmatprep.subr.mxu0 0.0
    %1949 = vmatpush1.msra.mxu0 0.0
    %1950 = vmatprep.subr.mxu0 0.0
    %1951 = vmatpush1.msra.mxu0 0.0
    %1952 = vmatprep.subr.mxu0 0.0
    %1953 = vmatpush1.msra.mxu0 0.0
    %1954 = vmatprep.subr.mxu0 0.0
    %1955 = vmatpush1.msra.mxu0 0.0
    %1956 = vmatprep.mubr.f32.mxu0 0.0
    %1957 = vmatmul.mubr.f32.gmra.mrb[0].mxu0 %v1511
    %v1958 = vpop.f32.mrb[0].mxu0
    %v1959 = vadd.f32 0.0, %v1958
    %v1960 = vpop.f32.mrb[0].mxu0
    %1961 = vdwg.mxu0
    %v1962 = vadd.f32 %v1747, %v1888
    %v1963 = vxor.u32 %v1962, 2147483648
    %v1964 = vmul.f32 %v1963, 1.442695
    %v1965 = vpow.pop %v1964
    %v1966 = vadd.f32 %v1965, 1.0
    %v1967 = vrcp.pop %v1966
    %v1968 = vmul.f32 1.0, %v1967
    %v1969 = vadd.f32 %v1749, %v1890
    %v1970 = vxor.u32 %v1969, 2147483648
    %v1971 = vmul.f32 %v1970, 1.442695
    %v1972 = vpow.pop %v1971
    %v1973 = vadd.f32 %v1972, 1.0
    %v1974 = vrcp.pop %v1973
    %v1975 = vmul.f32 1.0, %v1974
    %v1976 = vadd.f32 %v1959, %v271
    %v1977 = vmul.f32 %v1968, %v1976
    %v1978 = vadd.f32 %v1818, %v1977
    %v1979 = vtanh.pop %v1978
    %v1980 = vsub.f32 %v1511, %v1979
    %v1981 = vmul.f32 %v1975, %v1980
    %v1982 = vadd.f32 %v1979, %v1981
    %s1983 = scalar_lea.vmem %s13, 16
    %1984 = vst [vmem:[%s1983] sm:$0xff] %v1982
    %1985 = vmatprep.subr.mxu0 %v99
    %1986 = vmatpush1.msra.mxu0 %v98
    %1987 = vmatprep.subr.mxu0 %v102
    %1988 = vmatpush1.msra.mxu0 %v101
    %1989 = vmatprep.subr.mxu0 %v105
    %1990 = vmatpush1.msra.mxu0 %v104
    %1991 = vmatprep.subr.mxu0 %v108
    %1992 = vmatpush1.msra.mxu0 %v107
    %1993 = vmatprep.subr.mxu0 %v111
    %1994 = vmatpush1.msra.mxu0 %v110
    %1995 = vmatprep.subr.mxu0 %v114
    %1996 = vmatpush1.msra.mxu0 %v113
    %1997 = vmatprep.subr.mxu0 %v117
    %1998 = vmatpush1.msra.mxu0 %v116
    %1999 = vmatprep.subr.mxu0 %v120
    %2000 = vmatpush1.msra.mxu0 %v119
    %2001 = vmatprep.subr.mxu0 %v123
    %2002 = vmatpush1.msra.mxu0 %v122
    %2003 = vmatprep.subr.mxu0 %v126
    %2004 = vmatpush1.msra.mxu0 %v125
    %2005 = vmatprep.subr.mxu0 %v129
    %2006 = vmatpush1.msra.mxu0 %v128
    %2007 = vmatprep.subr.mxu0 %v132
    %2008 = vmatpush1.msra.mxu0 %v131
    %2009 = vmatprep.subr.mxu0 %v135
    %2010 = vmatpush1.msra.mxu0 %v134
    %2011 = vmatprep.subr.mxu0 %v138
    %2012 = vmatpush1.msra.mxu0 %v137
    %2013 = vmatprep.subr.mxu0 %v141
    %2014 = vmatpush1.msra.mxu0 %v140
    %2015 = vmatprep.subr.mxu0 %v144
    %2016 = vmatpush1.msra.mxu0 %v143
    %2017 = vmatprep.subr.mxu0 0.0
    %2018 = vmatpush1.msra.mxu0 0.0
    %2019 = vmatprep.subr.mxu0 0.0
    %2020 = vmatpush1.msra.mxu0 0.0
    %2021 = vmatprep.subr.mxu0 0.0
    %2022 = vmatpush1.msra.mxu0 0.0
    %2023 = vmatprep.subr.mxu0 0.0
    %2024 = vmatpush1.msra.mxu0 0.0
    %2025 = vmatprep.subr.mxu0 0.0
    %2026 = vmatpush1.msra.mxu0 0.0
    %2027 = vmatprep.subr.mxu0 0.0
    %2028 = vmatpush1.msra.mxu0 0.0
    %2029 = vmatprep.subr.mxu0 0.0
    %2030 = vmatpush1.msra.mxu0 0.0
    %2031 = vmatprep.subr.mxu0 0.0
    %2032 = vmatpush1.msra.mxu0 0.0
    %2033 = vmatprep.subr.mxu0 0.0
    %2034 = vmatpush1.msra.mxu0 0.0
    %2035 = vmatprep.subr.mxu0 0.0
    %2036 = vmatpush1.msra.mxu0 0.0
    %2037 = vmatprep.subr.mxu0 0.0
    %2038 = vmatpush1.msra.mxu0 0.0
    %2039 = vmatprep.subr.mxu0 0.0
    %2040 = vmatpush1.msra.mxu0 0.0
    %2041 = vmatprep.subr.mxu0 0.0
    %2042 = vmatpush1.msra.mxu0 0.0
    %2043 = vmatprep.subr.mxu0 0.0
    %2044 = vmatpush1.msra.mxu0 0.0
    %2045 = vmatprep.subr.mxu0 0.0
    %2046 = vmatpush1.msra.mxu0 0.0
    %2047 = vmatprep.subr.mxu0 0.0
    %2048 = vmatpush1.msra.mxu0 0.0
    %2049 = vmatprep.mubr.f32.mxu0 0.0
    %2050 = vmatmul.mubr.f32.gmra.mrb[0].mxu0 %v1679
    %v2051 = vpop.f32.mrb[0].mxu0
    %v2052 = vadd.f32 0.0, %v2051
    %v2053 = vpop.f32.mrb[0].mxu0
    %v2054 = vadd.f32 0.0, %v2053
    %2055 = vdwg.mxu0
    %2056 = vmatprep.subr.mxu0 0.0
    %2057 = vmatpush1.msra.mxu0 %v100
    %2058 = vmatprep.subr.mxu0 0.0
    %2059 = vmatpush1.msra.mxu0 %v103
    %2060 = vmatprep.subr.mxu0 0.0
    %2061 = vmatpush1.msra.mxu0 %v106
    %2062 = vmatprep.subr.mxu0 0.0
    %2063 = vmatpush1.msra.mxu0 %v109
    %2064 = vmatprep.subr.mxu0 0.0
    %2065 = vmatpush1.msra.mxu0 %v112
    %2066 = vmatprep.subr.mxu0 0.0
    %2067 = vmatpush1.msra.mxu0 %v115
    %2068 = vmatprep.subr.mxu0 0.0
    %2069 = vmatpush1.msra.mxu0 %v118
    %2070 = vmatprep.subr.mxu0 0.0
    %2071 = vmatpush1.msra.mxu0 %v121
    %2072 = vmatprep.subr.mxu0 0.0
    %2073 = vmatpush1.msra.mxu0 %v124
    %2074 = vmatprep.subr.mxu0 0.0
    %2075 = vmatpush1.msra.mxu0 %v127
    %2076 = vmatprep.subr.mxu0 0.0
    %2077 = vmatpush1.msra.mxu0 %v130
    %2078 = vmatprep.subr.mxu0 0.0
    %2079 = vmatpush1.msra.mxu0 %v133
    %2080 = vmatprep.subr.mxu0 0.0
    %2081 = vmatpush1.msra.mxu0 %v136
    %2082 = vmatprep.subr.mxu0 0.0
    %2083 = vmatpush1.msra.mxu0 %v139
    %2084 = vmatprep.subr.mxu0 0.0
    %2085 = vmatpush1.msra.mxu0 %v142
    %2086 = vmatprep.subr.mxu0 0.0
    %2087 = vmatpush1.msra.mxu0 %v145
    %2088 = vmatprep.subr.mxu0 0.0
    %2089 = vmatpush1.msra.mxu0 0.0
    %2090 = vmatprep.subr.mxu0 0.0
    %2091 = vmatpush1.msra.mxu0 0.0
    %2092 = vmatprep.subr.mxu0 0.0
    %2093 = vmatpush1.msra.mxu0 0.0
    %2094 = vmatprep.subr.mxu0 0.0
    %2095 = vmatpush1.msra.mxu0 0.0
    %2096 = vmatprep.subr.mxu0 0.0
    %2097 = vmatpush1.msra.mxu0 0.0
    %2098 = vmatprep.subr.mxu0 0.0
    %2099 = vmatpush1.msra.mxu0 0.0
    %2100 = vmatprep.subr.mxu0 0.0
    %2101 = vmatpush1.msra.mxu0 0.0
    %2102 = vmatprep.subr.mxu0 0.0
    %2103 = vmatpush1.msra.mxu0 0.0
    %2104 = vmatprep.subr.mxu0 0.0
    %2105 = vmatpush1.msra.mxu0 0.0
    %2106 = vmatprep.subr.mxu0 0.0
    %2107 = vmatpush1.msra.mxu0 0.0
    %2108 = vmatprep.subr.mxu0 0.0
    %2109 = vmatpush1.msra.mxu0 0.0
    %2110 = vmatprep.subr.mxu0 0.0
    %2111 = vmatpush1.msra.mxu0 0.0
    %2112 = vmatprep.subr.mxu0 0.0
    %2113 = vmatpush1.msra.mxu0 0.0
    %2114 = vmatprep.subr.mxu0 0.0
    %2115 = vmatpush1.msra.mxu0 0.0
    %2116 = vmatprep.subr.mxu0 0.0
    %2117 = vmatpush1.msra.mxu0 0.0
    %2118 = vmatprep.subr.mxu0 0.0
    %2119 = vmatpush1.msra.mxu0 0.0
    %2120 = vmatprep.mubr.f32.mxu0 0.0
    %2121 = vmatmul.mubr.f32.gmra.mrb[0].mxu0 %v1679
    %v2122 = vpop.f32.mrb[0].mxu0
    %v2123 = vadd.f32 0.0, %v2122
    %v2124 = vpop.f32.mrb[0].mxu0
    %2125 = vdwg.mxu0
    %s2126 = scalar_lea.vmem [#allocation2], 72
    %v2127 = vld [vmem:[%s2126] sm:$0xff]
    %v2128 = vld [vmem:[%s2126 + $0x8] sm:$0xff]
    %v2129 = vld [vmem:[%s2126 + $0x10] sm:$0xff]
    %v2130 = vadd.f32 %v2127, %v2052
    %v2131 = vxor.u32 %v2130, 2147483648
    %v2132 = vmul.f32 %v2131, 1.442695
    %v2133 = vpow.pop %v2132
    %v2134 = vadd.f32 %v2133, 1.0
    %v2135 = vrcp.pop %v2134
    %v2136 = vmul.f32 1.0, %v2135
    %v2137 = vadd.f32 %v2128, %v2054
    %v2138 = vxor.u32 %v2137, 2147483648
    %v2139 = vmul.f32 %v2138, 1.442695
    %v2140 = vpow.pop %v2139
    %v2141 = vadd.f32 %v2140, 1.0
    %v2142 = vrcp.pop %v2141
    %v2143 = vmul.f32 1.0, %v2142
    %v2144 = vadd.f32 %v2123, %v264
    %v2145 = vmul.f32 %v2136, %v2144
    %v2146 = vadd.f32 %v2129, %v2145
    %v2147 = vtanh.pop %v2146
    %v2148 = vsub.f32 %v1679, %v2147
    %v2149 = vmul.f32 %v2143, %v2148
    %v2150 = vadd.f32 %v2147, %v2149
    %2151 = vmatprep.subr.mxu0 %v195
    %2152 = vmatpush1.msra.mxu0 %v194
    %2153 = vmatprep.subr.mxu0 %v198
    %2154 = vmatpush1.msra.mxu0 %v197
    %2155 = vmatprep.subr.mxu0 %v201
    %2156 = vmatpush1.msra.mxu0 %v200
    %2157 = vmatprep.subr.mxu0 %v204
    %2158 = vmatpush1.msra.mxu0 %v203
    %2159 = vmatprep.subr.mxu0 %v207
    %2160 = vmatpush1.msra.mxu0 %v206
    %2161 = vmatprep.subr.mxu0 %v210
    %2162 = vmatpush1.msra.mxu0 %v209
    %2163 = vmatprep.subr.mxu0 %v213
    %2164 = vmatpush1.msra.mxu0 %v212
    %2165 = vmatprep.subr.mxu0 %v216
    %2166 = vmatpush1.msra.mxu0 %v215
    %2167 = vmatprep.subr.mxu0 %v219
    %2168 = vmatpush1.msra.mxu0 %v218
    %2169 = vmatprep.subr.mxu0 %v222
    %2170 = vmatpush1.msra.mxu0 %v221
    %2171 = vmatprep.subr.mxu0 %v225
    %2172 = vmatpush1.msra.mxu0 %v224
    %2173 = vmatprep.subr.mxu0 %v228
    %2174 = vmatpush1.msra.mxu0 %v227
    %2175 = vmatprep.subr.mxu0 %v231
    %2176 = vmatpush1.msra.mxu0 %v230
    %2177 = vmatprep.subr.mxu0 %v234
    %2178 = vmatpush1.msra.mxu0 %v233
    %2179 = vmatprep.subr.mxu0 %v237
    %2180 = vmatpush1.msra.mxu0 %v236
    %2181 = vmatprep.subr.mxu0 %v240
    %2182 = vmatpush1.msra.mxu0 %v239
    %2183 = vmatprep.subr.mxu0 0.0
    %2184 = vmatpush1.msra.mxu0 0.0
    %2185 = vmatprep.subr.mxu0 0.0
    %2186 = vmatpush1.msra.mxu0 0.0
    %2187 = vmatprep.subr.mxu0 0.0
    %2188 = vmatpush1.msra.mxu0 0.0
    %2189 = vmatprep.subr.mxu0 0.0
    %2190 = vmatpush1.msra.mxu0 0.0
    %2191 = vmatprep.subr.mxu0 0.0
    %2192 = vmatpush1.msra.mxu0 0.0
    %2193 = vmatprep.subr.mxu0 0.0
    %2194 = vmatpush1.msra.mxu0 0.0
    %2195 = vmatprep.subr.mxu0 0.0
    %2196 = vmatpush1.msra.mxu0 0.0
    %2197 = vmatprep.subr.mxu0 0.0
    %2198 = vmatpush1.msra.mxu0 0.0
    %2199 = vmatprep.subr.mxu0 0.0
    %2200 = vmatpush1.msra.mxu0 0.0
    %2201 = vmatprep.subr.mxu0 0.0
    %2202 = vmatpush1.msra.mxu0 0.0
    %2203 = vmatprep.subr.mxu0 0.0
    %2204 = vmatpush1.msra.mxu0 0.0
    %2205 = vmatprep.subr.mxu0 0.0
    %2206 = vmatpush1.msra.mxu0 0.0
    %2207 = vmatprep.subr.mxu0 0.0
    %2208 = vmatpush1.msra.mxu0 0.0
    %2209 = vmatprep.subr.mxu0 0.0
    %2210 = vmatpush1.msra.mxu0 0.0
    %2211 = vmatprep.subr.mxu0 0.0
    %2212 = vmatpush1.msra.mxu0 0.0
    %2213 = vmatprep.subr.mxu0 0.0
    %2214 = vmatpush1.msra.mxu0 0.0
    %2215 = vmatprep.mubr.f32.mxu0 0.0
    %2216 = vmatmul.mubr.f32.gmra.mrb[0].mxu0 %v2150
    %v2217 = vpop.f32.mrb[0].mxu0
    %v2218 = vadd.f32 %v247, %v2217
    %v2219 = vpop.f32.mrb[0].mxu0
    %v2220 = vadd.f32 %v251, %v2219
    %2221 = vdwg.mxu0
    %2222 = vmatprep.subr.mxu0 0.0
    %2223 = vmatpush1.msra.mxu0 %v196
    %2224 = vmatprep.subr.mxu0 0.0
    %2225 = vmatpush1.msra.mxu0 %v199
    %2226 = vmatprep.subr.mxu0 0.0
    %2227 = vmatpush1.msra.mxu0 %v202
    %2228 = vmatprep.subr.mxu0 0.0
    %2229 = vmatpush1.msra.mxu0 %v205
    %2230 = vmatprep.subr.mxu0 0.0
    %2231 = vmatpush1.msra.mxu0 %v208
    %2232 = vmatprep.subr.mxu0 0.0
    %2233 = vmatpush1.msra.mxu0 %v211
    %2234 = vmatprep.subr.mxu0 0.0
    %2235 = vmatpush1.msra.mxu0 %v214
    %2236 = vmatprep.subr.mxu0 0.0
    %2237 = vmatpush1.msra.mxu0 %v217
    %2238 = vmatprep.subr.mxu0 0.0
    %2239 = vmatpush1.msra.mxu0 %v220
    %2240 = vmatprep.subr.mxu0 0.0
    %2241 = vmatpush1.msra.mxu0 %v223
    %2242 = vmatprep.subr.mxu0 0.0
    %2243 = vmatpush1.msra.mxu0 %v226
    %2244 = vmatprep.subr.mxu0 0.0
    %2245 = vmatpush1.msra.mxu0 %v229
    %2246 = vmatprep.subr.mxu0 0.0
    %2247 = vmatpush1.msra.mxu0 %v232
    %2248 = vmatprep.subr.mxu0 0.0
    %2249 = vmatpush1.msra.mxu0 %v235
    %2250 = vmatprep.subr.mxu0 0.0
    %2251 = vmatpush1.msra.mxu0 %v238
    %2252 = vmatprep.subr.mxu0 0.0
    %2253 = vmatpush1.msra.mxu0 %v241
    %2254 = vmatprep.subr.mxu0 0.0
    %2255 = vmatpush1.msra.mxu0 0.0
    %2256 = vmatprep.subr.mxu0 0.0
    %2257 = vmatpush1.msra.mxu0 0.0
    %2258 = vmatprep.subr.mxu0 0.0
    %2259 = vmatpush1.msra.mxu0 0.0
    %2260 = vmatprep.subr.mxu0 0.0
    %2261 = vmatpush1.msra.mxu0 0.0
    %2262 = vmatprep.subr.mxu0 0.0
    %2263 = vmatpush1.msra.mxu0 0.0
    %2264 = vmatprep.subr.mxu0 0.0
    %2265 = vmatpush1.msra.mxu0 0.0
    %2266 = vmatprep.subr.mxu0 0.0
    %2267 = vmatpush1.msra.mxu0 0.0
    %2268 = vmatprep.subr.mxu0 0.0
    %2269 = vmatpush1.msra.mxu0 0.0
    %2270 = vmatprep.subr.mxu0 0.0
    %2271 = vmatpush1.msra.mxu0 0.0
    %2272 = vmatprep.subr.mxu0 0.0
    %2273 = vmatpush1.msra.mxu0 0.0
    %2274 = vmatprep.subr.mxu0 0.0
    %2275 = vmatpush1.msra.mxu0 0.0
    %2276 = vmatprep.subr.mxu0 0.0
    %2277 = vmatpush1.msra.mxu0 0.0
    %2278 = vmatprep.subr.mxu0 0.0
    %2279 = vmatpush1.msra.mxu0 0.0
    %2280 = vmatprep.subr.mxu0 0.0
    %2281 = vmatpush1.msra.mxu0 0.0
    %2282 = vmatprep.subr.mxu0 0.0
    %2283 = vmatpush1.msra.mxu0 0.0
    %2284 = vmatprep.subr.mxu0 0.0
    %2285 = vmatpush1.msra.mxu0 0.0
    %2286 = vmatprep.mubr.f32.mxu0 0.0
    %2287 = vmatmul.mubr.f32.gmra.mrb[0].mxu0 %v2150
    %v2288 = vpop.f32.mrb[0].mxu0
    %v2289 = vadd.f32 %v255, %v2288
    %v2290 = vpop.f32.mrb[0].mxu0
    %2291 = vdwg.mxu0
    %2292 = vmatprep.subr.mxu0 %v147
    %2293 = vmatpush1.msra.mxu0 %v146
    %2294 = vmatprep.subr.mxu0 %v150
    %2295 = vmatpush1.msra.mxu0 %v149
    %2296 = vmatprep.subr.mxu0 %v153
    %2297 = vmatpush1.msra.mxu0 %v152
    %2298 = vmatprep.subr.mxu0 %v156
    %2299 = vmatpush1.msra.mxu0 %v155
    %2300 = vmatprep.subr.mxu0 %v159
    %2301 = vmatpush1.msra.mxu0 %v158
    %2302 = vmatprep.subr.mxu0 %v162
    %2303 = vmatpush1.msra.mxu0 %v161
    %2304 = vmatprep.subr.mxu0 %v165
    %2305 = vmatpush1.msra.mxu0 %v164
    %2306 = vmatprep.subr.mxu0 %v168
    %2307 = vmatpush1.msra.mxu0 %v167
    %2308 = vmatprep.subr.mxu0 %v171
    %2309 = vmatpush1.msra.mxu0 %v170
    %2310 = vmatprep.subr.mxu0 %v174
    %2311 = vmatpush1.msra.mxu0 %v173
    %2312 = vmatprep.subr.mxu0 %v177
    %2313 = vmatpush1.msra.mxu0 %v176
    %2314 = vmatprep.subr.mxu0 %v180
    %2315 = vmatpush1.msra.mxu0 %v179
    %2316 = vmatprep.subr.mxu0 %v183
    %2317 = vmatpush1.msra.mxu0 %v182
    %2318 = vmatprep.subr.mxu0 %v186
    %2319 = vmatpush1.msra.mxu0 %v185
    %2320 = vmatprep.subr.mxu0 %v189
    %2321 = vmatpush1.msra.mxu0 %v188
    %2322 = vmatprep.subr.mxu0 %v192
    %2323 = vmatpush1.msra.mxu0 %v191
    %2324 = vmatprep.subr.mxu0 0.0
    %2325 = vmatpush1.msra.mxu0 0.0
    %2326 = vmatprep.subr.mxu0 0.0
    %2327 = vmatpush1.msra.mxu0 0.0
    %2328 = vmatprep.subr.mxu0 0.0
    %2329 = vmatpush1.msra.mxu0 0.0
    %2330 = vmatprep.subr.mxu0 0.0
    %2331 = vmatpush1.msra.mxu0 0.0
    %2332 = vmatprep.subr.mxu0 0.0
    %2333 = vmatpush1.msra.mxu0 0.0
    %2334 = vmatprep.subr.mxu0 0.0
    %2335 = vmatpush1.msra.mxu0 0.0
    %2336 = vmatprep.subr.mxu0 0.0
    %2337 = vmatpush1.msra.mxu0 0.0
    %2338 = vmatprep.subr.mxu0 0.0
    %2339 = vmatpush1.msra.mxu0 0.0
    %2340 = vmatprep.subr.mxu0 0.0
    %2341 = vmatpush1.msra.mxu0 0.0
    %2342 = vmatprep.subr.mxu0 0.0
    %2343 = vmatpush1.msra.mxu0 0.0
    %2344 = vmatprep.subr.mxu0 0.0
    %2345 = vmatpush1.msra.mxu0 0.0
    %2346 = vmatprep.subr.mxu0 0.0
    %2347 = vmatpush1.msra.mxu0 0.0
    %2348 = vmatprep.subr.mxu0 0.0
    %2349 = vmatpush1.msra.mxu0 0.0
    %2350 = vmatprep.subr.mxu0 0.0
    %2351 = vmatpush1.msra.mxu0 0.0
    %2352 = vmatprep.subr.mxu0 0.0
    %2353 = vmatpush1.msra.mxu0 0.0
    %2354 = vmatprep.subr.mxu0 0.0
    %2355 = vmatpush1.msra.mxu0 0.0
    %2356 = vmatprep.mubr.f32.mxu0 0.0
    %2357 = vmatmul.mubr.f32.gmra.mrb[0].mxu0 %v1982
    %v2358 = vpop.f32.mrb[0].mxu0
    %v2359 = vadd.f32 0.0, %v2358
    %v2360 = vpop.f32.mrb[0].mxu0
    %v2361 = vadd.f32 0.0, %v2360
    %2362 = vdwg.mxu0
    %2363 = vmatprep.subr.mxu0 0.0
    %2364 = vmatpush1.msra.mxu0 %v148
    %2365 = vmatprep.subr.mxu0 0.0
    %2366 = vmatpush1.msra.mxu0 %v151
    %2367 = vmatprep.subr.mxu0 0.0
    %2368 = vmatpush1.msra.mxu0 %v154
    %2369 = vmatprep.subr.mxu0 0.0
    %2370 = vmatpush1.msra.mxu0 %v157
    %2371 = vmatprep.subr.mxu0 0.0
    %2372 = vmatpush1.msra.mxu0 %v160
    %2373 = vmatprep.subr.mxu0 0.0
    %2374 = vmatpush1.msra.mxu0 %v163
    %2375 = vmatprep.subr.mxu0 0.0
    %2376 = vmatpush1.msra.mxu0 %v166
    %2377 = vmatprep.subr.mxu0 0.0
    %2378 = vmatpush1.msra.mxu0 %v169
    %2379 = vmatprep.subr.mxu0 0.0
    %2380 = vmatpush1.msra.mxu0 %v172
    %2381 = vmatprep.subr.mxu0 0.0
    %2382 = vmatpush1.msra.mxu0 %v175
    %2383 = vmatprep.subr.mxu0 0.0
    %2384 = vmatpush1.msra.mxu0 %v178
    %2385 = vmatprep.subr.mxu0 0.0
    %2386 = vmatpush1.msra.mxu0 %v181
    %2387 = vmatprep.subr.mxu0 0.0
    %2388 = vmatpush1.msra.mxu0 %v184
    %2389 = vmatprep.subr.mxu0 0.0
    %2390 = vmatpush1.msra.mxu0 %v187
    %2391 = vmatprep.subr.mxu0 0.0
    %2392 = vmatpush1.msra.mxu0 %v190
    %2393 = vmatprep.subr.mxu0 0.0
    %2394 = vmatpush1.msra.mxu0 %v193
    %2395 = vmatprep.subr.mxu0 0.0
    %2396 = vmatpush1.msra.mxu0 0.0
    %2397 = vmatprep.subr.mxu0 0.0
    %2398 = vmatpush1.msra.mxu0 0.0
    %2399 = vmatprep.subr.mxu0 0.0
    %2400 = vmatpush1.msra.mxu0 0.0
    %2401 = vmatprep.subr.mxu0 0.0
    %2402 = vmatpush1.msra.mxu0 0.0
    %2403 = vmatprep.subr.mxu0 0.0
    %2404 = vmatpush1.msra.mxu0 0.0
    %2405 = vmatprep.subr.mxu0 0.0
    %2406 = vmatpush1.msra.mxu0 0.0
    %2407 = vmatprep.subr.mxu0 0.0
    %2408 = vmatpush1.msra.mxu0 0.0
    %2409 = vmatprep.subr.mxu0 0.0
    %2410 = vmatpush1.msra.mxu0 0.0
    %2411 = vmatprep.subr.mxu0 0.0
    %2412 = vmatpush1.msra.mxu0 0.0
    %2413 = vmatprep.subr.mxu0 0.0
    %2414 = vmatpush1.msra.mxu0 0.0
    %2415 = vmatprep.subr.mxu0 0.0
    %2416 = vmatpush1.msra.mxu0 0.0
    %2417 = vmatprep.subr.mxu0 0.0
    %2418 = vmatpush1.msra.mxu0 0.0
    %2419 = vmatprep.subr.mxu0 0.0
    %2420 = vmatpush1.msra.mxu0 0.0
    %2421 = vmatprep.subr.mxu0 0.0
    %2422 = vmatpush1.msra.mxu0 0.0
    %2423 = vmatprep.subr.mxu0 0.0
    %2424 = vmatpush1.msra.mxu0 0.0
    %2425 = vmatprep.subr.mxu0 0.0
    %2426 = vmatpush1.msra.mxu0 0.0
    %2427 = vmatprep.mubr.f32.mxu0 0.0
    %2428 = vmatmul.mubr.f32.gmra.mrb[0].mxu0 %v1982
    %v2429 = vpop.f32.mrb[0].mxu0
    %v2430 = vadd.f32 0.0, %v2429
    %v2431 = vpop.f32.mrb[0].mxu0
    %2432 = vdwg.mxu0
    %v2433 = vadd.f32 %v2218, %v2359
    %v2434 = vxor.u32 %v2433, 2147483648
    %v2435 = vmul.f32 %v2434, 1.442695
    %v2436 = vpow.pop %v2435
    %v2437 = vadd.f32 %v2436, 1.0
    %v2438 = vrcp.pop %v2437
    %v2439 = vmul.f32 1.0, %v2438
    %v2440 = vadd.f32 %v2220, %v2361
    %v2441 = vxor.u32 %v2440, 2147483648
    %v2442 = vmul.f32 %v2441, 1.442695
    %v2443 = vpow.pop %v2442
    %v2444 = vadd.f32 %v2443, 1.0
    %v2445 = vrcp.pop %v2444
    %v2446 = vmul.f32 1.0, %v2445
    %v2447 = vadd.f32 %v2430, %v271
    %v2448 = vmul.f32 %v2439, %v2447
    %v2449 = vadd.f32 %v2289, %v2448
    %v2450 = vtanh.pop %v2449
    %v2451 = vsub.f32 %v1982, %v2450
    %v2452 = vmul.f32 %v2446, %v2451
    %v2453 = vadd.f32 %v2450, %v2452
    %s2454 = scalar_lea.vmem %s13, 24
    %2455 = vst [vmem:[%s2454] sm:$0xff] %v2453
    %2456 = vmatprep.subr.mxu0 %v99
    %2457 = vmatpush1.msra.mxu0 %v98
    %2458 = vmatprep.subr.mxu0 %v102
    %2459 = vmatpush1.msra.mxu0 %v101
    %2460 = vmatprep.subr.mxu0 %v105
    %2461 = vmatpush1.msra.mxu0 %v104
    %2462 = vmatprep.subr.mxu0 %v108
    %2463 = vmatpush1.msra.mxu0 %v107
    %2464 = vmatprep.subr.mxu0 %v111
    %2465 = vmatpush1.msra.mxu0 %v110
    %2466 = vmatprep.subr.mxu0 %v114
    %2467 = vmatpush1.msra.mxu0 %v113
    %2468 = vmatprep.subr.mxu0 %v117
    %2469 = vmatpush1.msra.mxu0 %v116
    %2470 = vmatprep.subr.mxu0 %v120
    %2471 = vmatpush1.msra.mxu0 %v119
    %2472 = vmatprep.subr.mxu0 %v123
    %2473 = vmatpush1.msra.mxu0 %v122
    %2474 = vmatprep.subr.mxu0 %v126
    %2475 = vmatpush1.msra.mxu0 %v125
    %2476 = vmatprep.subr.mxu0 %v129
    %2477 = vmatpush1.msra.mxu0 %v128
    %2478 = vmatprep.subr.mxu0 %v132
    %2479 = vmatpush1.msra.mxu0 %v131
    %2480 = vmatprep.subr.mxu0 %v135
    %2481 = vmatpush1.msra.mxu0 %v134
    %2482 = vmatprep.subr.mxu0 %v138
    %2483 = vmatpush1.msra.mxu0 %v137
    %2484 = vmatprep.subr.mxu0 %v141
    %2485 = vmatpush1.msra.mxu0 %v140
    %2486 = vmatprep.subr.mxu0 %v144
    %2487 = vmatpush1.msra.mxu0 %v143
    %2488 = vmatprep.subr.mxu0 0.0
    %2489 = vmatpush1.msra.mxu0 0.0
    %2490 = vmatprep.subr.mxu0 0.0
    %2491 = vmatpush1.msra.mxu0 0.0
    %2492 = vmatprep.subr.mxu0 0.0
    %2493 = vmatpush1.msra.mxu0 0.0
    %2494 = vmatprep.subr.mxu0 0.0
    %2495 = vmatpush1.msra.mxu0 0.0
    %2496 = vmatprep.subr.mxu0 0.0
    %2497 = vmatpush1.msra.mxu0 0.0
    %2498 = vmatprep.subr.mxu0 0.0
    %2499 = vmatpush1.msra.mxu0 0.0
    %2500 = vmatprep.subr.mxu0 0.0
    %2501 = vmatpush1.msra.mxu0 0.0
    %2502 = vmatprep.subr.mxu0 0.0
    %2503 = vmatpush1.msra.mxu0 0.0
    %2504 = vmatprep.subr.mxu0 0.0
    %2505 = vmatpush1.msra.mxu0 0.0
    %2506 = vmatprep.subr.mxu0 0.0
    %2507 = vmatpush1.msra.mxu0 0.0
    %2508 = vmatprep.subr.mxu0 0.0
    %2509 = vmatpush1.msra.mxu0 0.0
    %2510 = vmatprep.subr.mxu0 0.0
    %2511 = vmatpush1.msra.mxu0 0.0
    %2512 = vmatprep.subr.mxu0 0.0
    %2513 = vmatpush1.msra.mxu0 0.0
    %2514 = vmatprep.subr.mxu0 0.0
    %2515 = vmatpush1.msra.mxu0 0.0
    %2516 = vmatprep.subr.mxu0 0.0
    %2517 = vmatpush1.msra.mxu0 0.0
    %2518 = vmatprep.subr.mxu0 0.0
    %2519 = vmatpush1.msra.mxu0 0.0
    %2520 = vmatprep.mubr.f32.mxu0 0.0
    %2521 = vmatmul.mubr.f32.gmra.mrb[0].mxu0 %v2150
    %v2522 = vpop.f32.mrb[0].mxu0
    %v2523 = vadd.f32 0.0, %v2522
    %v2524 = vpop.f32.mrb[0].mxu0
    %v2525 = vadd.f32 0.0, %v2524
    %2526 = vdwg.mxu0
    %2527 = vmatprep.subr.mxu0 0.0
    %2528 = vmatpush1.msra.mxu0 %v100
    %2529 = vmatprep.subr.mxu0 0.0
    %2530 = vmatpush1.msra.mxu0 %v103
    %2531 = vmatprep.subr.mxu0 0.0
    %2532 = vmatpush1.msra.mxu0 %v106
    %2533 = vmatprep.subr.mxu0 0.0
    %2534 = vmatpush1.msra.mxu0 %v109
    %2535 = vmatprep.subr.mxu0 0.0
    %2536 = vmatpush1.msra.mxu0 %v112
    %2537 = vmatprep.subr.mxu0 0.0
    %2538 = vmatpush1.msra.mxu0 %v115
    %2539 = vmatprep.subr.mxu0 0.0
    %2540 = vmatpush1.msra.mxu0 %v118
    %2541 = vmatprep.subr.mxu0 0.0
    %2542 = vmatpush1.msra.mxu0 %v121
    %2543 = vmatprep.subr.mxu0 0.0
    %2544 = vmatpush1.msra.mxu0 %v124
    %2545 = vmatprep.subr.mxu0 0.0
    %2546 = vmatpush1.msra.mxu0 %v127
    %2547 = vmatprep.subr.mxu0 0.0
    %2548 = vmatpush1.msra.mxu0 %v130
    %2549 = vmatprep.subr.mxu0 0.0
    %2550 = vmatpush1.msra.mxu0 %v133
    %2551 = vmatprep.subr.mxu0 0.0
    %2552 = vmatpush1.msra.mxu0 %v136
    %2553 = vmatprep.subr.mxu0 0.0
    %2554 = vmatpush1.msra.mxu0 %v139
    %2555 = vmatprep.subr.mxu0 0.0
    %2556 = vmatpush1.msra.mxu0 %v142
    %2557 = vmatprep.subr.mxu0 0.0
    %2558 = vmatpush1.msra.mxu0 %v145
    %2559 = vmatprep.subr.mxu0 0.0
    %2560 = vmatpush1.msra.mxu0 0.0
    %2561 = vmatprep.subr.mxu0 0.0
    %2562 = vmatpush1.msra.mxu0 0.0
    %2563 = vmatprep.subr.mxu0 0.0
    %2564 = vmatpush1.msra.mxu0 0.0
    %2565 = vmatprep.subr.mxu0 0.0
    %2566 = vmatpush1.msra.mxu0 0.0
    %2567 = vmatprep.subr.mxu0 0.0
    %2568 = vmatpush1.msra.mxu0 0.0
    %2569 = vmatprep.subr.mxu0 0.0
    %2570 = vmatpush1.msra.mxu0 0.0
    %2571 = vmatprep.subr.mxu0 0.0
    %2572 = vmatpush1.msra.mxu0 0.0
    %2573 = vmatprep.subr.mxu0 0.0
    %2574 = vmatpush1.msra.mxu0 0.0
    %2575 = vmatprep.subr.mxu0 0.0
    %2576 = vmatpush1.msra.mxu0 0.0
    %2577 = vmatprep.subr.mxu0 0.0
    %2578 = vmatpush1.msra.mxu0 0.0
    %2579 = vmatprep.subr.mxu0 0.0
    %2580 = vmatpush1.msra.mxu0 0.0
    %2581 = vmatprep.subr.mxu0 0.0
    %2582 = vmatpush1.msra.mxu0 0.0
    %2583 = vmatprep.subr.mxu0 0.0
    %2584 = vmatpush1.msra.mxu0 0.0
    %2585 = vmatprep.subr.mxu0 0.0
    %2586 = vmatpush1.msra.mxu0 0.0
    %2587 = vmatprep.subr.mxu0 0.0
    %2588 = vmatpush1.msra.mxu0 0.0
    %2589 = vmatprep.subr.mxu0 0.0
    %2590 = vmatpush1.msra.mxu0 0.0
    %2591 = vmatprep.mubr.f32.mxu0 0.0
    %2592 = vmatmul.mubr.f32.gmra.mrb[0].mxu0 %v2150
    %v2593 = vpop.f32.mrb[0].mxu0
    %v2594 = vadd.f32 0.0, %v2593
    %v2595 = vpop.f32.mrb[0].mxu0
    %2596 = vdwg.mxu0
    %s2597 = scalar_lea.vmem [#allocation2], 96
    %v2598 = vld [vmem:[%s2597] sm:$0xff]
    %v2599 = vld [vmem:[%s2597 + $0x8] sm:$0xff]
    %v2600 = vld [vmem:[%s2597 + $0x10] sm:$0xff]
    %v2601 = vadd.f32 %v2598, %v2523
    %v2602 = vxor.u32 %v2601, 2147483648
    %v2603 = vmul.f32 %v2602, 1.442695
    %v2604 = vpow.pop %v2603
    %v2605 = vadd.f32 %v2604, 1.0
    %v2606 = vrcp.pop %v2605
    %v2607 = vmul.f32 1.0, %v2606
    %v2608 = vadd.f32 %v2599, %v2525
    %v2609 = vxor.u32 %v2608, 2147483648
    %v2610 = vmul.f32 %v2609, 1.442695
    %v2611 = vpow.pop %v2610
    %v2612 = vadd.f32 %v2611, 1.0
    %v2613 = vrcp.pop %v2612
    %v2614 = vmul.f32 1.0, %v2613
    %v2615 = vadd.f32 %v2594, %v264
    %v2616 = vmul.f32 %v2607, %v2615
    %v2617 = vadd.f32 %v2600, %v2616
    %v2618 = vtanh.pop %v2617
    %v2619 = vsub.f32 %v2150, %v2618
    %v2620 = vmul.f32 %v2614, %v2619
    %v2621 = vadd.f32 %v2618, %v2620
    %2622 = vmatprep.subr.mxu0 %v195
    %2623 = vmatpush1.msra.mxu0 %v194
    %2624 = vmatprep.subr.mxu0 %v198
    %2625 = vmatpush1.msra.mxu0 %v197
    %2626 = vmatprep.subr.mxu0 %v201
    %2627 = vmatpush1.msra.mxu0 %v200
    %2628 = vmatprep.subr.mxu0 %v204
    %2629 = vmatpush1.msra.mxu0 %v203
    %2630 = vmatprep.subr.mxu0 %v207
    %2631 = vmatpush1.msra.mxu0 %v206
    %2632 = vmatprep.subr.mxu0 %v210
    %2633 = vmatpush1.msra.mxu0 %v209
    %2634 = vmatprep.subr.mxu0 %v213
    %2635 = vmatpush1.msra.mxu0 %v212
    %2636 = vmatprep.subr.mxu0 %v216
    %2637 = vmatpush1.msra.mxu0 %v215
    %2638 = vmatprep.subr.mxu0 %v219
    %2639 = vmatpush1.msra.mxu0 %v218
    %2640 = vmatprep.subr.mxu0 %v222
    %2641 = vmatpush1.msra.mxu0 %v221
    %2642 = vmatprep.subr.mxu0 %v225
    %2643 = vmatpush1.msra.mxu0 %v224
    %2644 = vmatprep.subr.mxu0 %v228
    %2645 = vmatpush1.msra.mxu0 %v227
    %2646 = vmatprep.subr.mxu0 %v231
    %2647 = vmatpush1.msra.mxu0 %v230
    %2648 = vmatprep.subr.mxu0 %v234
    %2649 = vmatpush1.msra.mxu0 %v233
    %2650 = vmatprep.subr.mxu0 %v237
    %2651 = vmatpush1.msra.mxu0 %v236
    %2652 = vmatprep.subr.mxu0 %v240
    %2653 = vmatpush1.msra.mxu0 %v239
    %2654 = vmatprep.subr.mxu0 0.0
    %2655 = vmatpush1.msra.mxu0 0.0
    %2656 = vmatprep.subr.mxu0 0.0
    %2657 = vmatpush1.msra.mxu0 0.0
    %2658 = vmatprep.subr.mxu0 0.0
    %2659 = vmatpush1.msra.mxu0 0.0
    %2660 = vmatprep.subr.mxu0 0.0
    %2661 = vmatpush1.msra.mxu0 0.0
    %2662 = vmatprep.subr.mxu0 0.0
    %2663 = vmatpush1.msra.mxu0 0.0
    %2664 = vmatprep.subr.mxu0 0.0
    %2665 = vmatpush1.msra.mxu0 0.0
    %2666 = vmatprep.subr.mxu0 0.0
    %2667 = vmatpush1.msra.mxu0 0.0
    %2668 = vmatprep.subr.mxu0 0.0
    %2669 = vmatpush1.msra.mxu0 0.0
    %2670 = vmatprep.subr.mxu0 0.0
    %2671 = vmatpush1.msra.mxu0 0.0
    %2672 = vmatprep.subr.mxu0 0.0
    %2673 = vmatpush1.msra.mxu0 0.0
    %2674 = vmatprep.subr.mxu0 0.0
    %2675 = vmatpush1.msra.mxu0 0.0
    %2676 = vmatprep.subr.mxu0 0.0
    %2677 = vmatpush1.msra.mxu0 0.0
    %2678 = vmatprep.subr.mxu0 0.0
    %2679 = vmatpush1.msra.mxu0 0.0
    %2680 = vmatprep.subr.mxu0 0.0
    %2681 = vmatpush1.msra.mxu0 0.0
    %2682 = vmatprep.subr.mxu0 0.0
    %2683 = vmatpush1.msra.mxu0 0.0
    %2684 = vmatprep.subr.mxu0 0.0
    %2685 = vmatpush1.msra.mxu0 0.0
    %2686 = vmatprep.mubr.f32.mxu0 0.0
    %2687 = vmatmul.mubr.f32.gmra.mrb[0].mxu0 %v2621
    %v2688 = vpop.f32.mrb[0].mxu0
    %v2689 = vadd.f32 %v247, %v2688
    %v2690 = vpop.f32.mrb[0].mxu0
    %v2691 = vadd.f32 %v251, %v2690
    %2692 = vdwg.mxu0
    %2693 = vmatprep.subr.mxu0 0.0
    %2694 = vmatpush1.msra.mxu0 %v196
    %2695 = vmatprep.subr.mxu0 0.0
    %2696 = vmatpush1.msra.mxu0 %v199
    %2697 = vmatprep.subr.mxu0 0.0
    %2698 = vmatpush1.msra.mxu0 %v202
    %2699 = vmatprep.subr.mxu0 0.0
    %2700 = vmatpush1.msra.mxu0 %v205
    %2701 = vmatprep.subr.mxu0 0.0
    %2702 = vmatpush1.msra.mxu0 %v208
    %2703 = vmatprep.subr.mxu0 0.0
    %2704 = vmatpush1.msra.mxu0 %v211
    %2705 = vmatprep.subr.mxu0 0.0
    %2706 = vmatpush1.msra.mxu0 %v214
    %2707 = vmatprep.subr.mxu0 0.0
    %2708 = vmatpush1.msra.mxu0 %v217
    %2709 = vmatprep.subr.mxu0 0.0
    %2710 = vmatpush1.msra.mxu0 %v220
    %2711 = vmatprep.subr.mxu0 0.0
    %2712 = vmatpush1.msra.mxu0 %v223
    %2713 = vmatprep.subr.mxu0 0.0
    %2714 = vmatpush1.msra.mxu0 %v226
    %2715 = vmatprep.subr.mxu0 0.0
    %2716 = vmatpush1.msra.mxu0 %v229
    %2717 = vmatprep.subr.mxu0 0.0
    %2718 = vmatpush1.msra.mxu0 %v232
    %2719 = vmatprep.subr.mxu0 0.0
    %2720 = vmatpush1.msra.mxu0 %v235
    %2721 = vmatprep.subr.mxu0 0.0
    %2722 = vmatpush1.msra.mxu0 %v238
    %2723 = vmatprep.subr.mxu0 0.0
    %2724 = vmatpush1.msra.mxu0 %v241
    %2725 = vmatprep.subr.mxu0 0.0
    %2726 = vmatpush1.msra.mxu0 0.0
    %2727 = vmatprep.subr.mxu0 0.0
    %2728 = vmatpush1.msra.mxu0 0.0
    %2729 = vmatprep.subr.mxu0 0.0
    %2730 = vmatpush1.msra.mxu0 0.0
    %2731 = vmatprep.subr.mxu0 0.0
    %2732 = vmatpush1.msra.mxu0 0.0
    %2733 = vmatprep.subr.mxu0 0.0
    %2734 = vmatpush1.msra.mxu0 0.0
    %2735 = vmatprep.subr.mxu0 0.0
    %2736 = vmatpush1.msra.mxu0 0.0
    %2737 = vmatprep.subr.mxu0 0.0
    %2738 = vmatpush1.msra.mxu0 0.0
    %2739 = vmatprep.subr.mxu0 0.0
    %2740 = vmatpush1.msra.mxu0 0.0
    %2741 = vmatprep.subr.mxu0 0.0
    %2742 = vmatpush1.msra.mxu0 0.0
    %2743 = vmatprep.subr.mxu0 0.0
    %2744 = vmatpush1.msra.mxu0 0.0
    %2745 = vmatprep.subr.mxu0 0.0
    %2746 = vmatpush1.msra.mxu0 0.0
    %2747 = vmatprep.subr.mxu0 0.0
    %2748 = vmatpush1.msra.mxu0 0.0
    %2749 = vmatprep.subr.mxu0 0.0
    %2750 = vmatpush1.msra.mxu0 0.0
    %2751 = vmatprep.subr.mxu0 0.0
    %2752 = vmatpush1.msra.mxu0 0.0
    %2753 = vmatprep.subr.mxu0 0.0
    %2754 = vmatpush1.msra.mxu0 0.0
    %2755 = vmatprep.subr.mxu0 0.0
    %2756 = vmatpush1.msra.mxu0 0.0
    %2757 = vmatprep.mubr.f32.mxu0 0.0
    %2758 = vmatmul.mubr.f32.gmra.mrb[0].mxu0 %v2621
    %v2759 = vpop.f32.mrb[0].mxu0
    %v2760 = vadd.f32 %v255, %v2759
    %v2761 = vpop.f32.mrb[0].mxu0
    %2762 = vdwg.mxu0
    %2763 = vmatprep.subr.mxu0 %v147
    %2764 = vmatpush1.msra.mxu0 %v146
    %2765 = vmatprep.subr.mxu0 %v150
    %2766 = vmatpush1.msra.mxu0 %v149
    %2767 = vmatprep.subr.mxu0 %v153
    %2768 = vmatpush1.msra.mxu0 %v152
    %2769 = vmatprep.subr.mxu0 %v156
    %2770 = vmatpush1.msra.mxu0 %v155
    %2771 = vmatprep.subr.mxu0 %v159
    %2772 = vmatpush1.msra.mxu0 %v158
    %2773 = vmatprep.subr.mxu0 %v162
    %2774 = vmatpush1.msra.mxu0 %v161
    %2775 = vmatprep.subr.mxu0 %v165
    %2776 = vmatpush1.msra.mxu0 %v164
    %2777 = vmatprep.subr.mxu0 %v168
    %2778 = vmatpush1.msra.mxu0 %v167
    %2779 = vmatprep.subr.mxu0 %v171
    %2780 = vmatpush1.msra.mxu0 %v170
    %2781 = vmatprep.subr.mxu0 %v174
    %2782 = vmatpush1.msra.mxu0 %v173
    %2783 = vmatprep.subr.mxu0 %v177
    %2784 = vmatpush1.msra.mxu0 %v176
    %2785 = vmatprep.subr.mxu0 %v180
    %2786 = vmatpush1.msra.mxu0 %v179
    %2787 = vmatprep.subr.mxu0 %v183
    %2788 = vmatpush1.msra.mxu0 %v182
    %2789 = vmatprep.subr.mxu0 %v186
    %2790 = vmatpush1.msra.mxu0 %v185
    %2791 = vmatprep.subr.mxu0 %v189
    %2792 = vmatpush1.msra.mxu0 %v188
    %2793 = vmatprep.subr.mxu0 %v192
    %2794 = vmatpush1.msra.mxu0 %v191
    %2795 = vmatprep.subr.mxu0 0.0
    %2796 = vmatpush1.msra.mxu0 0.0
    %2797 = vmatprep.subr.mxu0 0.0
    %2798 = vmatpush1.msra.mxu0 0.0
    %2799 = vmatprep.subr.mxu0 0.0
    %2800 = vmatpush1.msra.mxu0 0.0
    %2801 = vmatprep.subr.mxu0 0.0
    %2802 = vmatpush1.msra.mxu0 0.0
    %2803 = vmatprep.subr.mxu0 0.0
    %2804 = vmatpush1.msra.mxu0 0.0
    %2805 = vmatprep.subr.mxu0 0.0
    %2806 = vmatpush1.msra.mxu0 0.0
    %2807 = vmatprep.subr.mxu0 0.0
    %2808 = vmatpush1.msra.mxu0 0.0
    %2809 = vmatprep.subr.mxu0 0.0
    %2810 = vmatpush1.msra.mxu0 0.0
    %2811 = vmatprep.subr.mxu0 0.0
    %2812 = vmatpush1.msra.mxu0 0.0
    %2813 = vmatprep.subr.mxu0 0.0
    %2814 = vmatpush1.msra.mxu0 0.0
    %2815 = vmatprep.subr.mxu0 0.0
    %2816 = vmatpush1.msra.mxu0 0.0
    %2817 = vmatprep.subr.mxu0 0.0
    %2818 = vmatpush1.msra.mxu0 0.0
    %2819 = vmatprep.subr.mxu0 0.0
    %2820 = vmatpush1.msra.mxu0 0.0
    %2821 = vmatprep.subr.mxu0 0.0
    %2822 = vmatpush1.msra.mxu0 0.0
    %2823 = vmatprep.subr.mxu0 0.0
    %2824 = vmatpush1.msra.mxu0 0.0
    %2825 = vmatprep.subr.mxu0 0.0
    %2826 = vmatpush1.msra.mxu0 0.0
    %2827 = vmatprep.mubr.f32.mxu0 0.0
    %2828 = vmatmul.mubr.f32.gmra.mrb[0].mxu0 %v2453
    %v2829 = vpop.f32.mrb[0].mxu0
    %v2830 = vadd.f32 0.0, %v2829
    %v2831 = vpop.f32.mrb[0].mxu0
    %v2832 = vadd.f32 0.0, %v2831
    %2833 = vdwg.mxu0
    %2834 = vmatprep.subr.mxu0 0.0
    %2835 = vmatpush1.msra.mxu0 %v148
    %2836 = vmatprep.subr.mxu0 0.0
    %2837 = vmatpush1.msra.mxu0 %v151
    %2838 = vmatprep.subr.mxu0 0.0
    %2839 = vmatpush1.msra.mxu0 %v154
    %2840 = vmatprep.subr.mxu0 0.0
    %2841 = vmatpush1.msra.mxu0 %v157
    %2842 = vmatprep.subr.mxu0 0.0
    %2843 = vmatpush1.msra.mxu0 %v160
    %2844 = vmatprep.subr.mxu0 0.0
    %2845 = vmatpush1.msra.mxu0 %v163
    %2846 = vmatprep.subr.mxu0 0.0
    %2847 = vmatpush1.msra.mxu0 %v166
    %2848 = vmatprep.subr.mxu0 0.0
    %2849 = vmatpush1.msra.mxu0 %v169
    %2850 = vmatprep.subr.mxu0 0.0
    %2851 = vmatpush1.msra.mxu0 %v172
    %2852 = vmatprep.subr.mxu0 0.0
    %2853 = vmatpush1.msra.mxu0 %v175
    %2854 = vmatprep.subr.mxu0 0.0
    %2855 = vmatpush1.msra.mxu0 %v178
    %2856 = vmatprep.subr.mxu0 0.0
    %2857 = vmatpush1.msra.mxu0 %v181
    %2858 = vmatprep.subr.mxu0 0.0
    %2859 = vmatpush1.msra.mxu0 %v184
    %2860 = vmatprep.subr.mxu0 0.0
    %2861 = vmatpush1.msra.mxu0 %v187
    %2862 = vmatprep.subr.mxu0 0.0
    %2863 = vmatpush1.msra.mxu0 %v190
    %2864 = vmatprep.subr.mxu0 0.0
    %2865 = vmatpush1.msra.mxu0 %v193
    %2866 = vmatprep.subr.mxu0 0.0
    %2867 = vmatpush1.msra.mxu0 0.0
    %2868 = vmatprep.subr.mxu0 0.0
    %2869 = vmatpush1.msra.mxu0 0.0
    %2870 = vmatprep.subr.mxu0 0.0
    %2871 = vmatpush1.msra.mxu0 0.0
    %2872 = vmatprep.subr.mxu0 0.0
    %2873 = vmatpush1.msra.mxu0 0.0
    %2874 = vmatprep.subr.mxu0 0.0
    %2875 = vmatpush1.msra.mxu0 0.0
    %2876 = vmatprep.subr.mxu0 0.0
    %2877 = vmatpush1.msra.mxu0 0.0
    %2878 = vmatprep.subr.mxu0 0.0
    %2879 = vmatpush1.msra.mxu0 0.0
    %2880 = vmatprep.subr.mxu0 0.0
    %2881 = vmatpush1.msra.mxu0 0.0
    %2882 = vmatprep.subr.mxu0 0.0
    %2883 = vmatpush1.msra.mxu0 0.0
    %2884 = vmatprep.subr.mxu0 0.0
    %2885 = vmatpush1.msra.mxu0 0.0
    %2886 = vmatprep.subr.mxu0 0.0
    %2887 = vmatpush1.msra.mxu0 0.0
    %2888 = vmatprep.subr.mxu0 0.0
    %2889 = vmatpush1.msra.mxu0 0.0
    %2890 = vmatprep.subr.mxu0 0.0
    %2891 = vmatpush1.msra.mxu0 0.0
    %2892 = vmatprep.subr.mxu0 0.0
    %2893 = vmatpush1.msra.mxu0 0.0
    %2894 = vmatprep.subr.mxu0 0.0
    %2895 = vmatpush1.msra.mxu0 0.0
    %2896 = vmatprep.subr.mxu0 0.0
    %2897 = vmatpush1.msra.mxu0 0.0
    %2898 = vmatprep.mubr.f32.mxu0 0.0
    %2899 = vmatmul.mubr.f32.gmra.mrb[0].mxu0 %v2453
    %v2900 = vpop.f32.mrb[0].mxu0
    %v2901 = vadd.f32 0.0, %v2900
    %v2902 = vpop.f32.mrb[0].mxu0
    %2903 = vdwg.mxu0
    %v2904 = vadd.f32 %v2689, %v2830
    %v2905 = vxor.u32 %v2904, 2147483648
    %v2906 = vmul.f32 %v2905, 1.442695
    %v2907 = vpow.pop %v2906
    %v2908 = vadd.f32 %v2907, 1.0
    %v2909 = vrcp.pop %v2908
    %v2910 = vmul.f32 1.0, %v2909
    %v2911 = vadd.f32 %v2691, %v2832
    %v2912 = vxor.u32 %v2911, 2147483648
    %v2913 = vmul.f32 %v2912, 1.442695
    %v2914 = vpow.pop %v2913
    %v2915 = vadd.f32 %v2914, 1.0
    %v2916 = vrcp.pop %v2915
    %v2917 = vmul.f32 1.0, %v2916
    %v2918 = vadd.f32 %v2901, %v271
    %v2919 = vmul.f32 %v2910, %v2918
    %v2920 = vadd.f32 %v2760, %v2919
    %v2921 = vtanh.pop %v2920
    %v2922 = vsub.f32 %v2453, %v2921
    %v2923 = vmul.f32 %v2917, %v2922
    %v2924 = vadd.f32 %v2921, %v2923
    %s2925 = scalar_lea.vmem %s13, 32
    %2926 = vst [vmem:[%s2925] sm:$0xff] %v2924
    %2927 = vmatprep.subr.mxu0 %v99
    %2928 = vmatpush1.msra.mxu0 %v98
    %2929 = vmatprep.subr.mxu0 %v102
    %2930 = vmatpush1.msra.mxu0 %v101
    %2931 = vmatprep.subr.mxu0 %v105
    %2932 = vmatpush1.msra.mxu0 %v104
    %2933 = vmatprep.subr.mxu0 %v108
    %2934 = vmatpush1.msra.mxu0 %v107
    %2935 = vmatprep.subr.mxu0 %v111
    %2936 = vmatpush1.msra.mxu0 %v110
    %2937 = vmatprep.subr.mxu0 %v114
    %2938 = vmatpush1.msra.mxu0 %v113
    %2939 = vmatprep.subr.mxu0 %v117
    %2940 = vmatpush1.msra.mxu0 %v116
    %2941 = vmatprep.subr.mxu0 %v120
    %2942 = vmatpush1.msra.mxu0 %v119
    %2943 = vmatprep.subr.mxu0 %v123
    %2944 = vmatpush1.msra.mxu0 %v122
    %2945 = vmatprep.subr.mxu0 %v126
    %2946 = vmatpush1.msra.mxu0 %v125
    %2947 = vmatprep.subr.mxu0 %v129
    %2948 = vmatpush1.msra.mxu0 %v128
    %2949 = vmatprep.subr.mxu0 %v132
    %2950 = vmatpush1.msra.mxu0 %v131
    %2951 = vmatprep.subr.mxu0 %v135
    %2952 = vmatpush1.msra.mxu0 %v134
    %2953 = vmatprep.subr.mxu0 %v138
    %2954 = vmatpush1.msra.mxu0 %v137
    %2955 = vmatprep.subr.mxu0 %v141
    %2956 = vmatpush1.msra.mxu0 %v140
    %2957 = vmatprep.subr.mxu0 %v144
    %2958 = vmatpush1.msra.mxu0 %v143
    %2959 = vmatprep.subr.mxu0 0.0
    %2960 = vmatpush1.msra.mxu0 0.0
    %2961 = vmatprep.subr.mxu0 0.0
    %2962 = vmatpush1.msra.mxu0 0.0
    %2963 = vmatprep.subr.mxu0 0.0
    %2964 = vmatpush1.msra.mxu0 0.0
    %2965 = vmatprep.subr.mxu0 0.0
    %2966 = vmatpush1.msra.mxu0 0.0
    %2967 = vmatprep.subr.mxu0 0.0
    %2968 = vmatpush1.msra.mxu0 0.0
    %2969 = vmatprep.subr.mxu0 0.0
    %2970 = vmatpush1.msra.mxu0 0.0
    %2971 = vmatprep.subr.mxu0 0.0
    %2972 = vmatpush1.msra.mxu0 0.0
    %2973 = vmatprep.subr.mxu0 0.0
    %2974 = vmatpush1.msra.mxu0 0.0
    %2975 = vmatprep.subr.mxu0 0.0
    %2976 = vmatpush1.msra.mxu0 0.0
    %2977 = vmatprep.subr.mxu0 0.0
    %2978 = vmatpush1.msra.mxu0 0.0
    %2979 = vmatprep.subr.mxu0 0.0
    %2980 = vmatpush1.msra.mxu0 0.0
    %2981 = vmatprep.subr.mxu0 0.0
    %2982 = vmatpush1.msra.mxu0 0.0
    %2983 = vmatprep.subr.mxu0 0.0
    %2984 = vmatpush1.msra.mxu0 0.0
    %2985 = vmatprep.subr.mxu0 0.0
    %2986 = vmatpush1.msra.mxu0 0.0
    %2987 = vmatprep.subr.mxu0 0.0
    %2988 = vmatpush1.msra.mxu0 0.0
    %2989 = vmatprep.subr.mxu0 0.0
    %2990 = vmatpush1.msra.mxu0 0.0
    %2991 = vmatprep.mubr.f32.mxu0 0.0
    %2992 = vmatmul.mubr.f32.gmra.mrb[0].mxu0 %v2621
    %v2993 = vpop.f32.mrb[0].mxu0
    %v2994 = vadd.f32 0.0, %v2993
    %v2995 = vpop.f32.mrb[0].mxu0
    %v2996 = vadd.f32 0.0, %v2995
    %2997 = vdwg.mxu0
    %2998 = vmatprep.subr.mxu0 0.0
    %2999 = vmatpush1.msra.mxu0 %v100
    %3000 = vmatprep.subr.mxu0 0.0
    %3001 = vmatpush1.msra.mxu0 %v103
    %3002 = vmatprep.subr.mxu0 0.0
    %3003 = vmatpush1.msra.mxu0 %v106
    %3004 = vmatprep.subr.mxu0 0.0
    %3005 = vmatpush1.msra.mxu0 %v109
    %3006 = vmatprep.subr.mxu0 0.0
    %3007 = vmatpush1.msra.mxu0 %v112
    %3008 = vmatprep.subr.mxu0 0.0
    %3009 = vmatpush1.msra.mxu0 %v115
    %3010 = vmatprep.subr.mxu0 0.0
    %3011 = vmatpush1.msra.mxu0 %v118
    %3012 = vmatprep.subr.mxu0 0.0
    %3013 = vmatpush1.msra.mxu0 %v121
    %3014 = vmatprep.subr.mxu0 0.0
    %3015 = vmatpush1.msra.mxu0 %v124
    %3016 = vmatprep.subr.mxu0 0.0
    %3017 = vmatpush1.msra.mxu0 %v127
    %3018 = vmatprep.subr.mxu0 0.0
    %3019 = vmatpush1.msra.mxu0 %v130
    %3020 = vmatprep.subr.mxu0 0.0
    %3021 = vmatpush1.msra.mxu0 %v133
    %3022 = vmatprep.subr.mxu0 0.0
    %3023 = vmatpush1.msra.mxu0 %v136
    %3024 = vmatprep.subr.mxu0 0.0
    %3025 = vmatpush1.msra.mxu0 %v139
    %3026 = vmatprep.subr.mxu0 0.0
    %3027 = vmatpush1.msra.mxu0 %v142
    %3028 = vmatprep.subr.mxu0 0.0
    %3029 = vmatpush1.msra.mxu0 %v145
    %3030 = vmatprep.subr.mxu0 0.0
    %3031 = vmatpush1.msra.mxu0 0.0
    %3032 = vmatprep.subr.mxu0 0.0
    %3033 = vmatpush1.msra.mxu0 0.0
    %3034 = vmatprep.subr.mxu0 0.0
    %3035 = vmatpush1.msra.mxu0 0.0
    %3036 = vmatprep.subr.mxu0 0.0
    %3037 = vmatpush1.msra.mxu0 0.0
    %3038 = vmatprep.subr.mxu0 0.0
    %3039 = vmatpush1.msra.mxu0 0.0
    %3040 = vmatprep.subr.mxu0 0.0
    %3041 = vmatpush1.msra.mxu0 0.0
    %3042 = vmatprep.subr.mxu0 0.0
    %3043 = vmatpush1.msra.mxu0 0.0
    %3044 = vmatprep.subr.mxu0 0.0
    %3045 = vmatpush1.msra.mxu0 0.0
    %3046 = vmatprep.subr.mxu0 0.0
    %3047 = vmatpush1.msra.mxu0 0.0
    %3048 = vmatprep.subr.mxu0 0.0
    %3049 = vmatpush1.msra.mxu0 0.0
    %3050 = vmatprep.subr.mxu0 0.0
    %3051 = vmatpush1.msra.mxu0 0.0
    %3052 = vmatprep.subr.mxu0 0.0
    %3053 = vmatpush1.msra.mxu0 0.0
    %3054 = vmatprep.subr.mxu0 0.0
    %3055 = vmatpush1.msra.mxu0 0.0
    %3056 = vmatprep.subr.mxu0 0.0
    %3057 = vmatpush1.msra.mxu0 0.0
    %3058 = vmatprep.subr.mxu0 0.0
    %3059 = vmatpush1.msra.mxu0 0.0
    %3060 = vmatprep.subr.mxu0 0.0
    %3061 = vmatpush1.msra.mxu0 0.0
    %3062 = vmatprep.mubr.f32.mxu0 0.0
    %3063 = vmatmul.mubr.f32.gmra.mrb[0].mxu0 %v2621
    %v3064 = vpop.f32.mrb[0].mxu0
    %v3065 = vadd.f32 0.0, %v3064
    %v3066 = vpop.f32.mrb[0].mxu0
    %3067 = vdwg.mxu0
    %s3068 = scalar_lea.vmem [#allocation2], 120
    %v3069 = vld [vmem:[%s3068] sm:$0xff]
    %v3070 = vld [vmem:[%s3068 + $0x8] sm:$0xff]
    %v3071 = vld [vmem:[%s3068 + $0x10] sm:$0xff]
    %v3072 = vadd.f32 %v3069, %v2994
    %v3073 = vxor.u32 %v3072, 2147483648
    %v3074 = vmul.f32 %v3073, 1.442695
    %v3075 = vpow.pop %v3074
    %v3076 = vadd.f32 %v3075, 1.0
    %v3077 = vrcp.pop %v3076
    %v3078 = vmul.f32 1.0, %v3077
    %v3079 = vadd.f32 %v3070, %v2996
    %v3080 = vxor.u32 %v3079, 2147483648
    %v3081 = vmul.f32 %v3080, 1.442695
    %v3082 = vpow.pop %v3081
    %v3083 = vadd.f32 %v3082, 1.0
    %v3084 = vrcp.pop %v3083
    %v3085 = vmul.f32 1.0, %v3084
    %v3086 = vadd.f32 %v3065, %v264
    %v3087 = vmul.f32 %v3078, %v3086
    %v3088 = vadd.f32 %v3071, %v3087
    %v3089 = vtanh.pop %v3088
    %v3090 = vsub.f32 %v2621, %v3089
    %v3091 = vmul.f32 %v3085, %v3090
    %v3092 = vadd.f32 %v3089, %v3091
    %3093 = vmatprep.subr.mxu0 %v195
    %3094 = vmatpush1.msra.mxu0 %v194
    %3095 = vmatprep.subr.mxu0 %v198
    %3096 = vmatpush1.msra.mxu0 %v197
    %3097 = vmatprep.subr.mxu0 %v201
    %3098 = vmatpush1.msra.mxu0 %v200
    %3099 = vmatprep.subr.mxu0 %v204
    %3100 = vmatpush1.msra.mxu0 %v203
    %3101 = vmatprep.subr.mxu0 %v207
    %3102 = vmatpush1.msra.mxu0 %v206
    %3103 = vmatprep.subr.mxu0 %v210
    %3104 = vmatpush1.msra.mxu0 %v209
    %3105 = vmatprep.subr.mxu0 %v213
    %3106 = vmatpush1.msra.mxu0 %v212
    %3107 = vmatprep.subr.mxu0 %v216
    %3108 = vmatpush1.msra.mxu0 %v215
    %3109 = vmatprep.subr.mxu0 %v219
    %3110 = vmatpush1.msra.mxu0 %v218
    %3111 = vmatprep.subr.mxu0 %v222
    %3112 = vmatpush1.msra.mxu0 %v221
    %3113 = vmatprep.subr.mxu0 %v225
    %3114 = vmatpush1.msra.mxu0 %v224
    %3115 = vmatprep.subr.mxu0 %v228
    %3116 = vmatpush1.msra.mxu0 %v227
    %3117 = vmatprep.subr.mxu0 %v231
    %3118 = vmatpush1.msra.mxu0 %v230
    %3119 = vmatprep.subr.mxu0 %v234
    %3120 = vmatpush1.msra.mxu0 %v233
    %3121 = vmatprep.subr.mxu0 %v237
    %3122 = vmatpush1.msra.mxu0 %v236
    %3123 = vmatprep.subr.mxu0 %v240
    %3124 = vmatpush1.msra.mxu0 %v239
    %3125 = vmatprep.subr.mxu0 0.0
    %3126 = vmatpush1.msra.mxu0 0.0
    %3127 = vmatprep.subr.mxu0 0.0
    %3128 = vmatpush1.msra.mxu0 0.0
    %3129 = vmatprep.subr.mxu0 0.0
    %3130 = vmatpush1.msra.mxu0 0.0
    %3131 = vmatprep.subr.mxu0 0.0
    %3132 = vmatpush1.msra.mxu0 0.0
    %3133 = vmatprep.subr.mxu0 0.0
    %3134 = vmatpush1.msra.mxu0 0.0
    %3135 = vmatprep.subr.mxu0 0.0
    %3136 = vmatpush1.msra.mxu0 0.0
    %3137 = vmatprep.subr.mxu0 0.0
    %3138 = vmatpush1.msra.mxu0 0.0
    %3139 = vmatprep.subr.mxu0 0.0
    %3140 = vmatpush1.msra.mxu0 0.0
    %3141 = vmatprep.subr.mxu0 0.0
    %3142 = vmatpush1.msra.mxu0 0.0
    %3143 = vmatprep.subr.mxu0 0.0
    %3144 = vmatpush1.msra.mxu0 0.0
    %3145 = vmatprep.subr.mxu0 0.0
    %3146 = vmatpush1.msra.mxu0 0.0
    %3147 = vmatprep.subr.mxu0 0.0
    %3148 = vmatpush1.msra.mxu0 0.0
    %3149 = vmatprep.subr.mxu0 0.0
    %3150 = vmatpush1.msra.mxu0 0.0
    %3151 = vmatprep.subr.mxu0 0.0
    %3152 = vmatpush1.msra.mxu0 0.0
    %3153 = vmatprep.subr.mxu0 0.0
    %3154 = vmatpush1.msra.mxu0 0.0
    %3155 = vmatprep.subr.mxu0 0.0
    %3156 = vmatpush1.msra.mxu0 0.0
    %3157 = vmatprep.mubr.f32.mxu0 0.0
    %3158 = vmatmul.mubr.f32.gmra.mrb[0].mxu0 %v3092
    %v3159 = vpop.f32.mrb[0].mxu0
    %v3160 = vadd.f32 %v247, %v3159
    %v3161 = vpop.f32.mrb[0].mxu0
    %v3162 = vadd.f32 %v251, %v3161
    %3163 = vdwg.mxu0
    %3164 = vmatprep.subr.mxu0 0.0
    %3165 = vmatpush1.msra.mxu0 %v196
    %3166 = vmatprep.subr.mxu0 0.0
    %3167 = vmatpush1.msra.mxu0 %v199
    %3168 = vmatprep.subr.mxu0 0.0
    %3169 = vmatpush1.msra.mxu0 %v202
    %3170 = vmatprep.subr.mxu0 0.0
    %3171 = vmatpush1.msra.mxu0 %v205
    %3172 = vmatprep.subr.mxu0 0.0
    %3173 = vmatpush1.msra.mxu0 %v208
    %3174 = vmatprep.subr.mxu0 0.0
    %3175 = vmatpush1.msra.mxu0 %v211
    %3176 = vmatprep.subr.mxu0 0.0
    %3177 = vmatpush1.msra.mxu0 %v214
    %3178 = vmatprep.subr.mxu0 0.0
    %3179 = vmatpush1.msra.mxu0 %v217
    %3180 = vmatprep.subr.mxu0 0.0
    %3181 = vmatpush1.msra.mxu0 %v220
    %3182 = vmatprep.subr.mxu0 0.0
    %3183 = vmatpush1.msra.mxu0 %v223
    %3184 = vmatprep.subr.mxu0 0.0
    %3185 = vmatpush1.msra.mxu0 %v226
    %3186 = vmatprep.subr.mxu0 0.0
    %3187 = vmatpush1.msra.mxu0 %v229
    %3188 = vmatprep.subr.mxu0 0.0
    %3189 = vmatpush1.msra.mxu0 %v232
    %3190 = vmatprep.subr.mxu0 0.0
    %3191 = vmatpush1.msra.mxu0 %v235
    %3192 = vmatprep.subr.mxu0 0.0
    %3193 = vmatpush1.msra.mxu0 %v238
    %3194 = vmatprep.subr.mxu0 0.0
    %3195 = vmatpush1.msra.mxu0 %v241
    %3196 = vmatprep.subr.mxu0 0.0
    %3197 = vmatpush1.msra.mxu0 0.0
    %3198 = vmatprep.subr.mxu0 0.0
    %3199 = vmatpush1.msra.mxu0 0.0
    %3200 = vmatprep.subr.mxu0 0.0
    %3201 = vmatpush1.msra.mxu0 0.0
    %3202 = vmatprep.subr.mxu0 0.0
    %3203 = vmatpush1.msra.mxu0 0.0
    %3204 = vmatprep.subr.mxu0 0.0
    %3205 = vmatpush1.msra.mxu0 0.0
    %3206 = vmatprep.subr.mxu0 0.0
    %3207 = vmatpush1.msra.mxu0 0.0
    %3208 = vmatprep.subr.mxu0 0.0
    %3209 = vmatpush1.msra.mxu0 0.0
    %3210 = vmatprep.subr.mxu0 0.0
    %3211 = vmatpush1.msra.mxu0 0.0
    %3212 = vmatprep.subr.mxu0 0.0
    %3213 = vmatpush1.msra.mxu0 0.0
    %3214 = vmatprep.subr.mxu0 0.0
    %3215 = vmatpush1.msra.mxu0 0.0
    %3216 = vmatprep.subr.mxu0 0.0
    %3217 = vmatpush1.msra.mxu0 0.0
    %3218 = vmatprep.subr.mxu0 0.0
    %3219 = vmatpush1.msra.mxu0 0.0
    %3220 = vmatprep.subr.mxu0 0.0
    %3221 = vmatpush1.msra.mxu0 0.0
    %3222 = vmatprep.subr.mxu0 0.0
    %3223 = vmatpush1.msra.mxu0 0.0
    %3224 = vmatprep.subr.mxu0 0.0
    %3225 = vmatpush1.msra.mxu0 0.0
    %3226 = vmatprep.subr.mxu0 0.0
    %3227 = vmatpush1.msra.mxu0 0.0
    %3228 = vmatprep.mubr.f32.mxu0 0.0
    %3229 = vmatmul.mubr.f32.gmra.mrb[0].mxu0 %v3092
    %v3230 = vpop.f32.mrb[0].mxu0
    %v3231 = vadd.f32 %v255, %v3230
    %v3232 = vpop.f32.mrb[0].mxu0
    %3233 = vdwg.mxu0
    %3234 = vmatprep.subr.mxu0 %v147
    %3235 = vmatpush1.msra.mxu0 %v146
    %3236 = vmatprep.subr.mxu0 %v150
    %3237 = vmatpush1.msra.mxu0 %v149
    %3238 = vmatprep.subr.mxu0 %v153
    %3239 = vmatpush1.msra.mxu0 %v152
    %3240 = vmatprep.subr.mxu0 %v156
    %3241 = vmatpush1.msra.mxu0 %v155
    %3242 = vmatprep.subr.mxu0 %v159
    %3243 = vmatpush1.msra.mxu0 %v158
    %3244 = vmatprep.subr.mxu0 %v162
    %3245 = vmatpush1.msra.mxu0 %v161
    %3246 = vmatprep.subr.mxu0 %v165
    %3247 = vmatpush1.msra.mxu0 %v164
    %3248 = vmatprep.subr.mxu0 %v168
    %3249 = vmatpush1.msra.mxu0 %v167
    %3250 = vmatprep.subr.mxu0 %v171
    %3251 = vmatpush1.msra.mxu0 %v170
    %3252 = vmatprep.subr.mxu0 %v174
    %3253 = vmatpush1.msra.mxu0 %v173
    %3254 = vmatprep.subr.mxu0 %v177
    %3255 = vmatpush1.msra.mxu0 %v176
    %3256 = vmatprep.subr.mxu0 %v180
    %3257 = vmatpush1.msra.mxu0 %v179
    %3258 = vmatprep.subr.mxu0 %v183
    %3259 = vmatpush1.msra.mxu0 %v182
    %3260 = vmatprep.subr.mxu0 %v186
    %3261 = vmatpush1.msra.mxu0 %v185
    %3262 = vmatprep.subr.mxu0 %v189
    %3263 = vmatpush1.msra.mxu0 %v188
    %3264 = vmatprep.subr.mxu0 %v192
    %3265 = vmatpush1.msra.mxu0 %v191
    %3266 = vmatprep.subr.mxu0 0.0
    %3267 = vmatpush1.msra.mxu0 0.0
    %3268 = vmatprep.subr.mxu0 0.0
    %3269 = vmatpush1.msra.mxu0 0.0
    %3270 = vmatprep.subr.mxu0 0.0
    %3271 = vmatpush1.msra.mxu0 0.0
    %3272 = vmatprep.subr.mxu0 0.0
    %3273 = vmatpush1.msra.mxu0 0.0
    %3274 = vmatprep.subr.mxu0 0.0
    %3275 = vmatpush1.msra.mxu0 0.0
    %3276 = vmatprep.subr.mxu0 0.0
    %3277 = vmatpush1.msra.mxu0 0.0
    %3278 = vmatprep.subr.mxu0 0.0
    %3279 = vmatpush1.msra.mxu0 0.0
    %3280 = vmatprep.subr.mxu0 0.0
    %3281 = vmatpush1.msra.mxu0 0.0
    %3282 = vmatprep.subr.mxu0 0.0
    %3283 = vmatpush1.msra.mxu0 0.0
    %3284 = vmatprep.subr.mxu0 0.0
    %3285 = vmatpush1.msra.mxu0 0.0
    %3286 = vmatprep.subr.mxu0 0.0
    %3287 = vmatpush1.msra.mxu0 0.0
    %3288 = vmatprep.subr.mxu0 0.0
    %3289 = vmatpush1.msra.mxu0 0.0
    %3290 = vmatprep.subr.mxu0 0.0
    %3291 = vmatpush1.msra.mxu0 0.0
    %3292 = vmatprep.subr.mxu0 0.0
    %3293 = vmatpush1.msra.mxu0 0.0
    %3294 = vmatprep.subr.mxu0 0.0
    %3295 = vmatpush1.msra.mxu0 0.0
    %3296 = vmatprep.subr.mxu0 0.0
    %3297 = vmatpush1.msra.mxu0 0.0
    %3298 = vmatprep.mubr.f32.mxu0 0.0
    %3299 = vmatmul.mubr.f32.gmra.mrb[0].mxu0 %v2924
    %v3300 = vpop.f32.mrb[0].mxu0
    %v3301 = vadd.f32 0.0, %v3300
    %v3302 = vpop.f32.mrb[0].mxu0
    %v3303 = vadd.f32 0.0, %v3302
    %3304 = vdwg.mxu0
    %3305 = vmatprep.subr.mxu0 0.0
    %3306 = vmatpush1.msra.mxu0 %v148
    %3307 = vmatprep.subr.mxu0 0.0
    %3308 = vmatpush1.msra.mxu0 %v151
    %3309 = vmatprep.subr.mxu0 0.0
    %3310 = vmatpush1.msra.mxu0 %v154
    %3311 = vmatprep.subr.mxu0 0.0
    %3312 = vmatpush1.msra.mxu0 %v157
    %3313 = vmatprep.subr.mxu0 0.0
    %3314 = vmatpush1.msra.mxu0 %v160
    %3315 = vmatprep.subr.mxu0 0.0
    %3316 = vmatpush1.msra.mxu0 %v163
    %3317 = vmatprep.subr.mxu0 0.0
    %3318 = vmatpush1.msra.mxu0 %v166
    %3319 = vmatprep.subr.mxu0 0.0
    %3320 = vmatpush1.msra.mxu0 %v169
    %3321 = vmatprep.subr.mxu0 0.0
    %3322 = vmatpush1.msra.mxu0 %v172
    %3323 = vmatprep.subr.mxu0 0.0
    %3324 = vmatpush1.msra.mxu0 %v175
    %3325 = vmatprep.subr.mxu0 0.0
    %3326 = vmatpush1.msra.mxu0 %v178
    %3327 = vmatprep.subr.mxu0 0.0
    %3328 = vmatpush1.msra.mxu0 %v181
    %3329 = vmatprep.subr.mxu0 0.0
    %3330 = vmatpush1.msra.mxu0 %v184
    %3331 = vmatprep.subr.mxu0 0.0
    %3332 = vmatpush1.msra.mxu0 %v187
    %3333 = vmatprep.subr.mxu0 0.0
    %3334 = vmatpush1.msra.mxu0 %v190
    %3335 = vmatprep.subr.mxu0 0.0
    %3336 = vmatpush1.msra.mxu0 %v193
    %3337 = vmatprep.subr.mxu0 0.0
    %3338 = vmatpush1.msra.mxu0 0.0
    %3339 = vmatprep.subr.mxu0 0.0
    %3340 = vmatpush1.msra.mxu0 0.0
    %3341 = vmatprep.subr.mxu0 0.0
    %3342 = vmatpush1.msra.mxu0 0.0
    %3343 = vmatprep.subr.mxu0 0.0
    %3344 = vmatpush1.msra.mxu0 0.0
    %3345 = vmatprep.subr.mxu0 0.0
    %3346 = vmatpush1.msra.mxu0 0.0
    %3347 = vmatprep.subr.mxu0 0.0
    %3348 = vmatpush1.msra.mxu0 0.0
    %3349 = vmatprep.subr.mxu0 0.0
    %3350 = vmatpush1.msra.mxu0 0.0
    %3351 = vmatprep.subr.mxu0 0.0
    %3352 = vmatpush1.msra.mxu0 0.0
    %3353 = vmatprep.subr.mxu0 0.0
    %3354 = vmatpush1.msra.mxu0 0.0
    %3355 = vmatprep.subr.mxu0 0.0
    %3356 = vmatpush1.msra.mxu0 0.0
    %3357 = vmatprep.subr.mxu0 0.0
    %3358 = vmatpush1.msra.mxu0 0.0
    %3359 = vmatprep.subr.mxu0 0.0
    %3360 = vmatpush1.msra.mxu0 0.0
    %3361 = vmatprep.subr.mxu0 0.0
    %3362 = vmatpush1.msra.mxu0 0.0
    %3363 = vmatprep.subr.mxu0 0.0
    %3364 = vmatpush1.msra.mxu0 0.0
    %3365 = vmatprep.subr.mxu0 0.0
    %3366 = vmatpush1.msra.mxu0 0.0
    %3367 = vmatprep.subr.mxu0 0.0
    %3368 = vmatpush1.msra.mxu0 0.0
    %3369 = vmatprep.mubr.f32.mxu0 0.0
    %3370 = vmatmul.mubr.f32.gmra.mrb[0].mxu0 %v2924
    %v3371 = vpop.f32.mrb[0].mxu0
    %v3372 = vadd.f32 0.0, %v3371
    %v3373 = vpop.f32.mrb[0].mxu0
    %3374 = vdwg.mxu0
    %v3375 = vadd.f32 %v3160, %v3301
    %v3376 = vxor.u32 %v3375, 2147483648
    %v3377 = vmul.f32 %v3376, 1.442695
    %v3378 = vpow.pop %v3377
    %v3379 = vadd.f32 %v3378, 1.0
    %v3380 = vrcp.pop %v3379
    %v3381 = vmul.f32 1.0, %v3380
    %v3382 = vadd.f32 %v3162, %v3303
    %v3383 = vxor.u32 %v3382, 2147483648
    %v3384 = vmul.f32 %v3383, 1.442695
    %v3385 = vpow.pop %v3384
    %v3386 = vadd.f32 %v3385, 1.0
    %v3387 = vrcp.pop %v3386
    %v3388 = vmul.f32 1.0, %v3387
    %v3389 = vadd.f32 %v3372, %v271
    %v3390 = vmul.f32 %v3381, %v3389
    %v3391 = vadd.f32 %v3231, %v3390
    %v3392 = vtanh.pop %v3391
    %v3393 = vsub.f32 %v2924, %v3392
    %v3394 = vmul.f32 %v3388, %v3393
    %v3395 = vadd.f32 %v3392, %v3394
    %s3396 = scalar_lea.vmem %s13, 40
    %3397 = vst [vmem:[%s3396] sm:$0xff] %v3395
    %3398 = vmatprep.subr.mxu0 %v99
    %3399 = vmatpush1.msra.mxu0 %v98
    %3400 = vmatprep.subr.mxu0 %v102
    %3401 = vmatpush1.msra.mxu0 %v101
    %3402 = vmatprep.subr.mxu0 %v105
    %3403 = vmatpush1.msra.mxu0 %v104
    %3404 = vmatprep.subr.mxu0 %v108
    %3405 = vmatpush1.msra.mxu0 %v107
    %3406 = vmatprep.subr.mxu0 %v111
    %3407 = vmatpush1.msra.mxu0 %v110
    %3408 = vmatprep.subr.mxu0 %v114
    %3409 = vmatpush1.msra.mxu0 %v113
    %3410 = vmatprep.subr.mxu0 %v117
    %3411 = vmatpush1.msra.mxu0 %v116
    %3412 = vmatprep.subr.mxu0 %v120
    %3413 = vmatpush1.msra.mxu0 %v119
    %3414 = vmatprep.subr.mxu0 %v123
    %3415 = vmatpush1.msra.mxu0 %v122
    %3416 = vmatprep.subr.mxu0 %v126
    %3417 = vmatpush1.msra.mxu0 %v125
    %3418 = vmatprep.subr.mxu0 %v129
    %3419 = vmatpush1.msra.mxu0 %v128
    %3420 = vmatprep.subr.mxu0 %v132
    %3421 = vmatpush1.msra.mxu0 %v131
    %3422 = vmatprep.subr.mxu0 %v135
    %3423 = vmatpush1.msra.mxu0 %v134
    %3424 = vmatprep.subr.mxu0 %v138
    %3425 = vmatpush1.msra.mxu0 %v137
    %3426 = vmatprep.subr.mxu0 %v141
    %3427 = vmatpush1.msra.mxu0 %v140
    %3428 = vmatprep.subr.mxu0 %v144
    %3429 = vmatpush1.msra.mxu0 %v143
    %3430 = vmatprep.subr.mxu0 0.0
    %3431 = vmatpush1.msra.mxu0 0.0
    %3432 = vmatprep.subr.mxu0 0.0
    %3433 = vmatpush1.msra.mxu0 0.0
    %3434 = vmatprep.subr.mxu0 0.0
    %3435 = vmatpush1.msra.mxu0 0.0
    %3436 = vmatprep.subr.mxu0 0.0
    %3437 = vmatpush1.msra.mxu0 0.0
    %3438 = vmatprep.subr.mxu0 0.0
    %3439 = vmatpush1.msra.mxu0 0.0
    %3440 = vmatprep.subr.mxu0 0.0
    %3441 = vmatpush1.msra.mxu0 0.0
    %3442 = vmatprep.subr.mxu0 0.0
    %3443 = vmatpush1.msra.mxu0 0.0
    %3444 = vmatprep.subr.mxu0 0.0
    %3445 = vmatpush1.msra.mxu0 0.0
    %3446 = vmatprep.subr.mxu0 0.0
    %3447 = vmatpush1.msra.mxu0 0.0
    %3448 = vmatprep.subr.mxu0 0.0
    %3449 = vmatpush1.msra.mxu0 0.0
    %3450 = vmatprep.subr.mxu0 0.0
    %3451 = vmatpush1.msra.mxu0 0.0
    %3452 = vmatprep.subr.mxu0 0.0
    %3453 = vmatpush1.msra.mxu0 0.0
    %3454 = vmatprep.subr.mxu0 0.0
    %3455 = vmatpush1.msra.mxu0 0.0
    %3456 = vmatprep.subr.mxu0 0.0
    %3457 = vmatpush1.msra.mxu0 0.0
    %3458 = vmatprep.subr.mxu0 0.0
    %3459 = vmatpush1.msra.mxu0 0.0
    %3460 = vmatprep.subr.mxu0 0.0
    %3461 = vmatpush1.msra.mxu0 0.0
    %3462 = vmatprep.mubr.f32.mxu0 0.0
    %3463 = vmatmul.mubr.f32.gmra.mrb[0].mxu0 %v3092
    %v3464 = vpop.f32.mrb[0].mxu0
    %v3465 = vadd.f32 0.0, %v3464
    %v3466 = vpop.f32.mrb[0].mxu0
    %v3467 = vadd.f32 0.0, %v3466
    %3468 = vdwg.mxu0
    %3469 = vmatprep.subr.mxu0 0.0
    %3470 = vmatpush1.msra.mxu0 %v100
    %3471 = vmatprep.subr.mxu0 0.0
    %3472 = vmatpush1.msra.mxu0 %v103
    %3473 = vmatprep.subr.mxu0 0.0
    %3474 = vmatpush1.msra.mxu0 %v106
    %3475 = vmatprep.subr.mxu0 0.0
    %3476 = vmatpush1.msra.mxu0 %v109
    %3477 = vmatprep.subr.mxu0 0.0
    %3478 = vmatpush1.msra.mxu0 %v112
    %3479 = vmatprep.subr.mxu0 0.0
    %3480 = vmatpush1.msra.mxu0 %v115
    %3481 = vmatprep.subr.mxu0 0.0
    %3482 = vmatpush1.msra.mxu0 %v118
    %3483 = vmatprep.subr.mxu0 0.0
    %3484 = vmatpush1.msra.mxu0 %v121
    %3485 = vmatprep.subr.mxu0 0.0
    %3486 = vmatpush1.msra.mxu0 %v124
    %3487 = vmatprep.subr.mxu0 0.0
    %3488 = vmatpush1.msra.mxu0 %v127
    %3489 = vmatprep.subr.mxu0 0.0
    %3490 = vmatpush1.msra.mxu0 %v130
    %3491 = vmatprep.subr.mxu0 0.0
    %3492 = vmatpush1.msra.mxu0 %v133
    %3493 = vmatprep.subr.mxu0 0.0
    %3494 = vmatpush1.msra.mxu0 %v136
    %3495 = vmatprep.subr.mxu0 0.0
    %3496 = vmatpush1.msra.mxu0 %v139
    %3497 = vmatprep.subr.mxu0 0.0
    %3498 = vmatpush1.msra.mxu0 %v142
    %3499 = vmatprep.subr.mxu0 0.0
    %3500 = vmatpush1.msra.mxu0 %v145
    %3501 = vmatprep.subr.mxu0 0.0
    %3502 = vmatpush1.msra.mxu0 0.0
    %3503 = vmatprep.subr.mxu0 0.0
    %3504 = vmatpush1.msra.mxu0 0.0
    %3505 = vmatprep.subr.mxu0 0.0
    %3506 = vmatpush1.msra.mxu0 0.0
    %3507 = vmatprep.subr.mxu0 0.0
    %3508 = vmatpush1.msra.mxu0 0.0
    %3509 = vmatprep.subr.mxu0 0.0
    %3510 = vmatpush1.msra.mxu0 0.0
    %3511 = vmatprep.subr.mxu0 0.0
    %3512 = vmatpush1.msra.mxu0 0.0
    %3513 = vmatprep.subr.mxu0 0.0
    %3514 = vmatpush1.msra.mxu0 0.0
    %3515 = vmatprep.subr.mxu0 0.0
    %3516 = vmatpush1.msra.mxu0 0.0
    %3517 = vmatprep.subr.mxu0 0.0
    %3518 = vmatpush1.msra.mxu0 0.0
    %3519 = vmatprep.subr.mxu0 0.0
    %3520 = vmatpush1.msra.mxu0 0.0
    %3521 = vmatprep.subr.mxu0 0.0
    %3522 = vmatpush1.msra.mxu0 0.0
    %3523 = vmatprep.subr.mxu0 0.0
    %3524 = vmatpush1.msra.mxu0 0.0
    %3525 = vmatprep.subr.mxu0 0.0
    %3526 = vmatpush1.msra.mxu0 0.0
    %3527 = vmatprep.subr.mxu0 0.0
    %3528 = vmatpush1.msra.mxu0 0.0
    %3529 = vmatprep.subr.mxu0 0.0
    %3530 = vmatpush1.msra.mxu0 0.0
    %3531 = vmatprep.subr.mxu0 0.0
    %3532 = vmatpush1.msra.mxu0 0.0
    %3533 = vmatprep.mubr.f32.mxu0 0.0
    %3534 = vmatmul.mubr.f32.gmra.mrb[0].mxu0 %v3092
    %v3535 = vpop.f32.mrb[0].mxu0
    %v3536 = vadd.f32 0.0, %v3535
    %v3537 = vpop.f32.mrb[0].mxu0
    %3538 = vdwg.mxu0
    %s3539 = scalar_lea.vmem [#allocation2], 144
    %v3540 = vld [vmem:[%s3539] sm:$0xff]
    %v3541 = vld [vmem:[%s3539 + $0x8] sm:$0xff]
    %v3542 = vld [vmem:[%s3539 + $0x10] sm:$0xff]
    %v3543 = vadd.f32 %v3540, %v3465
    %v3544 = vxor.u32 %v3543, 2147483648
    %v3545 = vmul.f32 %v3544, 1.442695
    %v3546 = vpow.pop %v3545
    %v3547 = vadd.f32 %v3546, 1.0
    %v3548 = vrcp.pop %v3547
    %v3549 = vmul.f32 1.0, %v3548
    %v3550 = vadd.f32 %v3541, %v3467
    %v3551 = vxor.u32 %v3550, 2147483648
    %v3552 = vmul.f32 %v3551, 1.442695
    %v3553 = vpow.pop %v3552
    %v3554 = vadd.f32 %v3553, 1.0
    %v3555 = vrcp.pop %v3554
    %v3556 = vmul.f32 1.0, %v3555
    %v3557 = vadd.f32 %v3536, %v264
    %v3558 = vmul.f32 %v3549, %v3557
    %v3559 = vadd.f32 %v3542, %v3558
    %v3560 = vtanh.pop %v3559
    %v3561 = vsub.f32 %v3092, %v3560
    %v3562 = vmul.f32 %v3556, %v3561
    %v3563 = vadd.f32 %v3560, %v3562
    %3564 = vmatprep.subr.mxu0 %v195
    %3565 = vmatpush1.msra.mxu0 %v194
    %3566 = vmatprep.subr.mxu0 %v198
    %3567 = vmatpush1.msra.mxu0 %v197
    %3568 = vmatprep.subr.mxu0 %v201
    %3569 = vmatpush1.msra.mxu0 %v200
    %3570 = vmatprep.subr.mxu0 %v204
    %3571 = vmatpush1.msra.mxu0 %v203
    %3572 = vmatprep.subr.mxu0 %v207
    %3573 = vmatpush1.msra.mxu0 %v206
    %3574 = vmatprep.subr.mxu0 %v210
    %3575 = vmatpush1.msra.mxu0 %v209
    %3576 = vmatprep.subr.mxu0 %v213
    %3577 = vmatpush1.msra.mxu0 %v212
    %3578 = vmatprep.subr.mxu0 %v216
    %3579 = vmatpush1.msra.mxu0 %v215
    %3580 = vmatprep.subr.mxu0 %v219
    %3581 = vmatpush1.msra.mxu0 %v218
    %3582 = vmatprep.subr.mxu0 %v222
    %3583 = vmatpush1.msra.mxu0 %v221
    %3584 = vmatprep.subr.mxu0 %v225
    %3585 = vmatpush1.msra.mxu0 %v224
    %3586 = vmatprep.subr.mxu0 %v228
    %3587 = vmatpush1.msra.mxu0 %v227
    %3588 = vmatprep.subr.mxu0 %v231
    %3589 = vmatpush1.msra.mxu0 %v230
    %3590 = vmatprep.subr.mxu0 %v234
    %3591 = vmatpush1.msra.mxu0 %v233
    %3592 = vmatprep.subr.mxu0 %v237
    %3593 = vmatpush1.msra.mxu0 %v236
    %3594 = vmatprep.subr.mxu0 %v240
    %3595 = vmatpush1.msra.mxu0 %v239
    %3596 = vmatprep.subr.mxu0 0.0
    %3597 = vmatpush1.msra.mxu0 0.0
    %3598 = vmatprep.subr.mxu0 0.0
    %3599 = vmatpush1.msra.mxu0 0.0
    %3600 = vmatprep.subr.mxu0 0.0
    %3601 = vmatpush1.msra.mxu0 0.0
    %3602 = vmatprep.subr.mxu0 0.0
    %3603 = vmatpush1.msra.mxu0 0.0
    %3604 = vmatprep.subr.mxu0 0.0
    %3605 = vmatpush1.msra.mxu0 0.0
    %3606 = vmatprep.subr.mxu0 0.0
    %3607 = vmatpush1.msra.mxu0 0.0
    %3608 = vmatprep.subr.mxu0 0.0
    %3609 = vmatpush1.msra.mxu0 0.0
    %3610 = vmatprep.subr.mxu0 0.0
    %3611 = vmatpush1.msra.mxu0 0.0
    %3612 = vmatprep.subr.mxu0 0.0
    %3613 = vmatpush1.msra.mxu0 0.0
    %3614 = vmatprep.subr.mxu0 0.0
    %3615 = vmatpush1.msra.mxu0 0.0
    %3616 = vmatprep.subr.mxu0 0.0
    %3617 = vmatpush1.msra.mxu0 0.0
    %3618 = vmatprep.subr.mxu0 0.0
    %3619 = vmatpush1.msra.mxu0 0.0
    %3620 = vmatprep.subr.mxu0 0.0
    %3621 = vmatpush1.msra.mxu0 0.0
    %3622 = vmatprep.subr.mxu0 0.0
    %3623 = vmatpush1.msra.mxu0 0.0
    %3624 = vmatprep.subr.mxu0 0.0
    %3625 = vmatpush1.msra.mxu0 0.0
    %3626 = vmatprep.subr.mxu0 0.0
    %3627 = vmatpush1.msra.mxu0 0.0
    %3628 = vmatprep.mubr.f32.mxu0 0.0
    %3629 = vmatmul.mubr.f32.gmra.mrb[0].mxu0 %v3563
    %v3630 = vpop.f32.mrb[0].mxu0
    %v3631 = vadd.f32 %v247, %v3630
    %v3632 = vpop.f32.mrb[0].mxu0
    %v3633 = vadd.f32 %v251, %v3632
    %3634 = vdwg.mxu0
    %3635 = vmatprep.subr.mxu0 0.0
    %3636 = vmatpush1.msra.mxu0 %v196
    %3637 = vmatprep.subr.mxu0 0.0
    %3638 = vmatpush1.msra.mxu0 %v199
    %3639 = vmatprep.subr.mxu0 0.0
    %3640 = vmatpush1.msra.mxu0 %v202
    %3641 = vmatprep.subr.mxu0 0.0
    %3642 = vmatpush1.msra.mxu0 %v205
    %3643 = vmatprep.subr.mxu0 0.0
    %3644 = vmatpush1.msra.mxu0 %v208
    %3645 = vmatprep.subr.mxu0 0.0
    %3646 = vmatpush1.msra.mxu0 %v211
    %3647 = vmatprep.subr.mxu0 0.0
    %3648 = vmatpush1.msra.mxu0 %v214
    %3649 = vmatprep.subr.mxu0 0.0
    %3650 = vmatpush1.msra.mxu0 %v217
    %3651 = vmatprep.subr.mxu0 0.0
    %3652 = vmatpush1.msra.mxu0 %v220
    %3653 = vmatprep.subr.mxu0 0.0
    %3654 = vmatpush1.msra.mxu0 %v223
    %3655 = vmatprep.subr.mxu0 0.0
    %3656 = vmatpush1.msra.mxu0 %v226
    %3657 = vmatprep.subr.mxu0 0.0
    %3658 = vmatpush1.msra.mxu0 %v229
    %3659 = vmatprep.subr.mxu0 0.0
    %3660 = vmatpush1.msra.mxu0 %v232
    %3661 = vmatprep.subr.mxu0 0.0
    %3662 = vmatpush1.msra.mxu0 %v235
    %3663 = vmatprep.subr.mxu0 0.0
    %3664 = vmatpush1.msra.mxu0 %v238
    %3665 = vmatprep.subr.mxu0 0.0
    %3666 = vmatpush1.msra.mxu0 %v241
    %3667 = vmatprep.subr.mxu0 0.0
    %3668 = vmatpush1.msra.mxu0 0.0
    %3669 = vmatprep.subr.mxu0 0.0
    %3670 = vmatpush1.msra.mxu0 0.0
    %3671 = vmatprep.subr.mxu0 0.0
    %3672 = vmatpush1.msra.mxu0 0.0
    %3673 = vmatprep.subr.mxu0 0.0
    %3674 = vmatpush1.msra.mxu0 0.0
    %3675 = vmatprep.subr.mxu0 0.0
    %3676 = vmatpush1.msra.mxu0 0.0
    %3677 = vmatprep.subr.mxu0 0.0
    %3678 = vmatpush1.msra.mxu0 0.0
    %3679 = vmatprep.subr.mxu0 0.0
    %3680 = vmatpush1.msra.mxu0 0.0
    %3681 = vmatprep.subr.mxu0 0.0
    %3682 = vmatpush1.msra.mxu0 0.0
    %3683 = vmatprep.subr.mxu0 0.0
    %3684 = vmatpush1.msra.mxu0 0.0
    %3685 = vmatprep.subr.mxu0 0.0
    %3686 = vmatpush1.msra.mxu0 0.0
    %3687 = vmatprep.subr.mxu0 0.0
    %3688 = vmatpush1.msra.mxu0 0.0
    %3689 = vmatprep.subr.mxu0 0.0
    %3690 = vmatpush1.msra.mxu0 0.0
    %3691 = vmatprep.subr.mxu0 0.0
    %3692 = vmatpush1.msra.mxu0 0.0
    %3693 = vmatprep.subr.mxu0 0.0
    %3694 = vmatpush1.msra.mxu0 0.0
    %3695 = vmatprep.subr.mxu0 0.0
    %3696 = vmatpush1.msra.mxu0 0.0
    %3697 = vmatprep.subr.mxu0 0.0
    %3698 = vmatpush1.msra.mxu0 0.0
    %3699 = vmatprep.mubr.f32.mxu0 0.0
    %3700 = vmatmul.mubr.f32.gmra.mrb[0].mxu0 %v3563
    %v3701 = vpop.f32.mrb[0].mxu0
    %v3702 = vadd.f32 %v255, %v3701
    %v3703 = vpop.f32.mrb[0].mxu0
    %3704 = vdwg.mxu0
    %3705 = vmatprep.subr.mxu0 %v147
    %3706 = vmatpush1.msra.mxu0 %v146
    %3707 = vmatprep.subr.mxu0 %v150
    %3708 = vmatpush1.msra.mxu0 %v149
    %3709 = vmatprep.subr.mxu0 %v153
    %3710 = vmatpush1.msra.mxu0 %v152
    %3711 = vmatprep.subr.mxu0 %v156
    %3712 = vmatpush1.msra.mxu0 %v155
    %3713 = vmatprep.subr.mxu0 %v159
    %3714 = vmatpush1.msra.mxu0 %v158
    %3715 = vmatprep.subr.mxu0 %v162
    %3716 = vmatpush1.msra.mxu0 %v161
    %3717 = vmatprep.subr.mxu0 %v165
    %3718 = vmatpush1.msra.mxu0 %v164
    %3719 = vmatprep.subr.mxu0 %v168
    %3720 = vmatpush1.msra.mxu0 %v167
    %3721 = vmatprep.subr.mxu0 %v171
    %3722 = vmatpush1.msra.mxu0 %v170
    %3723 = vmatprep.subr.mxu0 %v174
    %3724 = vmatpush1.msra.mxu0 %v173
    %3725 = vmatprep.subr.mxu0 %v177
    %3726 = vmatpush1.msra.mxu0 %v176
    %3727 = vmatprep.subr.mxu0 %v180
    %3728 = vmatpush1.msra.mxu0 %v179
    %3729 = vmatprep.subr.mxu0 %v183
    %3730 = vmatpush1.msra.mxu0 %v182
    %3731 = vmatprep.subr.mxu0 %v186
    %3732 = vmatpush1.msra.mxu0 %v185
    %3733 = vmatprep.subr.mxu0 %v189
    %3734 = vmatpush1.msra.mxu0 %v188
    %3735 = vmatprep.subr.mxu0 %v192
    %3736 = vmatpush1.msra.mxu0 %v191
    %3737 = vmatprep.subr.mxu0 0.0
    %3738 = vmatpush1.msra.mxu0 0.0
    %3739 = vmatprep.subr.mxu0 0.0
    %3740 = vmatpush1.msra.mxu0 0.0
    %3741 = vmatprep.subr.mxu0 0.0
    %3742 = vmatpush1.msra.mxu0 0.0
    %3743 = vmatprep.subr.mxu0 0.0
    %3744 = vmatpush1.msra.mxu0 0.0
    %3745 = vmatprep.subr.mxu0 0.0
    %3746 = vmatpush1.msra.mxu0 0.0
    %3747 = vmatprep.subr.mxu0 0.0
    %3748 = vmatpush1.msra.mxu0 0.0
    %3749 = vmatprep.subr.mxu0 0.0
    %3750 = vmatpush1.msra.mxu0 0.0
    %3751 = vmatprep.subr.mxu0 0.0
    %3752 = vmatpush1.msra.mxu0 0.0
    %3753 = vmatprep.subr.mxu0 0.0
    %3754 = vmatpush1.msra.mxu0 0.0
    %3755 = vmatprep.subr.mxu0 0.0
    %3756 = vmatpush1.msra.mxu0 0.0
    %3757 = vmatprep.subr.mxu0 0.0
    %3758 = vmatpush1.msra.mxu0 0.0
    %3759 = vmatprep.subr.mxu0 0.0
    %3760 = vmatpush1.msra.mxu0 0.0
    %3761 = vmatprep.subr.mxu0 0.0
    %3762 = vmatpush1.msra.mxu0 0.0
    %3763 = vmatprep.subr.mxu0 0.0
    %3764 = vmatpush1.msra.mxu0 0.0
    %3765 = vmatprep.subr.mxu0 0.0
    %3766 = vmatpush1.msra.mxu0 0.0
    %3767 = vmatprep.subr.mxu0 0.0
    %3768 = vmatpush1.msra.mxu0 0.0
    %3769 = vmatprep.mubr.f32.mxu0 0.0
    %3770 = vmatmul.mubr.f32.gmra.mrb[0].mxu0 %v3395
    %v3771 = vpop.f32.mrb[0].mxu0
    %v3772 = vadd.f32 0.0, %v3771
    %v3773 = vpop.f32.mrb[0].mxu0
    %v3774 = vadd.f32 0.0, %v3773
    %3775 = vdwg.mxu0
    %3776 = vmatprep.subr.mxu0 0.0
    %3777 = vmatpush1.msra.mxu0 %v148
    %3778 = vmatprep.subr.mxu0 0.0
    %3779 = vmatpush1.msra.mxu0 %v151
    %3780 = vmatprep.subr.mxu0 0.0
    %3781 = vmatpush1.msra.mxu0 %v154
    %3782 = vmatprep.subr.mxu0 0.0
    %3783 = vmatpush1.msra.mxu0 %v157
    %3784 = vmatprep.subr.mxu0 0.0
    %3785 = vmatpush1.msra.mxu0 %v160
    %3786 = vmatprep.subr.mxu0 0.0
    %3787 = vmatpush1.msra.mxu0 %v163
    %3788 = vmatprep.subr.mxu0 0.0
    %3789 = vmatpush1.msra.mxu0 %v166
    %3790 = vmatprep.subr.mxu0 0.0
    %3791 = vmatpush1.msra.mxu0 %v169
    %3792 = vmatprep.subr.mxu0 0.0
    %3793 = vmatpush1.msra.mxu0 %v172
    %3794 = vmatprep.subr.mxu0 0.0
    %3795 = vmatpush1.msra.mxu0 %v175
    %3796 = vmatprep.subr.mxu0 0.0
    %3797 = vmatpush1.msra.mxu0 %v178
    %3798 = vmatprep.subr.mxu0 0.0
    %3799 = vmatpush1.msra.mxu0 %v181
    %3800 = vmatprep.subr.mxu0 0.0
    %3801 = vmatpush1.msra.mxu0 %v184
    %3802 = vmatprep.subr.mxu0 0.0
    %3803 = vmatpush1.msra.mxu0 %v187
    %3804 = vmatprep.subr.mxu0 0.0
    %3805 = vmatpush1.msra.mxu0 %v190
    %3806 = vmatprep.subr.mxu0 0.0
    %3807 = vmatpush1.msra.mxu0 %v193
    %3808 = vmatprep.subr.mxu0 0.0
    %3809 = vmatpush1.msra.mxu0 0.0
    %3810 = vmatprep.subr.mxu0 0.0
    %3811 = vmatpush1.msra.mxu0 0.0
    %3812 = vmatprep.subr.mxu0 0.0
    %3813 = vmatpush1.msra.mxu0 0.0
    %3814 = vmatprep.subr.mxu0 0.0
    %3815 = vmatpush1.msra.mxu0 0.0
    %3816 = vmatprep.subr.mxu0 0.0
    %3817 = vmatpush1.msra.mxu0 0.0
    %3818 = vmatprep.subr.mxu0 0.0
    %3819 = vmatpush1.msra.mxu0 0.0
    %3820 = vmatprep.subr.mxu0 0.0
    %3821 = vmatpush1.msra.mxu0 0.0
    %3822 = vmatprep.subr.mxu0 0.0
    %3823 = vmatpush1.msra.mxu0 0.0
    %3824 = vmatprep.subr.mxu0 0.0
    %3825 = vmatpush1.msra.mxu0 0.0
    %3826 = vmatprep.subr.mxu0 0.0
    %3827 = vmatpush1.msra.mxu0 0.0
    %3828 = vmatprep.subr.mxu0 0.0
    %3829 = vmatpush1.msra.mxu0 0.0
    %3830 = vmatprep.subr.mxu0 0.0
    %3831 = vmatpush1.msra.mxu0 0.0
    %3832 = vmatprep.subr.mxu0 0.0
    %3833 = vmatpush1.msra.mxu0 0.0
    %3834 = vmatprep.subr.mxu0 0.0
    %3835 = vmatpush1.msra.mxu0 0.0
    %3836 = vmatprep.subr.mxu0 0.0
    %3837 = vmatpush1.msra.mxu0 0.0
    %3838 = vmatprep.subr.mxu0 0.0
    %3839 = vmatpush1.msra.mxu0 0.0
    %3840 = vmatprep.mubr.f32.mxu0 0.0
    %3841 = vmatmul.mubr.f32.gmra.mrb[0].mxu0 %v3395
    %v3842 = vpop.f32.mrb[0].mxu0
    %v3843 = vadd.f32 0.0, %v3842
    %v3844 = vpop.f32.mrb[0].mxu0
    %3845 = vdwg.mxu0
    %v3846 = vadd.f32 %v3631, %v3772
    %v3847 = vxor.u32 %v3846, 2147483648
    %v3848 = vmul.f32 %v3847, 1.442695
    %v3849 = vpow.pop %v3848
    %v3850 = vadd.f32 %v3849, 1.0
    %v3851 = vrcp.pop %v3850
    %v3852 = vmul.f32 1.0, %v3851
    %v3853 = vadd.f32 %v3633, %v3774
    %v3854 = vxor.u32 %v3853, 2147483648
    %v3855 = vmul.f32 %v3854, 1.442695
    %v3856 = vpow.pop %v3855
    %v3857 = vadd.f32 %v3856, 1.0
    %v3858 = vrcp.pop %v3857
    %v3859 = vmul.f32 1.0, %v3858
    %v3860 = vadd.f32 %v3843, %v271
    %v3861 = vmul.f32 %v3852, %v3860
    %v3862 = vadd.f32 %v3702, %v3861
    %v3863 = vtanh.pop %v3862
    %v3864 = vsub.f32 %v3395, %v3863
    %v3865 = vmul.f32 %v3859, %v3864
    %v3866 = vadd.f32 %v3863, %v3865
    %s3867 = scalar_lea.vmem %s13, 48
    %3868 = vst [vmem:[%s3867] sm:$0xff] %v3866
    %3869 = vmatprep.subr.mxu0 %v99
    %3870 = vmatpush1.msra.mxu0 %v98
    %3871 = vmatprep.subr.mxu0 %v102
    %3872 = vmatpush1.msra.mxu0 %v101
    %3873 = vmatprep.subr.mxu0 %v105
    %3874 = vmatpush1.msra.mxu0 %v104
    %3875 = vmatprep.subr.mxu0 %v108
    %3876 = vmatpush1.msra.mxu0 %v107
    %3877 = vmatprep.subr.mxu0 %v111
    %3878 = vmatpush1.msra.mxu0 %v110
    %3879 = vmatprep.subr.mxu0 %v114
    %3880 = vmatpush1.msra.mxu0 %v113
    %3881 = vmatprep.subr.mxu0 %v117
    %3882 = vmatpush1.msra.mxu0 %v116
    %3883 = vmatprep.subr.mxu0 %v120
    %3884 = vmatpush1.msra.mxu0 %v119
    %3885 = vmatprep.subr.mxu0 %v123
    %3886 = vmatpush1.msra.mxu0 %v122
    %3887 = vmatprep.subr.mxu0 %v126
    %3888 = vmatpush1.msra.mxu0 %v125
    %3889 = vmatprep.subr.mxu0 %v129
    %3890 = vmatpush1.msra.mxu0 %v128
    %3891 = vmatprep.subr.mxu0 %v132
    %3892 = vmatpush1.msra.mxu0 %v131
    %3893 = vmatprep.subr.mxu0 %v135
    %3894 = vmatpush1.msra.mxu0 %v134
    %3895 = vmatprep.subr.mxu0 %v138
    %3896 = vmatpush1.msra.mxu0 %v137
    %3897 = vmatprep.subr.mxu0 %v141
    %3898 = vmatpush1.msra.mxu0 %v140
    %3899 = vmatprep.subr.mxu0 %v144
    %3900 = vmatpush1.msra.mxu0 %v143
    %3901 = vmatprep.subr.mxu0 0.0
    %3902 = vmatpush1.msra.mxu0 0.0
    %3903 = vmatprep.subr.mxu0 0.0
    %3904 = vmatpush1.msra.mxu0 0.0
    %3905 = vmatprep.subr.mxu0 0.0
    %3906 = vmatpush1.msra.mxu0 0.0
    %3907 = vmatprep.subr.mxu0 0.0
    %3908 = vmatpush1.msra.mxu0 0.0
    %3909 = vmatprep.subr.mxu0 0.0
    %3910 = vmatpush1.msra.mxu0 0.0
    %3911 = vmatprep.subr.mxu0 0.0
    %3912 = vmatpush1.msra.mxu0 0.0
    %3913 = vmatprep.subr.mxu0 0.0
    %3914 = vmatpush1.msra.mxu0 0.0
    %3915 = vmatprep.subr.mxu0 0.0
    %3916 = vmatpush1.msra.mxu0 0.0
    %3917 = vmatprep.subr.mxu0 0.0
    %3918 = vmatpush1.msra.mxu0 0.0
    %3919 = vmatprep.subr.mxu0 0.0
    %3920 = vmatpush1.msra.mxu0 0.0
    %3921 = vmatprep.subr.mxu0 0.0
    %3922 = vmatpush1.msra.mxu0 0.0
    %3923 = vmatprep.subr.mxu0 0.0
    %3924 = vmatpush1.msra.mxu0 0.0
    %3925 = vmatprep.subr.mxu0 0.0
    %3926 = vmatpush1.msra.mxu0 0.0
    %3927 = vmatprep.subr.mxu0 0.0
    %3928 = vmatpush1.msra.mxu0 0.0
    %3929 = vmatprep.subr.mxu0 0.0
    %3930 = vmatpush1.msra.mxu0 0.0
    %3931 = vmatprep.subr.mxu0 0.0
    %3932 = vmatpush1.msra.mxu0 0.0
    %3933 = vmatprep.mubr.f32.mxu0 0.0
    %3934 = vmatmul.mubr.f32.gmra.mrb[0].mxu0 %v3563
    %v3935 = vpop.f32.mrb[0].mxu0
    %v3936 = vadd.f32 0.0, %v3935
    %v3937 = vpop.f32.mrb[0].mxu0
    %v3938 = vadd.f32 0.0, %v3937
    %3939 = vdwg.mxu0
    %3940 = vmatprep.subr.mxu0 0.0
    %3941 = vmatpush1.msra.mxu0 %v100
    %3942 = vmatprep.subr.mxu0 0.0
    %3943 = vmatpush1.msra.mxu0 %v103
    %3944 = vmatprep.subr.mxu0 0.0
    %3945 = vmatpush1.msra.mxu0 %v106
    %3946 = vmatprep.subr.mxu0 0.0
    %3947 = vmatpush1.msra.mxu0 %v109
    %3948 = vmatprep.subr.mxu0 0.0
    %3949 = vmatpush1.msra.mxu0 %v112
    %3950 = vmatprep.subr.mxu0 0.0
    %3951 = vmatpush1.msra.mxu0 %v115
    %3952 = vmatprep.subr.mxu0 0.0
    %3953 = vmatpush1.msra.mxu0 %v118
    %3954 = vmatprep.subr.mxu0 0.0
    %3955 = vmatpush1.msra.mxu0 %v121
    %3956 = vmatprep.subr.mxu0 0.0
    %3957 = vmatpush1.msra.mxu0 %v124
    %3958 = vmatprep.subr.mxu0 0.0
    %3959 = vmatpush1.msra.mxu0 %v127
    %3960 = vmatprep.subr.mxu0 0.0
    %3961 = vmatpush1.msra.mxu0 %v130
    %3962 = vmatprep.subr.mxu0 0.0
    %3963 = vmatpush1.msra.mxu0 %v133
    %3964 = vmatprep.subr.mxu0 0.0
    %3965 = vmatpush1.msra.mxu0 %v136
    %3966 = vmatprep.subr.mxu0 0.0
    %3967 = vmatpush1.msra.mxu0 %v139
    %3968 = vmatprep.subr.mxu0 0.0
    %3969 = vmatpush1.msra.mxu0 %v142
    %3970 = vmatprep.subr.mxu0 0.0
    %3971 = vmatpush1.msra.mxu0 %v145
    %3972 = vmatprep.subr.mxu0 0.0
    %3973 = vmatpush1.msra.mxu0 0.0
    %3974 = vmatprep.subr.mxu0 0.0
    %3975 = vmatpush1.msra.mxu0 0.0
    %3976 = vmatprep.subr.mxu0 0.0
    %3977 = vmatpush1.msra.mxu0 0.0
    %3978 = vmatprep.subr.mxu0 0.0
    %3979 = vmatpush1.msra.mxu0 0.0
    %3980 = vmatprep.subr.mxu0 0.0
    %3981 = vmatpush1.msra.mxu0 0.0
    %3982 = vmatprep.subr.mxu0 0.0
    %3983 = vmatpush1.msra.mxu0 0.0
    %3984 = vmatprep.subr.mxu0 0.0
    %3985 = vmatpush1.msra.mxu0 0.0
    %3986 = vmatprep.subr.mxu0 0.0
    %3987 = vmatpush1.msra.mxu0 0.0
    %3988 = vmatprep.subr.mxu0 0.0
    %3989 = vmatpush1.msra.mxu0 0.0
    %3990 = vmatprep.subr.mxu0 0.0
    %3991 = vmatpush1.msra.mxu0 0.0
    %3992 = vmatprep.subr.mxu0 0.0
    %3993 = vmatpush1.msra.mxu0 0.0
    %3994 = vmatprep.subr.mxu0 0.0
    %3995 = vmatpush1.msra.mxu0 0.0
    %3996 = vmatprep.subr.mxu0 0.0
    %3997 = vmatpush1.msra.mxu0 0.0
    %3998 = vmatprep.subr.mxu0 0.0
    %3999 = vmatpush1.msra.mxu0 0.0
    %4000 = vmatprep.subr.mxu0 0.0
    %4001 = vmatpush1.msra.mxu0 0.0
    %4002 = vmatprep.subr.mxu0 0.0
    %4003 = vmatpush1.msra.mxu0 0.0
    %4004 = vmatprep.mubr.f32.mxu0 0.0
    %4005 = vmatmul.mubr.f32.gmra.mrb[0].mxu0 %v3563
    %v4006 = vpop.f32.mrb[0].mxu0
    %v4007 = vadd.f32 0.0, %v4006
    %v4008 = vpop.f32.mrb[0].mxu0
    %4009 = vdwg.mxu0
    %s4010 = scalar_lea.vmem [#allocation2], 168
    %v4011 = vld [vmem:[%s4010] sm:$0xff]
    %v4012 = vld [vmem:[%s4010 + $0x8] sm:$0xff]
    %v4013 = vld [vmem:[%s4010 + $0x10] sm:$0xff]
    %v4014 = vadd.f32 %v4011, %v3936
    %v4015 = vxor.u32 %v4014, 2147483648
    %v4016 = vmul.f32 %v4015, 1.442695
    %v4017 = vpow.pop %v4016
    %v4018 = vadd.f32 %v4017, 1.0
    %v4019 = vrcp.pop %v4018
    %v4020 = vmul.f32 1.0, %v4019
    %v4021 = vadd.f32 %v4012, %v3938
    %v4022 = vxor.u32 %v4021, 2147483648
    %v4023 = vmul.f32 %v4022, 1.442695
    %v4024 = vpow.pop %v4023
    %v4025 = vadd.f32 %v4024, 1.0
    %v4026 = vrcp.pop %v4025
    %v4027 = vmul.f32 1.0, %v4026
    %v4028 = vadd.f32 %v4007, %v264
    %v4029 = vmul.f32 %v4020, %v4028
    %v4030 = vadd.f32 %v4013, %v4029
    %v4031 = vtanh.pop %v4030
    %v4032 = vsub.f32 %v3563, %v4031
    %v4033 = vmul.f32 %v4027, %v4032
    %v4034 = vadd.f32 %v4031, %v4033
    %4035 = vmatprep.subr.mxu0 %v195
    %4036 = vmatpush1.msra.mxu0 %v194
    %4037 = vmatprep.subr.mxu0 %v198
    %4038 = vmatpush1.msra.mxu0 %v197
    %4039 = vmatprep.subr.mxu0 %v201
    %4040 = vmatpush1.msra.mxu0 %v200
    %4041 = vmatprep.subr.mxu0 %v204
    %4042 = vmatpush1.msra.mxu0 %v203
    %4043 = vmatprep.subr.mxu0 %v207
    %4044 = vmatpush1.msra.mxu0 %v206
    %4045 = vmatprep.subr.mxu0 %v210
    %4046 = vmatpush1.msra.mxu0 %v209
    %4047 = vmatprep.subr.mxu0 %v213
    %4048 = vmatpush1.msra.mxu0 %v212
    %4049 = vmatprep.subr.mxu0 %v216
    %4050 = vmatpush1.msra.mxu0 %v215
    %4051 = vmatprep.subr.mxu0 %v219
    %4052 = vmatpush1.msra.mxu0 %v218
    %4053 = vmatprep.subr.mxu0 %v222
    %4054 = vmatpush1.msra.mxu0 %v221
    %4055 = vmatprep.subr.mxu0 %v225
    %4056 = vmatpush1.msra.mxu0 %v224
    %4057 = vmatprep.subr.mxu0 %v228
    %4058 = vmatpush1.msra.mxu0 %v227
    %4059 = vmatprep.subr.mxu0 %v231
    %4060 = vmatpush1.msra.mxu0 %v230
    %4061 = vmatprep.subr.mxu0 %v234
    %4062 = vmatpush1.msra.mxu0 %v233
    %4063 = vmatprep.subr.mxu0 %v237
    %4064 = vmatpush1.msra.mxu0 %v236
    %4065 = vmatprep.subr.mxu0 %v240
    %4066 = vmatpush1.msra.mxu0 %v239
    %4067 = vmatprep.subr.mxu0 0.0
    %4068 = vmatpush1.msra.mxu0 0.0
    %4069 = vmatprep.subr.mxu0 0.0
    %4070 = vmatpush1.msra.mxu0 0.0
    %4071 = vmatprep.subr.mxu0 0.0
    %4072 = vmatpush1.msra.mxu0 0.0
    %4073 = vmatprep.subr.mxu0 0.0
    %4074 = vmatpush1.msra.mxu0 0.0
    %4075 = vmatprep.subr.mxu0 0.0
    %4076 = vmatpush1.msra.mxu0 0.0
    %4077 = vmatprep.subr.mxu0 0.0
    %4078 = vmatpush1.msra.mxu0 0.0
    %4079 = vmatprep.subr.mxu0 0.0
    %4080 = vmatpush1.msra.mxu0 0.0
    %4081 = vmatprep.subr.mxu0 0.0
    %4082 = vmatpush1.msra.mxu0 0.0
    %4083 = vmatprep.subr.mxu0 0.0
    %4084 = vmatpush1.msra.mxu0 0.0
    %4085 = vmatprep.subr.mxu0 0.0
    %4086 = vmatpush1.msra.mxu0 0.0
    %4087 = vmatprep.subr.mxu0 0.0
    %4088 = vmatpush1.msra.mxu0 0.0
    %4089 = vmatprep.subr.mxu0 0.0
    %4090 = vmatpush1.msra.mxu0 0.0
    %4091 = vmatprep.subr.mxu0 0.0
    %4092 = vmatpush1.msra.mxu0 0.0
    %4093 = vmatprep.subr.mxu0 0.0
    %4094 = vmatpush1.msra.mxu0 0.0
    %4095 = vmatprep.subr.mxu0 0.0
    %4096 = vmatpush1.msra.mxu0 0.0
    %4097 = vmatprep.subr.mxu0 0.0
    %4098 = vmatpush1.msra.mxu0 0.0
    %4099 = vmatprep.mubr.f32.mxu0 0.0
    %4100 = vmatmul.mubr.f32.gmra.mrb[0].mxu0 %v4034
    %v4101 = vpop.f32.mrb[0].mxu0
    %v4102 = vadd.f32 %v247, %v4101
    %v4103 = vpop.f32.mrb[0].mxu0
    %v4104 = vadd.f32 %v251, %v4103
    %4105 = vdwg.mxu0
    %4106 = vmatprep.subr.mxu0 0.0
    %4107 = vmatpush1.msra.mxu0 %v196
    %4108 = vmatprep.subr.mxu0 0.0
    %4109 = vmatpush1.msra.mxu0 %v199
    %4110 = vmatprep.subr.mxu0 0.0
    %4111 = vmatpush1.msra.mxu0 %v202
    %4112 = vmatprep.subr.mxu0 0.0
    %4113 = vmatpush1.msra.mxu0 %v205
    %4114 = vmatprep.subr.mxu0 0.0
    %4115 = vmatpush1.msra.mxu0 %v208
    %4116 = vmatprep.subr.mxu0 0.0
    %4117 = vmatpush1.msra.mxu0 %v211
    %4118 = vmatprep.subr.mxu0 0.0
    %4119 = vmatpush1.msra.mxu0 %v214
    %4120 = vmatprep.subr.mxu0 0.0
    %4121 = vmatpush1.msra.mxu0 %v217
    %4122 = vmatprep.subr.mxu0 0.0
    %4123 = vmatpush1.msra.mxu0 %v220
    %4124 = vmatprep.subr.mxu0 0.0
    %4125 = vmatpush1.msra.mxu0 %v223
    %4126 = vmatprep.subr.mxu0 0.0
    %4127 = vmatpush1.msra.mxu0 %v226
    %4128 = vmatprep.subr.mxu0 0.0
    %4129 = vmatpush1.msra.mxu0 %v229
    %4130 = vmatprep.subr.mxu0 0.0
    %4131 = vmatpush1.msra.mxu0 %v232
    %4132 = vmatprep.subr.mxu0 0.0
    %4133 = vmatpush1.msra.mxu0 %v235
    %4134 = vmatprep.subr.mxu0 0.0
    %4135 = vmatpush1.msra.mxu0 %v238
    %4136 = vmatprep.subr.mxu0 0.0
    %4137 = vmatpush1.msra.mxu0 %v241
    %4138 = vmatprep.subr.mxu0 0.0
    %4139 = vmatpush1.msra.mxu0 0.0
    %4140 = vmatprep.subr.mxu0 0.0
    %4141 = vmatpush1.msra.mxu0 0.0
    %4142 = vmatprep.subr.mxu0 0.0
    %4143 = vmatpush1.msra.mxu0 0.0
    %4144 = vmatprep.subr.mxu0 0.0
    %4145 = vmatpush1.msra.mxu0 0.0
    %4146 = vmatprep.subr.mxu0 0.0
    %4147 = vmatpush1.msra.mxu0 0.0
    %4148 = vmatprep.subr.mxu0 0.0
    %4149 = vmatpush1.msra.mxu0 0.0
    %4150 = vmatprep.subr.mxu0 0.0
    %4151 = vmatpush1.msra.mxu0 0.0
    %4152 = vmatprep.subr.mxu0 0.0
    %4153 = vmatpush1.msra.mxu0 0.0
    %4154 = vmatprep.subr.mxu0 0.0
    %4155 = vmatpush1.msra.mxu0 0.0
    %4156 = vmatprep.subr.mxu0 0.0
    %4157 = vmatpush1.msra.mxu0 0.0
    %4158 = vmatprep.subr.mxu0 0.0
    %4159 = vmatpush1.msra.mxu0 0.0
    %4160 = vmatprep.subr.mxu0 0.0
    %4161 = vmatpush1.msra.mxu0 0.0
    %4162 = vmatprep.subr.mxu0 0.0
    %4163 = vmatpush1.msra.mxu0 0.0
    %4164 = vmatprep.subr.mxu0 0.0
    %4165 = vmatpush1.msra.mxu0 0.0
    %4166 = vmatprep.subr.mxu0 0.0
    %4167 = vmatpush1.msra.mxu0 0.0
    %4168 = vmatprep.subr.mxu0 0.0
    %4169 = vmatpush1.msra.mxu0 0.0
    %4170 = vmatprep.mubr.f32.mxu0 0.0
    %4171 = vmatmul.mubr.f32.gmra.mrb[0].mxu0 %v4034
    %v4172 = vpop.f32.mrb[0].mxu0
    %v4173 = vadd.f32 %v255, %v4172
    %v4174 = vpop.f32.mrb[0].mxu0
    %4175 = vdwg.mxu0
    %4176 = vmatprep.subr.mxu0 %v147
    %4177 = vmatpush1.msra.mxu0 %v146
    %4178 = vmatprep.subr.mxu0 %v150
    %4179 = vmatpush1.msra.mxu0 %v149
    %4180 = vmatprep.subr.mxu0 %v153
    %4181 = vmatpush1.msra.mxu0 %v152
    %4182 = vmatprep.subr.mxu0 %v156
    %4183 = vmatpush1.msra.mxu0 %v155
    %4184 = vmatprep.subr.mxu0 %v159
    %4185 = vmatpush1.msra.mxu0 %v158
    %4186 = vmatprep.subr.mxu0 %v162
    %4187 = vmatpush1.msra.mxu0 %v161
    %4188 = vmatprep.subr.mxu0 %v165
    %4189 = vmatpush1.msra.mxu0 %v164
    %4190 = vmatprep.subr.mxu0 %v168
    %4191 = vmatpush1.msra.mxu0 %v167
    %4192 = vmatprep.subr.mxu0 %v171
    %4193 = vmatpush1.msra.mxu0 %v170
    %4194 = vmatprep.subr.mxu0 %v174
    %4195 = vmatpush1.msra.mxu0 %v173
    %4196 = vmatprep.subr.mxu0 %v177
    %4197 = vmatpush1.msra.mxu0 %v176
    %4198 = vmatprep.subr.mxu0 %v180
    %4199 = vmatpush1.msra.mxu0 %v179
    %4200 = vmatprep.subr.mxu0 %v183
    %4201 = vmatpush1.msra.mxu0 %v182
    %4202 = vmatprep.subr.mxu0 %v186
    %4203 = vmatpush1.msra.mxu0 %v185
    %4204 = vmatprep.subr.mxu0 %v189
    %4205 = vmatpush1.msra.mxu0 %v188
    %4206 = vmatprep.subr.mxu0 %v192
    %4207 = vmatpush1.msra.mxu0 %v191
    %4208 = vmatprep.subr.mxu0 0.0
    %4209 = vmatpush1.msra.mxu0 0.0
    %4210 = vmatprep.subr.mxu0 0.0
    %4211 = vmatpush1.msra.mxu0 0.0
    %4212 = vmatprep.subr.mxu0 0.0
    %4213 = vmatpush1.msra.mxu0 0.0
    %4214 = vmatprep.subr.mxu0 0.0
    %4215 = vmatpush1.msra.mxu0 0.0
    %4216 = vmatprep.subr.mxu0 0.0
    %4217 = vmatpush1.msra.mxu0 0.0
    %4218 = vmatprep.subr.mxu0 0.0
    %4219 = vmatpush1.msra.mxu0 0.0
    %4220 = vmatprep.subr.mxu0 0.0
    %4221 = vmatpush1.msra.mxu0 0.0
    %4222 = vmatprep.subr.mxu0 0.0
    %4223 = vmatpush1.msra.mxu0 0.0
    %4224 = vmatprep.subr.mxu0 0.0
    %4225 = vmatpush1.msra.mxu0 0.0
    %4226 = vmatprep.subr.mxu0 0.0
    %4227 = vmatpush1.msra.mxu0 0.0
    %4228 = vmatprep.subr.mxu0 0.0
    %4229 = vmatpush1.msra.mxu0 0.0
    %4230 = vmatprep.subr.mxu0 0.0
    %4231 = vmatpush1.msra.mxu0 0.0
    %4232 = vmatprep.subr.mxu0 0.0
    %4233 = vmatpush1.msra.mxu0 0.0
    %4234 = vmatprep.subr.mxu0 0.0
    %4235 = vmatpush1.msra.mxu0 0.0
    %4236 = vmatprep.subr.mxu0 0.0
    %4237 = vmatpush1.msra.mxu0 0.0
    %4238 = vmatprep.subr.mxu0 0.0
    %4239 = vmatpush1.msra.mxu0 0.0
    %4240 = vmatprep.mubr.f32.mxu0 0.0
    %4241 = vmatmul.mubr.f32.gmra.mrb[0].mxu0 %v3866
    %v4242 = vpop.f32.mrb[0].mxu0
    %v4243 = vadd.f32 0.0, %v4242
    %v4244 = vpop.f32.mrb[0].mxu0
    %v4245 = vadd.f32 0.0, %v4244
    %4246 = vdwg.mxu0
    %4247 = vmatprep.subr.mxu0 0.0
    %4248 = vmatpush1.msra.mxu0 %v148
    %4249 = vmatprep.subr.mxu0 0.0
    %4250 = vmatpush1.msra.mxu0 %v151
    %4251 = vmatprep.subr.mxu0 0.0
    %4252 = vmatpush1.msra.mxu0 %v154
    %4253 = vmatprep.subr.mxu0 0.0
    %4254 = vmatpush1.msra.mxu0 %v157
    %4255 = vmatprep.subr.mxu0 0.0
    %4256 = vmatpush1.msra.mxu0 %v160
    %4257 = vmatprep.subr.mxu0 0.0
    %4258 = vmatpush1.msra.mxu0 %v163
    %4259 = vmatprep.subr.mxu0 0.0
    %4260 = vmatpush1.msra.mxu0 %v166
    %4261 = vmatprep.subr.mxu0 0.0
    %4262 = vmatpush1.msra.mxu0 %v169
    %4263 = vmatprep.subr.mxu0 0.0
    %4264 = vmatpush1.msra.mxu0 %v172
    %4265 = vmatprep.subr.mxu0 0.0
    %4266 = vmatpush1.msra.mxu0 %v175
    %4267 = vmatprep.subr.mxu0 0.0
    %4268 = vmatpush1.msra.mxu0 %v178
    %4269 = vmatprep.subr.mxu0 0.0
    %4270 = vmatpush1.msra.mxu0 %v181
    %4271 = vmatprep.subr.mxu0 0.0
    %4272 = vmatpush1.msra.mxu0 %v184
    %4273 = vmatprep.subr.mxu0 0.0
    %4274 = vmatpush1.msra.mxu0 %v187
    %4275 = vmatprep.subr.mxu0 0.0
    %4276 = vmatpush1.msra.mxu0 %v190
    %4277 = vmatprep.subr.mxu0 0.0
    %4278 = vmatpush1.msra.mxu0 %v193
    %4279 = vmatprep.subr.mxu0 0.0
    %4280 = vmatpush1.msra.mxu0 0.0
    %4281 = vmatprep.subr.mxu0 0.0
    %4282 = vmatpush1.msra.mxu0 0.0
    %4283 = vmatprep.subr.mxu0 0.0
    %4284 = vmatpush1.msra.mxu0 0.0
    %4285 = vmatprep.subr.mxu0 0.0
    %4286 = vmatpush1.msra.mxu0 0.0
    %4287 = vmatprep.subr.mxu0 0.0
    %4288 = vmatpush1.msra.mxu0 0.0
    %4289 = vmatprep.subr.mxu0 0.0
    %4290 = vmatpush1.msra.mxu0 0.0
    %4291 = vmatprep.subr.mxu0 0.0
    %4292 = vmatpush1.msra.mxu0 0.0
    %4293 = vmatprep.subr.mxu0 0.0
    %4294 = vmatpush1.msra.mxu0 0.0
    %4295 = vmatprep.subr.mxu0 0.0
    %4296 = vmatpush1.msra.mxu0 0.0
    %4297 = vmatprep.subr.mxu0 0.0
    %4298 = vmatpush1.msra.mxu0 0.0
    %4299 = vmatprep.subr.mxu0 0.0
    %4300 = vmatpush1.msra.mxu0 0.0
    %4301 = vmatprep.subr.mxu0 0.0
    %4302 = vmatpush1.msra.mxu0 0.0
    %4303 = vmatprep.subr.mxu0 0.0
    %4304 = vmatpush1.msra.mxu0 0.0
    %4305 = vmatprep.subr.mxu0 0.0
    %4306 = vmatpush1.msra.mxu0 0.0
    %4307 = vmatprep.subr.mxu0 0.0
    %4308 = vmatpush1.msra.mxu0 0.0
    %4309 = vmatprep.subr.mxu0 0.0
    %4310 = vmatpush1.msra.mxu0 0.0
    %4311 = vmatprep.mubr.f32.mxu0 0.0
    %4312 = vmatmul.mubr.f32.gmra.mrb[0].mxu0 %v3866
    %v4313 = vpop.f32.mrb[0].mxu0
    %v4314 = vadd.f32 0.0, %v4313
    %v4315 = vpop.f32.mrb[0].mxu0
    %4316 = vdwg.mxu0
    %v4317 = vadd.f32 %v4102, %v4243
    %v4318 = vxor.u32 %v4317, 2147483648
    %v4319 = vmul.f32 %v4318, 1.442695
    %v4320 = vpow.pop %v4319
    %v4321 = vadd.f32 %v4320, 1.0
    %v4322 = vrcp.pop %v4321
    %v4323 = vmul.f32 1.0, %v4322
    %v4324 = vadd.f32 %v4104, %v4245
    %v4325 = vxor.u32 %v4324, 2147483648
    %v4326 = vmul.f32 %v4325, 1.442695
    %v4327 = vpow.pop %v4326
    %v4328 = vadd.f32 %v4327, 1.0
    %v4329 = vrcp.pop %v4328
    %v4330 = vmul.f32 1.0, %v4329
    %v4331 = vadd.f32 %v4314, %v271
    %v4332 = vmul.f32 %v4323, %v4331
    %v4333 = vadd.f32 %v4173, %v4332
    %v4334 = vtanh.pop %v4333
    %v4335 = vsub.f32 %v3866, %v4334
    %v4336 = vmul.f32 %v4330, %v4335
    %v4337 = vadd.f32 %v4334, %v4336
    %s4338 = scalar_lea.vmem %s13, 56
    %4339 = vst [vmem:[%s4338] sm:$0xff] %v4337
    %v4340 = vld [vmem:[%s13] sm:$0xff]
    %v4341 = vld [vmem:[%s13 + $0x8] sm:$0xff]
    %v4342 = vld [vmem:[%s13 + $0x10] sm:$0xff]
    %v4343 = vld [vmem:[%s13 + $0x18] sm:$0xff]
    %v4344 = vld [vmem:[%s13 + $0x20] sm:$0xff]
    %v4345 = vld [vmem:[%s13 + $0x28] sm:$0xff]
    %v4346 = vld [vmem:[%s13 + $0x30] sm:$0xff]
    %v4347 = vld [vmem:[%s13 + $0x38] sm:$0xff]
    %v4348 = vmax.f32 %v4340, 0.0
    %v4349 = vmax.f32 %v4341, 0.0
    %v4350 = vmax.f32 %v4342, 0.0
    %v4351 = vmax.f32 %v4343, 0.0
    %v4352 = vmax.f32 %v4344, 0.0
    %v4353 = vmax.f32 %v4345, 0.0
    %v4354 = vmax.f32 %v4346, 0.0
    %v4355 = vmax.f32 %v4347, 0.0
    %v4356 = vld [vmem:[%s10] sm:$0xff]
    %v4357 = vld [vmem:[%s10 + $0x8] sm:$0xff]
    %v4358 = vld [vmem:[%s10 + $0x10] sm:$0xff]
    %v4359 = vld [vmem:[%s10 + $0x18] sm:$0xff]
    %v4360 = vld [vmem:[%s10 + $0x20] sm:$0xff]
    %v4361 = vld [vmem:[%s10 + $0x28] sm:$0xff]
    %v4362 = vld [vmem:[%s10 + $0x30] sm:$0xff]
    %v4363 = vld [vmem:[%s10 + $0x38] sm:$0xff]
    %v4364 = vld [vmem:[%s10 + $0x40] sm:$0xff]
    %v4365 = vld [vmem:[%s10 + $0x48] sm:$0xff]
    %v4366 = vld [vmem:[%s10 + $0x50] sm:$0xff]
    %v4367 = vld [vmem:[%s10 + $0x58] sm:$0xff]
    %v4368 = vld [vmem:[%s10 + $0x60] sm:$0xff]
    %v4369 = vld [vmem:[%s10 + $0x68] sm:$0xff]
    %v4370 = vld [vmem:[%s10 + $0x70] sm:$0xff]
    %v4371 = vld [vmem:[%s10 + $0x78] sm:$0xff]
    %v4372 = vld [vmem:[%s11] sm:$0x1]
    %v4374 = vlaneseq
    %v4375 = vshrl.u32 %v4374, 7
    %v4376 = vsub.s32 0, %v4375
    %v4377 = vrot.slane %v4372, %v4376
    %4379 = vmatprep.subr.mxu0 0.0
    %4380 = vmatpush1.msra.mxu0 %v4356
    %4381 = vmatprep.subr.mxu0 0.0
    %4382 = vmatpush1.msra.mxu0 %v4357
    %4383 = vmatprep.subr.mxu0 0.0
    %4384 = vmatpush1.msra.mxu0 %v4358
    %4385 = vmatprep.subr.mxu0 0.0
    %4386 = vmatpush1.msra.mxu0 %v4359
    %4387 = vmatprep.subr.mxu0 0.0
    %4388 = vmatpush1.msra.mxu0 %v4360
    %4389 = vmatprep.subr.mxu0 0.0
    %4390 = vmatpush1.msra.mxu0 %v4361
    %4391 = vmatprep.subr.mxu0 0.0
    %4392 = vmatpush1.msra.mxu0 %v4362
    %4393 = vmatprep.subr.mxu0 0.0
    %4394 = vmatpush1.msra.mxu0 %v4363
    %4395 = vmatprep.subr.mxu0 0.0
    %4396 = vmatpush1.msra.mxu0 %v4364
    %4397 = vmatprep.subr.mxu0 0.0
    %4398 = vmatpush1.msra.mxu0 %v4365
    %4399 = vmatprep.subr.mxu0 0.0
    %4400 = vmatpush1.msra.mxu0 %v4366
    %4401 = vmatprep.subr.mxu0 0.0
    %4402 = vmatpush1.msra.mxu0 %v4367
    %4403 = vmatprep.subr.mxu0 0.0
    %4404 = vmatpush1.msra.mxu0 %v4368
    %4405 = vmatprep.subr.mxu0 0.0
    %4406 = vmatpush1.msra.mxu0 %v4369
    %4407 = vmatprep.subr.mxu0 0.0
    %4408 = vmatpush1.msra.mxu0 %v4370
    %4409 = vmatprep.subr.mxu0 0.0
    %4410 = vmatpush1.msra.mxu0 %v4371
    %4411 = vmatprep.subr.mxu0 0.0
    %4412 = vmatpush1.msra.mxu0 0.0
    %4413 = vmatprep.subr.mxu0 0.0
    %4414 = vmatpush1.msra.mxu0 0.0
    %4415 = vmatprep.subr.mxu0 0.0
    %4416 = vmatpush1.msra.mxu0 0.0
    %4417 = vmatprep.subr.mxu0 0.0
    %4418 = vmatpush1.msra.mxu0 0.0
    %4419 = vmatprep.subr.mxu0 0.0
    %4420 = vmatpush1.msra.mxu0 0.0
    %4421 = vmatprep.subr.mxu0 0.0
    %4422 = vmatpush1.msra.mxu0 0.0
    %4423 = vmatprep.subr.mxu0 0.0
    %4424 = vmatpush1.msra.mxu0 0.0
    %4425 = vmatprep.subr.mxu0 0.0
    %4426 = vmatpush1.msra.mxu0 0.0
    %4427 = vmatprep.subr.mxu0 0.0
    %4428 = vmatpush1.msra.mxu0 0.0
    %4429 = vmatprep.subr.mxu0 0.0
    %4430 = vmatpush1.msra.mxu0 0.0
    %4431 = vmatprep.subr.mxu0 0.0
    %4432 = vmatpush1.msra.mxu0 0.0
    %4433 = vmatprep.subr.mxu0 0.0
    %4434 = vmatpush1.msra.mxu0 0.0
    %4435 = vmatprep.subr.mxu0 0.0
    %4436 = vmatpush1.msra.mxu0 0.0
    %4437 = vmatprep.subr.mxu0 0.0
    %4438 = vmatpush1.msra.mxu0 0.0
    %4439 = vmatprep.subr.mxu0 0.0
    %4440 = vmatpush1.msra.mxu0 0.0
    %4441 = vmatprep.subr.mxu0 0.0
    %4442 = vmatpush1.msra.mxu0 0.0
    %4443 = vmatprep.mubr.f32.mxu0 0.0
    %4444 = vmatmul.mubr.f32.gmra.mrb[0].mxu0 %v4348
    %v4445 = vpop.f32.mrb[0].mxu0
    %v4446 = vadd.f32 %v4377, %v4445
    %v4447 = vpop.f32.mrb[0].mxu0
    %4448 = vmatprep.mubr.f32.mxu0 0.0
    %4449 = vmatmul.mubr.f32.gmra.mrb[0].mxu0 %v4349
    %v4450 = vpop.f32.mrb[0].mxu0
    %v4451 = vadd.f32 %v4377, %v4450
    %v4452 = vpop.f32.mrb[0].mxu0
    %4453 = vmatprep.mubr.f32.mxu0 0.0
    %4454 = vmatmul.mubr.f32.gmra.mrb[0].mxu0 %v4350
    %v4455 = vpop.f32.mrb[0].mxu0
    %v4456 = vadd.f32 %v4377, %v4455
    %v4457 = vpop.f32.mrb[0].mxu0
    %4458 = vmatprep.mubr.f32.mxu0 0.0
    %4459 = vmatmul.mubr.f32.gmra.mrb[0].mxu0 %v4351
    %v4460 = vpop.f32.mrb[0].mxu0
    %v4461 = vadd.f32 %v4377, %v4460
    %v4462 = vpop.f32.mrb[0].mxu0
    %4463 = vmatprep.mubr.f32.mxu0 0.0
    %4464 = vmatmul.mubr.f32.gmra.mrb[0].mxu0 %v4352
    %v4465 = vpop.f32.mrb[0].mxu0
    %v4466 = vadd.f32 %v4377, %v4465
    %v4467 = vpop.f32.mrb[0].mxu0
    %4468 = vmatprep.mubr.f32.mxu0 0.0
    %4469 = vmatmul.mubr.f32.gmra.mrb[0].mxu0 %v4353
    %v4470 = vpop.f32.mrb[0].mxu0
    %v4471 = vadd.f32 %v4377, %v4470
    %v4472 = vpop.f32.mrb[0].mxu0
    %4473 = vmatprep.mubr.f32.mxu0 0.0
    %4474 = vmatmul.mubr.f32.gmra.mrb[0].mxu0 %v4354
    %v4475 = vpop.f32.mrb[0].mxu0
    %v4476 = vadd.f32 %v4377, %v4475
    %v4477 = vpop.f32.mrb[0].mxu0
    %4478 = vmatprep.mubr.f32.mxu0 0.0
    %4479 = vmatmul.mubr.f32.gmra.mrb[0].mxu0 %v4355
    %v4480 = vpop.f32.mrb[0].mxu0
    %v4481 = vadd.f32 %v4377, %v4480
    %v4482 = vpop.f32.mrb[0].mxu0
    %4483 = vdwg.mxu0
    %v4484 = vxor.u32 %v4446, 2147483648
    %v4485 = vxor.u32 %v4451, 2147483648
    %v4486 = vxor.u32 %v4456, 2147483648
    %v4487 = vxor.u32 %v4461, 2147483648
    %v4488 = vxor.u32 %v4466, 2147483648
    %v4489 = vxor.u32 %v4471, 2147483648
    %v4490 = vxor.u32 %v4476, 2147483648
    %v4491 = vxor.u32 %v4481, 2147483648
    %v4492 = vmul.f32 %v4484, 1.442695
    %v4493 = vpow.pop %v4492
    %v4494 = vmul.f32 %v4485, 1.442695
    %v4495 = vpow.pop %v4494
    %v4496 = vmul.f32 %v4486, 1.442695
    %v4497 = vpow.pop %v4496
    %v4498 = vmul.f32 %v4487, 1.442695
    %v4499 = vpow.pop %v4498
    %v4500 = vmul.f32 %v4488, 1.442695
    %v4501 = vpow.pop %v4500
    %v4502 = vmul.f32 %v4489, 1.442695
    %v4503 = vpow.pop %v4502
    %v4504 = vmul.f32 %v4490, 1.442695
    %v4505 = vpow.pop %v4504
    %v4506 = vmul.f32 %v4491, 1.442695
    %v4507 = vpow.pop %v4506
    %v4508 = vadd.f32 %v4493, 1.0
    %v4509 = vadd.f32 %v4495, 1.0
    %v4510 = vadd.f32 %v4497, 1.0
    %v4511 = vadd.f32 %v4499, 1.0
    %v4512 = vadd.f32 %v4501, 1.0
    %v4513 = vadd.f32 %v4503, 1.0
    %v4514 = vadd.f32 %v4505, 1.0
    %v4515 = vadd.f32 %v4507, 1.0
    %v4516 = vrcp.pop %v4508
    %v4517 = vmul.f32 1.0, %v4516
    %v4518 = vrcp.pop %v4509
    %v4519 = vmul.f32 1.0, %v4518
    %v4520 = vrcp.pop %v4510
    %v4521 = vmul.f32 1.0, %v4520
    %v4522 = vrcp.pop %v4511
    %v4523 = vmul.f32 1.0, %v4522
    %v4524 = vrcp.pop %v4512
    %v4525 = vmul.f32 1.0, %v4524
    %v4526 = vrcp.pop %v4513
    %v4527 = vmul.f32 1.0, %v4526
    %v4528 = vrcp.pop %v4514
    %v4529 = vmul.f32 1.0, %v4528
    %v4530 = vrcp.pop %v4515
    %v4531 = vmul.f32 1.0, %v4530
    %4532 = vst [vmem:[%s12] sm:$0xff] %v4517
    %4533 = vst [vmem:[%s12 + $0x8] sm:$0xff] %v4519
    %4534 = vst [vmem:[%s12 + $0x10] sm:$0xff] %v4521
    %4535 = vst [vmem:[%s12 + $0x18] sm:$0xff] %v4523
    %4536 = vst [vmem:[%s12 + $0x20] sm:$0xff] %v4525
    %4537 = vst [vmem:[%s12 + $0x28] sm:$0xff] %v4527
    %4538 = vst [vmem:[%s12 + $0x30] sm:$0xff] %v4529
    %4539 = vst [vmem:[%s12 + $0x38] sm:$0xff] %v4531
    // Predicated region
    $region66: #{gru_forward.1} parent=1 // pred_check
      _
    $region67: #{gru_forward.1} parent=1 // pred_check_branch
      %4541 = sbr.rel (0) target = $region69
    $region68: #{gru_forward.1} parent=1 // pred_region
      _
    $region69: #{gru_forward.1} parent=1 // pred_fallthru
      _
    // Predicated region
    $region70: #{gru_forward.1} parent=1 // pred_check
      _
    $region71: #{gru_forward.1} parent=1 // pred_check_branch
      %4543 = sbr.rel (0) target = $region73
    $region72: #{gru_forward.1} parent=1 // pred_region
      _
    $region73: #{gru_forward.1} parent=1 // pred_fallthru
      _
    // Predicated region
    $region74: #{gru_forward.1} parent=1 // pred_check
      _
    $region75: #{gru_forward.1} parent=1 // pred_check_branch
      %4545 = sbr.rel (0) target = $region77
    $region76: #{gru_forward.1} parent=1 // pred_region
      _
    $region77: #{gru_forward.1} parent=1 // pred_fallthru
      _
    // Predicated region
    $region78: #{gru_forward.1} parent=1 // pred_check
      _
    $region79: #{gru_forward.1} parent=1 // pred_check_branch
      %4547 = sbr.rel (0) target = $region81
    $region80: #{gru_forward.1} parent=1 // pred_region
      _
    $region81: #{gru_forward.1} parent=1 // pred_fallthru
      _
    %4548 = vsyncpa [#allocation4], 1
    %4549 = vsyncpa [#allocation6], 1
    %4550 = vsyncpa [#allocation9], 1

</llo_original>
